<compile_context>
chip_gen: v6e
topology: v6e:2x2x1
jax: 0.10.0
libtpu: 0.0.40
codegen_flags: <defaults>
</compile_context>

<pallas_src>
import jax
import jax.numpy as jnp
from jax import lax
from jax.experimental import pallas as pl
from jax.experimental.pallas import tpu as pltpu


# ----------------------------------------------------------------------------- kernel
def _tsrnn_kernel(x_ref, wenc_ref, benc_ref, wih_ref, whh_ref, b_ref,
                  out_ref, gates_sc, hseq_sc):
    """One grid step == full-sequence LSTM recurrence for one batch block."""
    bb, T, D = x_ref.shape
    H = whh_ref.shape[0]

    # ---- hoisted, time-independent work: two big lane-dense bf16 matmuls ----
    xf = x_ref[...].reshape(bb * T, D).astype(jnp.bfloat16)      # leading-dim merge
    z = jnp.dot(xf, wenc_ref[...], preferred_element_type=jnp.float32)
    z = jnp.maximum(z + benc_ref[...], 0.0)                      # encoder Linear+ReLU (f32)
    # One-shot XLU relayout to time-major so every per-step gate load below is
    # a contiguous (bb, 4H) slab.
    zt = jnp.transpose(z.reshape(bb, T, H), (1, 0, 2)).reshape(T * bb, H)
    gx = jnp.dot(zt.astype(jnp.bfloat16), wih_ref[...],
                 preferred_element_type=jnp.float32)
    gx = gx + b_ref[...]                                         # b = b_ih + b_hh (f32)
    gates_sc[...] = gx.reshape(T, bb, 4 * H)                     # time-major, VMEM

    # ---- serial recurrence: only h @ W_hh + pointwise per step --------------
    def step(t, carry):
        h, c = carry
        gates = gates_sc[t] + jnp.dot(h.astype(jnp.bfloat16), whh_ref[...],
                                      preferred_element_type=jnp.float32)
        # PyTorch LSTM gate order: i, f, g, o (H multiple of 128 => lane-aligned)
        i_g = jax.nn.sigmoid(gates[:, 0 * H:1 * H])
        f_g = jax.nn.sigmoid(gates[:, 1 * H:2 * H])
        g_g = jnp.tanh(gates[:, 2 * H:3 * H])
        o_g = jax.nn.sigmoid(gates[:, 3 * H:4 * H])
        c_new = f_g * c + i_g * g_g
        h_new = o_g * jnp.tanh(c_new)
        hseq_sc[t] = h_new                                       # contiguous VMEM store
        return h_new, c_new

    h0 = jnp.zeros((bb, H), jnp.float32)
    lax.fori_loop(0, T, step, (h0, h0), unroll=(T if T <= 32 else 8))

    # One-shot XLU transpose of the VMEM-resident result -> batch-major output
    # block; no wrapper-side HBM transpose of the output.
    out_ref[...] = jnp.transpose(hseq_sc[...], (1, 0, 2)).astype(out_ref.dtype)


# ----------------------------------------------------------------------------- wrapper
def _num_tensorcores():
    try:
        kind = jax.devices()[0].device_kind.lower()
    except Exception:
        return 1
    return 2 if ("v7" in kind or "7x" in kind) else 1


def _pick_batch_block(B, max_block=256):
    """Largest multiple-of-8 divisor of B <= cap; cap halves on 2-TC devices."""
    n_tc = _num_tensorcores()
    cap = min(B, max_block)
    if n_tc >= 2 and B >= 16:
        cap = min(cap, -(-B // n_tc))          # ceil(B / n_tc) -> >= n_tc grid points
    cands = [bb for bb in range(8, cap + 1, 8) if B % bb == 0]
    return max(cands) if cands else B


def tsrnn_forward(x, params, *, batch_block=None):
    """x: (B, T, D) float32 -> (rnn_outs (B, T, H), last (B, H))."""
    B, T, D = x.shape
    H = params["w_enc"].shape[1]
    if batch_block is not None and B % batch_block == 0:
        bb = batch_block
    else:
        bb = _pick_batch_block(B)

    # bf16 matmul operands (weights); biases stay f32 and are pre-summed.
    w_enc = params["w_enc"].astype(jnp.bfloat16)
    w_ih = params["w_ih"].astype(jnp.bfloat16)
    w_hh = params["w_hh"].astype(jnp.bfloat16)
    b_enc = params["b_enc"].astype(jnp.float32)
    b_gates = (params["b_ih"] + params["b_hh"]).astype(jnp.float32)

    # Explicit VMEM budget: scratch (gates + h-seq) + double-buffered x/out
    # blocks + weights, with headroom; capped below v7x's 64 MiB physical VMEM.
    bytes_scratch = 4 * T * bb * (4 * H) + 4 * T * bb * H
    bytes_io = 2 * 4 * bb * T * D + 2 * 4 * bb * T * H
    bytes_w = 2 * 2 * (D * H + 2 * H * 4 * H) + 2 * 4 * (H + 4 * H)
    vmem_limit = int(1.5 * (bytes_scratch + bytes_io + bytes_w)) + (2 << 20)
    vmem_limit = min(max(vmem_limit, 16 << 20), 48 << 20)

    grid_spec = pltpu.PrefetchScalarGridSpec(
        num_scalar_prefetch=0,
        grid=(B // bb,),                                     # parallel over batch blocks
        in_specs=[
            pl.BlockSpec((bb, T, D), lambda i: (i, 0, 0)),   # x, batch-major, full sequence
            pl.BlockSpec((D, H), lambda i: (0, 0)),          # encoder weight (bf16)
            pl.BlockSpec((1, H), lambda i: (0, 0)),          # encoder bias (f32)
            pl.BlockSpec((H, 4 * H), lambda i: (0, 0)),      # W_ih^T (bf16)
            pl.BlockSpec((H, 4 * H), lambda i: (0, 0)),      # W_hh^T (bf16)
            pl.BlockSpec((1, 4 * H), lambda i: (0, 0)),      # b_ih + b_hh (f32)
        ],
        out_specs=pl.BlockSpec((bb, T, H), lambda i: (i, 0, 0)),
        scratch_shapes=[
            pltpu.VMEM((T, bb, 4 * H), jnp.float32),         # hoisted gates_x (time-major)
            pltpu.VMEM((T, bb, H), jnp.float32),             # h sequence (time-major)
        ],
    )

    rnn_outs = pl.pallas_call(
        _tsrnn_kernel,
        out_shape=jax.ShapeDtypeStruct((B, T, H), jnp.float32),
        grid_spec=grid_spec,
        compiler_params=pltpu.CompilerParams(
            dimension_semantics=("parallel",),               # batch blocks independent
            vmem_limit_bytes=vmem_limit),
    )(x, w_enc, b_enc, w_ih, w_hh, b_gates)

    return rnn_outs, rnn_outs[:, -1, :]


# ----------------------------------------------------------------------------- params / reference
def init_params(key, input_size, hidden_size):
    """Deterministic synthetic parameters (PyTorch-style uniform init)."""
    D, H = input_size, hidden_size
    ks = jax.random.split(key, 6)
    s_enc = 1.0 / jnp.sqrt(D)
    s_rnn = 1.0 / jnp.sqrt(H)
    return {
        # stored transposed: (in_dim, out_dim)
        "w_enc": jax.random.uniform(ks[0], (D, H), jnp.float32, -s_enc, s_enc),
        "b_enc": jax.random.uniform(ks[1], (1, H), jnp.float32, -s_enc, s_enc),
        "w_ih": jax.random.uniform(ks[2], (H, 4 * H), jnp.float32, -s_rnn, s_rnn),
        "w_hh": jax.random.uniform(ks[3], (H, 4 * H), jnp.float32, -s_rnn, s_rnn),
        "b_ih": jax.random.uniform(ks[4], (1, 4 * H), jnp.float32, -s_rnn, s_rnn),
        "b_hh": jax.random.uniform(ks[5], (1, 4 * H), jnp.float32, -s_rnn, s_rnn),
    }


def tsrnn_reference(x, params):
    """Pure-JAX reference (nn.Linear+ReLU then nn.LSTM, batch_first), with the
    same bf16-operand / f32-accumulate matmul numerics as the kernel."""
    H = params["w_enc"].shape[1]
    bf = jnp.bfloat16
    z = jax.nn.relu(
        jnp.dot(x.astype(bf), params["w_enc"].astype(bf),
                preferred_element_type=jnp.float32) + params["b_enc"])  # (B,T,H) f32
    w_ih = params["w_ih"].astype(bf)
    w_hh = params["w_hh"].astype(bf)
    b = params["b_ih"] + params["b_hh"]

    def step(carry, z_t):
        h, c = carry
        gates = (jnp.dot(z_t.astype(bf), w_ih, preferred_element_type=jnp.float32) + b
                 + jnp.dot(h.astype(bf), w_hh, preferred_element_type=jnp.float32))
        i = jax.nn.sigmoid(gates[:, 0 * H:1 * H])
        f = jax.nn.sigmoid(gates[:, 1 * H:2 * H])
        g = jnp.tanh(gates[:, 2 * H:3 * H])
        o = jax.nn.sigmoid(gates[:, 3 * H:4 * H])
        c = f * c + i * g
        h = o * jnp.tanh(c)
        return (h, c), h

    B = x.shape[0]
    h0 = jnp.zeros((B, H), jnp.float32)
    (_, _), hs = lax.scan(step, (h0, h0), jnp.transpose(z, (1, 0, 2)))
    rnn_outs = jnp.transpose(hs, (1, 0, 2))
    return rnn_outs, rnn_outs[:, -1, :]


# ----------------------------------------------------------------------------- demo
if __name__ == "__main__":
    B, T, D, H = 8, 8, 16, 128          # batch, seq, input_size, hidden_size

    key = jax.random.PRNGKey(0)
    k_x, k_p = jax.random.split(key)
    x = jax.random.normal(k_x, (B, T, D), jnp.float32)
    params = init_params(k_p, D, H)

    fwd = jax.jit(tsrnn_forward)
    rnn_outs, last = fwd(x, params)
    jax.block_until_ready((rnn_outs, last))

    ref_outs, ref_last = tsrnn_reference(x, params)
    assert rnn_outs.shape == (B, T, H) and last.shape == (B, H)
    # bf16 matmul operands => relaxed tolerance vs. the matching bf16 reference.
    assert jnp.allclose(rnn_outs, ref_outs, atol=5e-3, rtol=5e-3)
    assert jnp.allclose(last, ref_last, atol=5e-3, rtol=5e-3)

    print("KERNEL_OK")
</pallas_src>

<mosaic_0001>
module attributes {stable_mosaic.version = 11 : i64} {
  func.func @_tsrnn_kernel(%arg0: i32, %arg1: memref<8x8x16xf32, #tpu.memory_space<vmem>>, %arg2: memref<16x128xbf16, #tpu.memory_space<vmem>>, %arg3: memref<1x128xf32, #tpu.memory_space<vmem>>, %arg4: memref<128x512xbf16, #tpu.memory_space<vmem>>, %arg5: memref<128x512xbf16, #tpu.memory_space<vmem>>, %arg6: memref<1x512xf32, #tpu.memory_space<vmem>>, %arg7: memref<8x8x128xf32, #tpu.memory_space<vmem>>, %arg8: memref<8x8x512xf32, #tpu.memory_space<vmem>>, %arg9: memref<8x8x128xf32, #tpu.memory_space<vmem>>) attributes {dimension_semantics = [#tpu.dimension_semantics<parallel>], iteration_bounds = array<i64: 1>, scalar_prefetch = 0 : i64, scratch_operands = 2 : i64, tpu.core_type = #tpu.core_type<tc>, window_params = [{transform_indices = @transform_0, window_bounds = array<i64: 8, 8, 16>}, {pipeline_mode = #tpu.pipeline_mode<synchronous>, transform_indices = @transform_1, window_bounds = array<i64: 16, 128>}, {pipeline_mode = #tpu.pipeline_mode<synchronous>, transform_indices = @transform_2, window_bounds = array<i64: 1, 128>}, {pipeline_mode = #tpu.pipeline_mode<synchronous>, transform_indices = @transform_3, window_bounds = array<i64: 128, 512>}, {pipeline_mode = #tpu.pipeline_mode<synchronous>, transform_indices = @transform_4, window_bounds = array<i64: 128, 512>}, {pipeline_mode = #tpu.pipeline_mode<synchronous>, transform_indices = @transform_5, window_bounds = array<i64: 1, 512>}, {transform_indices = @transform_6, window_bounds = array<i64: 8, 8, 128>}]} {
    %c0 = arith.constant 0 : index
    %c0_0 = arith.constant 0 : index
    %c0_1 = arith.constant 0 : index
    %0 = vector.load %arg1[%c0, %c0_0, %c0_1] : memref<8x8x16xf32, #tpu.memory_space<vmem>>, vector<8x8x16xf32>
    %1 = vector.shape_cast %0 : vector<8x8x16xf32> to vector<64x16xf32>
    %2 = arith.truncf %1 : vector<64x16xf32> to vector<64x16xbf16>
    %c0_2 = arith.constant 0 : index
    %c0_3 = arith.constant 0 : index
    %3 = vector.load %arg2[%c0_2, %c0_3] : memref<16x128xbf16, #tpu.memory_space<vmem>>, vector<16x128xbf16>
    %cst = arith.constant dense<0.000000e+00> : vector<64x128xf32>
    %4 = tpu.matmul %2, %3, %cst {dimension_numbers = #tpu.dot_dimension_numbers<[1], [0], [0], [1], [0, 0, 1, 1], [], []>} : vector<64x16xbf16>, vector<16x128xbf16>, vector<64x128xf32> -> vector<64x128xf32>
    %c0_4 = arith.constant 0 : index
    %c0_5 = arith.constant 0 : index
    %5 = vector.load %arg3[%c0_4, %c0_5] : memref<1x128xf32, #tpu.memory_space<vmem>>, vector<1x128xf32>
    %6 = vector.broadcast %5 : vector<1x128xf32> to vector<64x128xf32>
    %7 = arith.addf %4, %6 : vector<64x128xf32>
    %cst_6 = arith.constant 0.000000e+00 : f32
    %8 = vector.broadcast %cst_6 : f32 to vector<64x128xf32>
    %9 = arith.maximumf %7, %8 : vector<64x128xf32>
    %10 = vector.shape_cast %9 : vector<64x128xf32> to vector<8x8x128xf32>
    %11 = tpu.transpose %10, [1, 0, 2] : vector<8x8x128xf32> -> vector<8x8x128xf32>
    %12 = vector.shape_cast %11 : vector<8x8x128xf32> to vector<64x128xf32>
    %13 = arith.truncf %12 : vector<64x128xf32> to vector<64x128xbf16>
    %c0_7 = arith.constant 0 : index
    %c0_8 = arith.constant 0 : index
    %14 = vector.load %arg4[%c0_7, %c0_8] : memref<128x512xbf16, #tpu.memory_space<vmem>>, vector<128x512xbf16>
    %cst_9 = arith.constant dense<0.000000e+00> : vector<64x512xf32>
    %15 = tpu.matmul %13, %14, %cst_9 {dimension_numbers = #tpu.dot_dimension_numbers<[1], [0], [0], [1], [0, 0, 1, 1], [], []>} : vector<64x128xbf16>, vector<128x512xbf16>, vector<64x512xf32> -> vector<64x512xf32>
    %c0_10 = arith.constant 0 : index
    %c0_11 = arith.constant 0 : index
    %16 = vector.load %arg6[%c0_10, %c0_11] : memref<1x512xf32, #tpu.memory_space<vmem>>, vector<1x512xf32>
    %17 = vector.broadcast %16 : vector<1x512xf32> to vector<64x512xf32>
    %18 = arith.addf %15, %17 : vector<64x512xf32>
    %19 = vector.shape_cast %18 : vector<64x512xf32> to vector<8x8x512xf32>
    %c0_12 = arith.constant 0 : index
    %c0_13 = arith.constant 0 : index
    %c0_14 = arith.constant 0 : index
    %20 = vector.load %arg8[%c0_12, %c0_13, %c0_14] : memref<8x8x512xf32, #tpu.memory_space<vmem>>, vector<8x8x512xf32>
    tpu.vector_store %arg8[%c0_12, %c0_13, %c0_14], %19 {strides = array<i32>} : memref<8x8x512xf32, #tpu.memory_space<vmem>>, vector<8x8x512xf32>,
    %cst_15 = arith.constant 0.000000e+00 : f32
    %21 = vector.broadcast %cst_15 : f32 to vector<8x128xf32>
    %c0_i32 = arith.constant 0 : i32
    %22 = arith.index_cast %c0_i32 : i32 to index
    %c0_16 = arith.constant 0 : index
    %c0_17 = arith.constant 0 : index
    %23 = vector.load %arg8[%22, %c0_16, %c0_17] : memref<8x8x512xf32, #tpu.memory_space<vmem>>, vector<1x8x512xf32>
    %24 = vector.shape_cast %23 : vector<1x8x512xf32> to vector<8x512xf32>
    %25 = arith.truncf %21 : vector<8x128xf32> to vector<8x128xbf16>
    %c0_18 = arith.constant 0 : index
    %c0_19 = arith.constant 0 : index
    %26 = vector.load %arg5[%c0_18, %c0_19] : memref<128x512xbf16, #tpu.memory_space<vmem>>, vector<128x512xbf16>
    %cst_20 = arith.constant dense<0.000000e+00> : vector<8x512xf32>
    %27 = tpu.matmul %25, %26, %cst_20 {dimension_numbers = #tpu.dot_dimension_numbers<[1], [0], [0], [1], [0, 0, 1, 1], [], []>} : vector<8x128xbf16>, vector<128x512xbf16>, vector<8x512xf32> -> vector<8x512xf32>
    %28 = arith.addf %24, %27 : vector<8x512xf32>
    %29 = vector.extract_strided_slice %28 {offsets = [0, 0], sizes = [8, 128], strides = [1, 1]} : vector<8x512xf32> to vector<8x128xf32>
    %30 = arith.negf %29 : vector<8x128xf32>
    %31 = math.exp %30 : vector<8x128xf32>
    %cst_21 = arith.constant 1.000000e+00 : f32
    %32 = vector.broadcast %cst_21 : f32 to vector<8x128xf32>
    %33 = arith.addf %32, %31 : vector<8x128xf32>
    %34 = arith.divf %32, %33 : vector<8x128xf32>
    %35 = vector.extract_strided_slice %28 {offsets = [0, 128], sizes = [8, 128], strides = [1, 1]} : vector<8x512xf32> to vector<8x128xf32>
    %36 = arith.negf %35 : vector<8x128xf32>
    %37 = math.exp %36 : vector<8x128xf32>
    %cst_22 = arith.constant 1.000000e+00 : f32
    %38 = vector.broadcast %cst_22 : f32 to vector<8x128xf32>
    %39 = arith.addf %38, %37 : vector<8x128xf32>
    %40 = arith.divf %38, %39 : vector<8x128xf32>
    %41 = vector.extract_strided_slice %28 {offsets = [0, 256], sizes = [8, 128], strides = [1, 1]} : vector<8x512xf32> to vector<8x128xf32>
    %42 = math.tanh %41 : vector<8x128xf32>
    %43 = vector.extract_strided_slice %28 {offsets = [0, 384], sizes = [8, 128], strides = [1, 1]} : vector<8x512xf32> to vector<8x128xf32>
    %44 = arith.negf %43 : vector<8x128xf32>
    %45 = math.exp %44 : vector<8x128xf32>
    %cst_23 = arith.constant 1.000000e+00 : f32
    %46 = vector.broadcast %cst_23 : f32 to vector<8x128xf32>
    %47 = arith.addf %46, %45 : vector<8x128xf32>
    %48 = arith.divf %46, %47 : vector<8x128xf32>
    %49 = arith.mulf %40, %21 : vector<8x128xf32>
    %50 = arith.mulf %34, %42 : vector<8x128xf32>
    %51 = arith.addf %49, %50 : vector<8x128xf32>
    %52 = math.tanh %51 : vector<8x128xf32>
    %53 = arith.mulf %48, %52 : vector<8x128xf32>
    %54 = arith.index_cast %c0_i32 : i32 to index
    %c0_24 = arith.constant 0 : index
    %c0_25 = arith.constant 0 : index
    %55 = vector.load %arg9[%54, %c0_24, %c0_25] : memref<8x8x128xf32, #tpu.memory_space<vmem>>, vector<1x8x128xf32>
    %56 = vector.shape_cast %55 : vector<1x8x128xf32> to vector<8x128xf32>
    %57 = vector.shape_cast %53 : vector<8x128xf32> to vector<1x8x128xf32>
    tpu.vector_store %arg9[%54, %c0_24, %c0_25], %57 {strides = array<i32>} : memref<8x8x128xf32, #tpu.memory_space<vmem>>, vector<1x8x128xf32>,
    %c1_i32 = arith.constant 1 : i32
    %58 = arith.index_cast %c1_i32 : i32 to index
    %c0_26 = arith.constant 0 : index
    %c0_27 = arith.constant 0 : index
    %59 = vector.load %arg8[%58, %c0_26, %c0_27] : memref<8x8x512xf32, #tpu.memory_space<vmem>>, vector<1x8x512xf32>
    %60 = vector.shape_cast %59 : vector<1x8x512xf32> to vector<8x512xf32>
    %61 = arith.truncf %53 : vector<8x128xf32> to vector<8x128xbf16>
    %c0_28 = arith.constant 0 : index
    %c0_29 = arith.constant 0 : index
    %62 = vector.load %arg5[%c0_28, %c0_29] : memref<128x512xbf16, #tpu.memory_space<vmem>>, vector<128x512xbf16>
    %cst_30 = arith.constant dense<0.000000e+00> : vector<8x512xf32>
    %63 = tpu.matmul %61, %62, %cst_30 {dimension_numbers = #tpu.dot_dimension_numbers<[1], [0], [0], [1], [0, 0, 1, 1], [], []>} : vector<8x128xbf16>, vector<128x512xbf16>, vector<8x512xf32> -> vector<8x512xf32>
    %64 = arith.addf %60, %63 : vector<8x512xf32>
    %65 = vector.extract_strided_slice %64 {offsets = [0, 0], sizes = [8, 128], strides = [1, 1]} : vector<8x512xf32> to vector<8x128xf32>
    %66 = arith.negf %65 : vector<8x128xf32>
    %67 = math.exp %66 : vector<8x128xf32>
    %cst_31 = arith.constant 1.000000e+00 : f32
    %68 = vector.broadcast %cst_31 : f32 to vector<8x128xf32>
    %69 = arith.addf %68, %67 : vector<8x128xf32>
    %70 = arith.divf %68, %69 : vector<8x128xf32>
    %71 = vector.extract_strided_slice %64 {offsets = [0, 128], sizes = [8, 128], strides = [1, 1]} : vector<8x512xf32> to vector<8x128xf32>
    %72 = arith.negf %71 : vector<8x128xf32>
    %73 = math.exp %72 : vector<8x128xf32>
    %cst_32 = arith.constant 1.000000e+00 : f32
    %74 = vector.broadcast %cst_32 : f32 to vector<8x128xf32>
    %75 = arith.addf %74, %73 : vector<8x128xf32>
    %76 = arith.divf %74, %75 : vector<8x128xf32>
    %77 = vector.extract_strided_slice %64 {offsets = [0, 256], sizes = [8, 128], strides = [1, 1]} : vector<8x512xf32> to vector<8x128xf32>
    %78 = math.tanh %77 : vector<8x128xf32>
    %79 = vector.extract_strided_slice %64 {offsets = [0, 384], sizes = [8, 128], strides = [1, 1]} : vector<8x512xf32> to vector<8x128xf32>
    %80 = arith.negf %79 : vector<8x128xf32>
    %81 = math.exp %80 : vector<8x128xf32>
    %cst_33 = arith.constant 1.000000e+00 : f32
    %82 = vector.broadcast %cst_33 : f32 to vector<8x128xf32>
    %83 = arith.addf %82, %81 : vector<8x128xf32>
    %84 = arith.divf %82, %83 : vector<8x128xf32>
    %85 = arith.mulf %76, %51 : vector<8x128xf32>
    %86 = arith.mulf %70, %78 : vector<8x128xf32>
    %87 = arith.addf %85, %86 : vector<8x128xf32>
    %88 = math.tanh %87 : vector<8x128xf32>
    %89 = arith.mulf %84, %88 : vector<8x128xf32>
    %90 = arith.index_cast %c1_i32 : i32 to index
    %c0_34 = arith.constant 0 : index
    %c0_35 = arith.constant 0 : index
    %91 = vector.load %arg9[%90, %c0_34, %c0_35] : memref<8x8x128xf32, #tpu.memory_space<vmem>>, vector<1x8x128xf32>
    %92 = vector.shape_cast %91 : vector<1x8x128xf32> to vector<8x128xf32>
    %93 = vector.shape_cast %89 : vector<8x128xf32> to vector<1x8x128xf32>
    tpu.vector_store %arg9[%90, %c0_34, %c0_35], %93 {strides = array<i32>} : memref<8x8x128xf32, #tpu.memory_space<vmem>>, vector<1x8x128xf32>,
    %c2_i32 = arith.constant 2 : i32
    %94 = arith.index_cast %c2_i32 : i32 to index
    %c0_36 = arith.constant 0 : index
    %c0_37 = arith.constant 0 : index
    %95 = vector.load %arg8[%94, %c0_36, %c0_37] : memref<8x8x512xf32, #tpu.memory_space<vmem>>, vector<1x8x512xf32>
    %96 = vector.shape_cast %95 : vector<1x8x512xf32> to vector<8x512xf32>
    %97 = arith.truncf %89 : vector<8x128xf32> to vector<8x128xbf16>
    %c0_38 = arith.constant 0 : index
    %c0_39 = arith.constant 0 : index
    %98 = vector.load %arg5[%c0_38, %c0_39] : memref<128x512xbf16, #tpu.memory_space<vmem>>, vector<128x512xbf16>
    %cst_40 = arith.constant dense<0.000000e+00> : vector<8x512xf32>
    %99 = tpu.matmul %97, %98, %cst_40 {dimension_numbers = #tpu.dot_dimension_numbers<[1], [0], [0], [1], [0, 0, 1, 1], [], []>} : vector<8x128xbf16>, vector<128x512xbf16>, vector<8x512xf32> -> vector<8x512xf32>
    %100 = arith.addf %96, %99 : vector<8x512xf32>
    %101 = vector.extract_strided_slice %100 {offsets = [0, 0], sizes = [8, 128], strides = [1, 1]} : vector<8x512xf32> to vector<8x128xf32>
    %102 = arith.negf %101 : vector<8x128xf32>
    %103 = math.exp %102 : vector<8x128xf32>
    %cst_41 = arith.constant 1.000000e+00 : f32
    %104 = vector.broadcast %cst_41 : f32 to vector<8x128xf32>
    %105 = arith.addf %104, %103 : vector<8x128xf32>
    %106 = arith.divf %104, %105 : vector<8x128xf32>
    %107 = vector.extract_strided_slice %100 {offsets = [0, 128], sizes = [8, 128], strides = [1, 1]} : vector<8x512xf32> to vector<8x128xf32>
    %108 = arith.negf %107 : vector<8x128xf32>
    %109 = math.exp %108 : vector<8x128xf32>
    %cst_42 = arith.constant 1.000000e+00 : f32
    %110 = vector.broadcast %cst_42 : f32 to vector<8x128xf32>
    %111 = arith.addf %110, %109 : vector<8x128xf32>
    %112 = arith.divf %110, %111 : vector<8x128xf32>
    %113 = vector.extract_strided_slice %100 {offsets = [0, 256], sizes = [8, 128], strides = [1, 1]} : vector<8x512xf32> to vector<8x128xf32>
    %114 = math.tanh %113 : vector<8x128xf32>
    %115 = vector.extract_strided_slice %100 {offsets = [0, 384], sizes = [8, 128], strides = [1, 1]} : vector<8x512xf32> to vector<8x128xf32>
    %116 = arith.negf %115 : vector<8x128xf32>
    %117 = math.exp %116 : vector<8x128xf32>
    %cst_43 = arith.constant 1.000000e+00 : f32
    %118 = vector.broadcast %cst_43 : f32 to vector<8x128xf32>
    %119 = arith.addf %118, %117 : vector<8x128xf32>
    %120 = arith.divf %118, %119 : vector<8x128xf32>
    %121 = arith.mulf %112, %87 : vector<8x128xf32>
    %122 = arith.mulf %106, %114 : vector<8x128xf32>
    %123 = arith.addf %121, %122 : vector<8x128xf32>
    %124 = math.tanh %123 : vector<8x128xf32>
    %125 = arith.mulf %120, %124 : vector<8x128xf32>
    %126 = arith.index_cast %c2_i32 : i32 to index
    %c0_44 = arith.constant 0 : index
    %c0_45 = arith.constant 0 : index
    %127 = vector.load %arg9[%126, %c0_44, %c0_45] : memref<8x8x128xf32, #tpu.memory_space<vmem>>, vector<1x8x128xf32>
    %128 = vector.shape_cast %127 : vector<1x8x128xf32> to vector<8x128xf32>
    %129 = vector.shape_cast %125 : vector<8x128xf32> to vector<1x8x128xf32>
    tpu.vector_store %arg9[%126, %c0_44, %c0_45], %129 {strides = array<i32>} : memref<8x8x128xf32, #tpu.memory_space<vmem>>, vector<1x8x128xf32>,
    %c3_i32 = arith.constant 3 : i32
    %130 = arith.index_cast %c3_i32 : i32 to index
    %c0_46 = arith.constant 0 : index
    %c0_47 = arith.constant 0 : index
    %131 = vector.load %arg8[%130, %c0_46, %c0_47] : memref<8x8x512xf32, #tpu.memory_space<vmem>>, vector<1x8x512xf32>
    %132 = vector.shape_cast %131 : vector<1x8x512xf32> to vector<8x512xf32>
    %133 = arith.truncf %125 : vector<8x128xf32> to vector<8x128xbf16>
    %c0_48 = arith.constant 0 : index
    %c0_49 = arith.constant 0 : index
    %134 = vector.load %arg5[%c0_48, %c0_49] : memref<128x512xbf16, #tpu.memory_space<vmem>>, vector<128x512xbf16>
    %cst_50 = arith.constant dense<0.000000e+00> : vector<8x512xf32>
    %135 = tpu.matmul %133, %134, %cst_50 {dimension_numbers = #tpu.dot_dimension_numbers<[1], [0], [0], [1], [0, 0, 1, 1], [], []>} : vector<8x128xbf16>, vector<128x512xbf16>, vector<8x512xf32> -> vector<8x512xf32>
    %136 = arith.addf %132, %135 : vector<8x512xf32>
    %137 = vector.extract_strided_slice %136 {offsets = [0, 0], sizes = [8, 128], strides = [1, 1]} : vector<8x512xf32> to vector<8x128xf32>
    %138 = arith.negf %137 : vector<8x128xf32>
    %139 = math.exp %138 : vector<8x128xf32>
    %cst_51 = arith.constant 1.000000e+00 : f32
    %140 = vector.broadcast %cst_51 : f32 to vector<8x128xf32>
    %141 = arith.addf %140, %139 : vector<8x128xf32>
    %142 = arith.divf %140, %141 : vector<8x128xf32>
    %143 = vector.extract_strided_slice %136 {offsets = [0, 128], sizes = [8, 128], strides = [1, 1]} : vector<8x512xf32> to vector<8x128xf32>
    %144 = arith.negf %143 : vector<8x128xf32>
    %145 = math.exp %144 : vector<8x128xf32>
    %cst_52 = arith.constant 1.000000e+00 : f32
    %146 = vector.broadcast %cst_52 : f32 to vector<8x128xf32>
    %147 = arith.addf %146, %145 : vector<8x128xf32>
    %148 = arith.divf %146, %147 : vector<8x128xf32>
    %149 = vector.extract_strided_slice %136 {offsets = [0, 256], sizes = [8, 128], strides = [1, 1]} : vector<8x512xf32> to vector<8x128xf32>
    %150 = math.tanh %149 : vector<8x128xf32>
    %151 = vector.extract_strided_slice %136 {offsets = [0, 384], sizes = [8, 128], strides = [1, 1]} : vector<8x512xf32> to vector<8x128xf32>
    %152 = arith.negf %151 : vector<8x128xf32>
    %153 = math.exp %152 : vector<8x128xf32>
    %cst_53 = arith.constant 1.000000e+00 : f32
    %154 = vector.broadcast %cst_53 : f32 to vector<8x128xf32>
    %155 = arith.addf %154, %153 : vector<8x128xf32>
    %156 = arith.divf %154, %155 : vector<8x128xf32>
    %157 = arith.mulf %148, %123 : vector<8x128xf32>
    %158 = arith.mulf %142, %150 : vector<8x128xf32>
    %159 = arith.addf %157, %158 : vector<8x128xf32>
    %160 = math.tanh %159 : vector<8x128xf32>
    %161 = arith.mulf %156, %160 : vector<8x128xf32>
    %162 = arith.index_cast %c3_i32 : i32 to index
    %c0_54 = arith.constant 0 : index
    %c0_55 = arith.constant 0 : index
    %163 = vector.load %arg9[%162, %c0_54, %c0_55] : memref<8x8x128xf32, #tpu.memory_space<vmem>>, vector<1x8x128xf32>
    %164 = vector.shape_cast %163 : vector<1x8x128xf32> to vector<8x128xf32>
    %165 = vector.shape_cast %161 : vector<8x128xf32> to vector<1x8x128xf32>
    tpu.vector_store %arg9[%162, %c0_54, %c0_55], %165 {strides = array<i32>} : memref<8x8x128xf32, #tpu.memory_space<vmem>>, vector<1x8x128xf32>,
    %c4_i32 = arith.constant 4 : i32
    %166 = arith.index_cast %c4_i32 : i32 to index
    %c0_56 = arith.constant 0 : index
    %c0_57 = arith.constant 0 : index
    %167 = vector.load %arg8[%166, %c0_56, %c0_57] : memref<8x8x512xf32, #tpu.memory_space<vmem>>, vector<1x8x512xf32>
    %168 = vector.shape_cast %167 : vector<1x8x512xf32> to vector<8x512xf32>
    %169 = arith.truncf %161 : vector<8x128xf32> to vector<8x128xbf16>
    %c0_58 = arith.constant 0 : index
    %c0_59 = arith.constant 0 : index
    %170 = vector.load %arg5[%c0_58, %c0_59] : memref<128x512xbf16, #tpu.memory_space<vmem>>, vector<128x512xbf16>
    %cst_60 = arith.constant dense<0.000000e+00> : vector<8x512xf32>
    %171 = tpu.matmul %169, %170, %cst_60 {dimension_numbers = #tpu.dot_dimension_numbers<[1], [0], [0], [1], [0, 0, 1, 1], [], []>} : vector<8x128xbf16>, vector<128x512xbf16>, vector<8x512xf32> -> vector<8x512xf32>
    %172 = arith.addf %168, %171 : vector<8x512xf32>
    %173 = vector.extract_strided_slice %172 {offsets = [0, 0], sizes = [8, 128], strides = [1, 1]} : vector<8x512xf32> to vector<8x128xf32>
    %174 = arith.negf %173 : vector<8x128xf32>
    %175 = math.exp %174 : vector<8x128xf32>
    %cst_61 = arith.constant 1.000000e+00 : f32
    %176 = vector.broadcast %cst_61 : f32 to vector<8x128xf32>
    %177 = arith.addf %176, %175 : vector<8x128xf32>
    %178 = arith.divf %176, %177 : vector<8x128xf32>
    %179 = vector.extract_strided_slice %172 {offsets = [0, 128], sizes = [8, 128], strides = [1, 1]} : vector<8x512xf32> to vector<8x128xf32>
    %180 = arith.negf %179 : vector<8x128xf32>
    %181 = math.exp %180 : vector<8x128xf32>
    %cst_62 = arith.constant 1.000000e+00 : f32
    %182 = vector.broadcast %cst_62 : f32 to vector<8x128xf32>
    %183 = arith.addf %182, %181 : vector<8x128xf32>
    %184 = arith.divf %182, %183 : vector<8x128xf32>
    %185 = vector.extract_strided_slice %172 {offsets = [0, 256], sizes = [8, 128], strides = [1, 1]} : vector<8x512xf32> to vector<8x128xf32>
    %186 = math.tanh %185 : vector<8x128xf32>
    %187 = vector.extract_strided_slice %172 {offsets = [0, 384], sizes = [8, 128], strides = [1, 1]} : vector<8x512xf32> to vector<8x128xf32>
    %188 = arith.negf %187 : vector<8x128xf32>
    %189 = math.exp %188 : vector<8x128xf32>
    %cst_63 = arith.constant 1.000000e+00 : f32
    %190 = vector.broadcast %cst_63 : f32 to vector<8x128xf32>
    %191 = arith.addf %190, %189 : vector<8x128xf32>
    %192 = arith.divf %190, %191 : vector<8x128xf32>
    %193 = arith.mulf %184, %159 : vector<8x128xf32>
    %194 = arith.mulf %178, %186 : vector<8x128xf32>
    %195 = arith.addf %193, %194 : vector<8x128xf32>
    %196 = math.tanh %195 : vector<8x128xf32>
    %197 = arith.mulf %192, %196 : vector<8x128xf32>
    %198 = arith.index_cast %c4_i32 : i32 to index
    %c0_64 = arith.constant 0 : index
    %c0_65 = arith.constant 0 : index
    %199 = vector.load %arg9[%198, %c0_64, %c0_65] : memref<8x8x128xf32, #tpu.memory_space<vmem>>, vector<1x8x128xf32>
    %200 = vector.shape_cast %199 : vector<1x8x128xf32> to vector<8x128xf32>
    %201 = vector.shape_cast %197 : vector<8x128xf32> to vector<1x8x128xf32>
    tpu.vector_store %arg9[%198, %c0_64, %c0_65], %201 {strides = array<i32>} : memref<8x8x128xf32, #tpu.memory_space<vmem>>, vector<1x8x128xf32>,
    %c5_i32 = arith.constant 5 : i32
    %202 = arith.index_cast %c5_i32 : i32 to index
    %c0_66 = arith.constant 0 : index
    %c0_67 = arith.constant 0 : index
    %203 = vector.load %arg8[%202, %c0_66, %c0_67] : memref<8x8x512xf32, #tpu.memory_space<vmem>>, vector<1x8x512xf32>
    %204 = vector.shape_cast %203 : vector<1x8x512xf32> to vector<8x512xf32>
    %205 = arith.truncf %197 : vector<8x128xf32> to vector<8x128xbf16>
    %c0_68 = arith.constant 0 : index
    %c0_69 = arith.constant 0 : index
    %206 = vector.load %arg5[%c0_68, %c0_69] : memref<128x512xbf16, #tpu.memory_space<vmem>>, vector<128x512xbf16>
    %cst_70 = arith.constant dense<0.000000e+00> : vector<8x512xf32>
    %207 = tpu.matmul %205, %206, %cst_70 {dimension_numbers = #tpu.dot_dimension_numbers<[1], [0], [0], [1], [0, 0, 1, 1], [], []>} : vector<8x128xbf16>, vector<128x512xbf16>, vector<8x512xf32> -> vector<8x512xf32>
    %208 = arith.addf %204, %207 : vector<8x512xf32>
    %209 = vector.extract_strided_slice %208 {offsets = [0, 0], sizes = [8, 128], strides = [1, 1]} : vector<8x512xf32> to vector<8x128xf32>
    %210 = arith.negf %209 : vector<8x128xf32>
    %211 = math.exp %210 : vector<8x128xf32>
    %cst_71 = arith.constant 1.000000e+00 : f32
    %212 = vector.broadcast %cst_71 : f32 to vector<8x128xf32>
    %213 = arith.addf %212, %211 : vector<8x128xf32>
    %214 = arith.divf %212, %213 : vector<8x128xf32>
    %215 = vector.extract_strided_slice %208 {offsets = [0, 128], sizes = [8, 128], strides = [1, 1]} : vector<8x512xf32> to vector<8x128xf32>
    %216 = arith.negf %215 : vector<8x128xf32>
    %217 = math.exp %216 : vector<8x128xf32>
    %cst_72 = arith.constant 1.000000e+00 : f32
    %218 = vector.broadcast %cst_72 : f32 to vector<8x128xf32>
    %219 = arith.addf %218, %217 : vector<8x128xf32>
    %220 = arith.divf %218, %219 : vector<8x128xf32>
    %221 = vector.extract_strided_slice %208 {offsets = [0, 256], sizes = [8, 128], strides = [1, 1]} : vector<8x512xf32> to vector<8x128xf32>
    %222 = math.tanh %221 : vector<8x128xf32>
    %223 = vector.extract_strided_slice %208 {offsets = [0, 384], sizes = [8, 128], strides = [1, 1]} : vector<8x512xf32> to vector<8x128xf32>
    %224 = arith.negf %223 : vector<8x128xf32>
    %225 = math.exp %224 : vector<8x128xf32>
    %cst_73 = arith.constant 1.000000e+00 : f32
    %226 = vector.broadcast %cst_73 : f32 to vector<8x128xf32>
    %227 = arith.addf %226, %225 : vector<8x128xf32>
    %228 = arith.divf %226, %227 : vector<8x128xf32>
    %229 = arith.mulf %220, %195 : vector<8x128xf32>
    %230 = arith.mulf %214, %222 : vector<8x128xf32>
    %231 = arith.addf %229, %230 : vector<8x128xf32>
    %232 = math.tanh %231 : vector<8x128xf32>
    %233 = arith.mulf %228, %232 : vector<8x128xf32>
    %234 = arith.index_cast %c5_i32 : i32 to index
    %c0_74 = arith.constant 0 : index
    %c0_75 = arith.constant 0 : index
    %235 = vector.load %arg9[%234, %c0_74, %c0_75] : memref<8x8x128xf32, #tpu.memory_space<vmem>>, vector<1x8x128xf32>
    %236 = vector.shape_cast %235 : vector<1x8x128xf32> to vector<8x128xf32>
    %237 = vector.shape_cast %233 : vector<8x128xf32> to vector<1x8x128xf32>
    tpu.vector_store %arg9[%234, %c0_74, %c0_75], %237 {strides = array<i32>} : memref<8x8x128xf32, #tpu.memory_space<vmem>>, vector<1x8x128xf32>,
    %c6_i32 = arith.constant 6 : i32
    %238 = arith.index_cast %c6_i32 : i32 to index
    %c0_76 = arith.constant 0 : index
    %c0_77 = arith.constant 0 : index
    %239 = vector.load %arg8[%238, %c0_76, %c0_77] : memref<8x8x512xf32, #tpu.memory_space<vmem>>, vector<1x8x512xf32>
    %240 = vector.shape_cast %239 : vector<1x8x512xf32> to vector<8x512xf32>
    %241 = arith.truncf %233 : vector<8x128xf32> to vector<8x128xbf16>
    %c0_78 = arith.constant 0 : index
    %c0_79 = arith.constant 0 : index
    %242 = vector.load %arg5[%c0_78, %c0_79] : memref<128x512xbf16, #tpu.memory_space<vmem>>, vector<128x512xbf16>
    %cst_80 = arith.constant dense<0.000000e+00> : vector<8x512xf32>
    %243 = tpu.matmul %241, %242, %cst_80 {dimension_numbers = #tpu.dot_dimension_numbers<[1], [0], [0], [1], [0, 0, 1, 1], [], []>} : vector<8x128xbf16>, vector<128x512xbf16>, vector<8x512xf32> -> vector<8x512xf32>
    %244 = arith.addf %240, %243 : vector<8x512xf32>
    %245 = vector.extract_strided_slice %244 {offsets = [0, 0], sizes = [8, 128], strides = [1, 1]} : vector<8x512xf32> to vector<8x128xf32>
    %246 = arith.negf %245 : vector<8x128xf32>
    %247 = math.exp %246 : vector<8x128xf32>
    %cst_81 = arith.constant 1.000000e+00 : f32
    %248 = vector.broadcast %cst_81 : f32 to vector<8x128xf32>
    %249 = arith.addf %248, %247 : vector<8x128xf32>
    %250 = arith.divf %248, %249 : vector<8x128xf32>
    %251 = vector.extract_strided_slice %244 {offsets = [0, 128], sizes = [8, 128], strides = [1, 1]} : vector<8x512xf32> to vector<8x128xf32>
    %252 = arith.negf %251 : vector<8x128xf32>
    %253 = math.exp %252 : vector<8x128xf32>
    %cst_82 = arith.constant 1.000000e+00 : f32
    %254 = vector.broadcast %cst_82 : f32 to vector<8x128xf32>
    %255 = arith.addf %254, %253 : vector<8x128xf32>
    %256 = arith.divf %254, %255 : vector<8x128xf32>
    %257 = vector.extract_strided_slice %244 {offsets = [0, 256], sizes = [8, 128], strides = [1, 1]} : vector<8x512xf32> to vector<8x128xf32>
    %258 = math.tanh %257 : vector<8x128xf32>
    %259 = vector.extract_strided_slice %244 {offsets = [0, 384], sizes = [8, 128], strides = [1, 1]} : vector<8x512xf32> to vector<8x128xf32>
    %260 = arith.negf %259 : vector<8x128xf32>
    %261 = math.exp %260 : vector<8x128xf32>
    %cst_83 = arith.constant 1.000000e+00 : f32
    %262 = vector.broadcast %cst_83 : f32 to vector<8x128xf32>
    %263 = arith.addf %262, %261 : vector<8x128xf32>
    %264 = arith.divf %262, %263 : vector<8x128xf32>
    %265 = arith.mulf %256, %231 : vector<8x128xf32>
    %266 = arith.mulf %250, %258 : vector<8x128xf32>
    %267 = arith.addf %265, %266 : vector<8x128xf32>
    %268 = math.tanh %267 : vector<8x128xf32>
    %269 = arith.mulf %264, %268 : vector<8x128xf32>
    %270 = arith.index_cast %c6_i32 : i32 to index
    %c0_84 = arith.constant 0 : index
    %c0_85 = arith.constant 0 : index
    %271 = vector.load %arg9[%270, %c0_84, %c0_85] : memref<8x8x128xf32, #tpu.memory_space<vmem>>, vector<1x8x128xf32>
    %272 = vector.shape_cast %271 : vector<1x8x128xf32> to vector<8x128xf32>
    %273 = vector.shape_cast %269 : vector<8x128xf32> to vector<1x8x128xf32>
    tpu.vector_store %arg9[%270, %c0_84, %c0_85], %273 {strides = array<i32>} : memref<8x8x128xf32, #tpu.memory_space<vmem>>, vector<1x8x128xf32>,
    %c7_i32 = arith.constant 7 : i32
    %274 = arith.index_cast %c7_i32 : i32 to index
    %c0_86 = arith.constant 0 : index
    %c0_87 = arith.constant 0 : index
    %275 = vector.load %arg8[%274, %c0_86, %c0_87] : memref<8x8x512xf32, #tpu.memory_space<vmem>>, vector<1x8x512xf32>
    %276 = vector.shape_cast %275 : vector<1x8x512xf32> to vector<8x512xf32>
    %277 = arith.truncf %269 : vector<8x128xf32> to vector<8x128xbf16>
    %c0_88 = arith.constant 0 : index
    %c0_89 = arith.constant 0 : index
    %278 = vector.load %arg5[%c0_88, %c0_89] : memref<128x512xbf16, #tpu.memory_space<vmem>>, vector<128x512xbf16>
    %cst_90 = arith.constant dense<0.000000e+00> : vector<8x512xf32>
    %279 = tpu.matmul %277, %278, %cst_90 {dimension_numbers = #tpu.dot_dimension_numbers<[1], [0], [0], [1], [0, 0, 1, 1], [], []>} : vector<8x128xbf16>, vector<128x512xbf16>, vector<8x512xf32> -> vector<8x512xf32>
    %280 = arith.addf %276, %279 : vector<8x512xf32>
    %281 = vector.extract_strided_slice %280 {offsets = [0, 0], sizes = [8, 128], strides = [1, 1]} : vector<8x512xf32> to vector<8x128xf32>
    %282 = arith.negf %281 : vector<8x128xf32>
    %283 = math.exp %282 : vector<8x128xf32>
    %cst_91 = arith.constant 1.000000e+00 : f32
    %284 = vector.broadcast %cst_91 : f32 to vector<8x128xf32>
    %285 = arith.addf %284, %283 : vector<8x128xf32>
    %286 = arith.divf %284, %285 : vector<8x128xf32>
    %287 = vector.extract_strided_slice %280 {offsets = [0, 128], sizes = [8, 128], strides = [1, 1]} : vector<8x512xf32> to vector<8x128xf32>
    %288 = arith.negf %287 : vector<8x128xf32>
    %289 = math.exp %288 : vector<8x128xf32>
    %cst_92 = arith.constant 1.000000e+00 : f32
    %290 = vector.broadcast %cst_92 : f32 to vector<8x128xf32>
    %291 = arith.addf %290, %289 : vector<8x128xf32>
    %292 = arith.divf %290, %291 : vector<8x128xf32>
    %293 = vector.extract_strided_slice %280 {offsets = [0, 256], sizes = [8, 128], strides = [1, 1]} : vector<8x512xf32> to vector<8x128xf32>
    %294 = math.tanh %293 : vector<8x128xf32>
    %295 = vector.extract_strided_slice %280 {offsets = [0, 384], sizes = [8, 128], strides = [1, 1]} : vector<8x512xf32> to vector<8x128xf32>
    %296 = arith.negf %295 : vector<8x128xf32>
    %297 = math.exp %296 : vector<8x128xf32>
    %cst_93 = arith.constant 1.000000e+00 : f32
    %298 = vector.broadcast %cst_93 : f32 to vector<8x128xf32>
    %299 = arith.addf %298, %297 : vector<8x128xf32>
    %300 = arith.divf %298, %299 : vector<8x128xf32>
    %301 = arith.mulf %292, %267 : vector<8x128xf32>
    %302 = arith.mulf %286, %294 : vector<8x128xf32>
    %303 = arith.addf %301, %302 : vector<8x128xf32>
    %304 = math.tanh %303 : vector<8x128xf32>
    %305 = arith.mulf %300, %304 : vector<8x128xf32>
    %306 = arith.index_cast %c7_i32 : i32 to index
    %c0_94 = arith.constant 0 : index
    %c0_95 = arith.constant 0 : index
    %307 = vector.load %arg9[%306, %c0_94, %c0_95] : memref<8x8x128xf32, #tpu.memory_space<vmem>>, vector<1x8x128xf32>
    %308 = vector.shape_cast %307 : vector<1x8x128xf32> to vector<8x128xf32>
    %309 = vector.shape_cast %305 : vector<8x128xf32> to vector<1x8x128xf32>
    tpu.vector_store %arg9[%306, %c0_94, %c0_95], %309 {strides = array<i32>} : memref<8x8x128xf32, #tpu.memory_space<vmem>>, vector<1x8x128xf32>,
    %c8_i32 = arith.constant 8 : i32
    %c0_96 = arith.constant 0 : index
    %c0_97 = arith.constant 0 : index
    %c0_98 = arith.constant 0 : index
    %310 = vector.load %arg9[%c0_96, %c0_97, %c0_98] : memref<8x8x128xf32, #tpu.memory_space<vmem>>, vector<8x8x128xf32>
    %311 = tpu.transpose %310, [1, 0, 2] : vector<8x8x128xf32> -> vector<8x8x128xf32>
    %c0_99 = arith.constant 0 : index
    %c0_100 = arith.constant 0 : index
    %c0_101 = arith.constant 0 : index
    %312 = vector.load %arg7[%c0_99, %c0_100, %c0_101] : memref<8x8x128xf32, #tpu.memory_space<vmem>>, vector<8x8x128xf32>
    tpu.vector_store %arg7[%c0_99, %c0_100, %c0_101], %311 {strides = array<i32>} : memref<8x8x128xf32, #tpu.memory_space<vmem>>, vector<8x8x128xf32>,
    return
  }
  func.func @transform_0(%arg0: i32) -> (i32, i32, i32) {
    %c0_i32 = arith.constant 0 : i32
    %c0_i32_0 = arith.constant 0 : i32
    %c0_i32_1 = arith.constant 0 : i32
    return %arg0, %c0_i32, %c0_i32_0 : i32, i32, i32
  }
  func.func @transform_1(%arg0: i32) -> (i32, i32) {
    %c0_i32 = arith.constant 0 : i32
    %c0_i32_0 = arith.constant 0 : i32
    %c0_i32_1 = arith.constant 0 : i32
    return %c0_i32, %c0_i32_0 : i32, i32
  }
  func.func @transform_2(%arg0: i32) -> (i32, i32) {
    %c0_i32 = arith.constant 0 : i32
    %c0_i32_0 = arith.constant 0 : i32
    %c0_i32_1 = arith.constant 0 : i32
    return %c0_i32, %c0_i32_0 : i32, i32
  }
  func.func @transform_3(%arg0: i32) -> (i32, i32) {
    %c0_i32 = arith.constant 0 : i32
    %c0_i32_0 = arith.constant 0 : i32
    %c0_i32_1 = arith.constant 0 : i32
    return %c0_i32, %c0_i32_0 : i32, i32
  }
  func.func @transform_4(%arg0: i32) -> (i32, i32) {
    %c0_i32 = arith.constant 0 : i32
    %c0_i32_0 = arith.constant 0 : i32
    %c0_i32_1 = arith.constant 0 : i32
    return %c0_i32, %c0_i32_0 : i32, i32
  }
  func.func @transform_5(%arg0: i32) -> (i32, i32) {
    %c0_i32 = arith.constant 0 : i32
    %c0_i32_0 = arith.constant 0 : i32
    %c0_i32_1 = arith.constant 0 : i32
    return %c0_i32, %c0_i32_0 : i32, i32
  }
  func.func @transform_6(%arg0: i32) -> (i32, i32, i32) {
    %c0_i32 = arith.constant 0 : i32
    %c0_i32_0 = arith.constant 0 : i32
    %c0_i32_1 = arith.constant 0 : i32
    return %arg0, %c0_i32, %c0_i32_0 : i32, i32, i32
  }
}

</mosaic_0001>

<llo_original>
// kernel: tsrnn_forward.1
$region0: #{tsrnn_forward.1}
  #allocation0 [shape = 'u32[]', space=smem, size = 0x4, offset = 0x4, fixed_abs, tag = 'smem constant byte address 0x4 - core index']
  #allocation1 [shape = 'u32[144,128]{1,0:T(1,128)}', space=vmem, size = 0x12000, scoped, tag = 'internal scratch']
  #allocation2 [shape = 'f32[8,8,512]{2,1,0:T(8,128)}', space=vmem, size = 0x20000, scoped, tag = 'scratch operand']
  #allocation3 [shape = 'f32[8,8,128]{2,1,0:T(8,128)}', space=vmem, size = 0x8000, scoped, tag = 'scratch operand']
  %s0 = inlined_call_operand.vmem [shape: f32[8,8,16], index: 0, kind: input, shape index: {}]
  %s1 = inlined_call_operand.vmem [shape: bf16[16,128], index: 1, kind: input, shape index: {}]
  %s2 = inlined_call_operand.vmem [shape: f32[1,128], index: 2, kind: input, shape index: {}]
  %s3 = inlined_call_operand.vmem [shape: bf16[128,512], index: 3, kind: input, shape index: {}]
  %s4 = inlined_call_operand.vmem [shape: bf16[128,512], index: 4, kind: input, shape index: {}]
  %s5 = inlined_call_operand.vmem [shape: f32[1,512], index: 5, kind: input, shape index: {}]
  %s6 = inlined_call_operand.vmem [shape: f32[8,8,128], index: 6, kind: output, shape index: {}]
  %s7 = sld [smem:[#allocation0]]
  $region34: #{tsrnn_forward.1} parent=0
    _
  %s9 = ssub.s32 1, %s7
  %s10 = scalar_select 0, %s9, %s7
  // Predicated region
  $region2: #{tsrnn_forward.1} parent=0 // pred_check
    _
  $region3: #{tsrnn_forward.1} parent=0 // pred_check_branch
    %12 = sbr.rel (0) target = $region5
  $region4: #{tsrnn_forward.1} parent=0 // pred_region
    _
  $region5: #{tsrnn_forward.1} parent=0 // pred_fallthru
    _
  // Predicated region
  $region6: #{tsrnn_forward.1} parent=0 // pred_check
    _
  $region7: #{tsrnn_forward.1} parent=0 // pred_check_branch
    %14 = sbr.rel (0) target = $region9
  $region8: #{tsrnn_forward.1} parent=0 // pred_region
    _
  $region9: #{tsrnn_forward.1} parent=0 // pred_fallthru
    _
  // Predicated region
  $region10: #{tsrnn_forward.1} parent=0 // pred_check
    _
  $region11: #{tsrnn_forward.1} parent=0 // pred_check_branch
    %16 = sbr.rel (0) target = $region13
  $region12: #{tsrnn_forward.1} parent=0 // pred_region
    _
  $region13: #{tsrnn_forward.1} parent=0 // pred_fallthru
    _
  // Predicated region
  $region14: #{tsrnn_forward.1} parent=0 // pred_check
    _
  $region15: #{tsrnn_forward.1} parent=0 // pred_check_branch
    %18 = sbr.rel (0) target = $region17
  $region16: #{tsrnn_forward.1} parent=0 // pred_region
    _
  $region17: #{tsrnn_forward.1} parent=0 // pred_fallthru
    _
  // Predicated region
  $region18: #{tsrnn_forward.1} parent=0 // pred_check
    _
  $region19: #{tsrnn_forward.1} parent=0 // pred_check_branch
    %20 = sbr.rel (0) target = $region21
  $region20: #{tsrnn_forward.1} parent=0 // pred_region
    _
  $region21: #{tsrnn_forward.1} parent=0 // pred_fallthru
    _
  // Predicated region
  $region22: #{tsrnn_forward.1} parent=0 // pred_check
    _
  $region23: #{tsrnn_forward.1} parent=0 // pred_check_branch
    %22 = sbr.rel (0) target = $region25
  $region24: #{tsrnn_forward.1} parent=0 // pred_region
    _
  $region25: #{tsrnn_forward.1} parent=0 // pred_fallthru
    _
  %v24 = vld [vmem:[%s0] sm:$0xff]
  %v25 = vld [vmem:[%s0 + $0x8] sm:$0xff]
  %v26 = vld [vmem:[%s0 + $0x10] sm:$0xff]
  %v27 = vld [vmem:[%s0 + $0x18] sm:$0xff]
  %v28 = vld [vmem:[%s0 + $0x20] sm:$0xff]
  %v29 = vld [vmem:[%s0 + $0x28] sm:$0xff]
  %v30 = vld [vmem:[%s0 + $0x30] sm:$0xff]
  %v31 = vld [vmem:[%s0 + $0x38] sm:$0xff]
  %v32 = vpack.c.bf16 %v25, %v24
  %v33 = vpack.c.bf16 %v27, %v26
  %v34 = vpack.c.bf16 %v29, %v28
  %v35 = vpack.c.bf16 %v31, %v30
  %v36 = vld [vmem:[%s1] sm:$0xf]
  %v37 = vld [vmem:[%s1 + $0x4] sm:$0xf]
  %v38 = vld [vmem:[%s2] sm:$0x1]
  %v40 = vlaneseq
  %v41 = vshrl.u32 %v40, 7
  %v42 = vsub.s32 0, %v41
  %v43 = vrot.slane %v38, %v42
  %v47 = vunpack.c.l.b16 %v36
  %v48 = vunpack.c.l.b16 %v37
  %v49 = vpack.c.b16 %v48, %v47
  %vm51 = vcmask 130048
  %v53 = vsel %vm51, %v32, 0
  %v56 = vsel %vm51, %v33, 0
  %v59 = vsel %vm51, %v34, 0
  %v62 = vsel %vm51, %v35, 0
  %64 = vmatprep.subr.bf16.mxu0 0
  %65 = vmatpush1.bf16.msra.mxu0 0
  %66 = vmatprep.subr.bf16.mxu0 0
  %67 = vmatpush1.bf16.msra.mxu0 0
  %68 = vmatprep.subr.bf16.mxu0 0
  %69 = vmatpush1.bf16.msra.mxu0 0
  %70 = vmatprep.subr.bf16.mxu0 0
  %71 = vmatpush1.bf16.msra.mxu0 0
  %72 = vmatprep.subr.bf16.mxu0 0
  %73 = vmatpush1.bf16.msra.mxu0 0
  %74 = vmatprep.subr.bf16.mxu0 0
  %75 = vmatpush1.bf16.msra.mxu0 0
  %76 = vmatprep.subr.bf16.mxu0 0
  %77 = vmatpush1.bf16.msra.mxu0 0
  %78 = vmatprep.subr.bf16.mxu0 0
  %79 = vmatpush1.bf16.msra.mxu0 %v49
  %80 = vmatprep.subr.bf16.mxu0 0
  %81 = vmatpush2.bf16.msra.mxu0 0
  %82 = vmatprep.subr.bf16.mxu0 0
  %83 = vmatpush2.bf16.msra.mxu0 0
  %84 = vmatprep.subr.bf16.mxu0 0
  %85 = vmatpush2.bf16.msra.mxu0 0
  %86 = vmatprep.subr.bf16.mxu0 0
  %87 = vmatpush2.bf16.msra.mxu0 0
  %88 = vmatprep.subr.bf16.mxu0 0
  %89 = vmatpush2.bf16.msra.mxu0 0
  %90 = vmatprep.subr.bf16.mxu0 0
  %91 = vmatpush2.bf16.msra.mxu0 0
  %92 = vmatprep.subr.bf16.mxu0 0
  %93 = vmatpush2.bf16.msra.mxu0 0
  %94 = vmatprep.subr.bf16.mxu0 0
  %95 = vmatpush2.bf16.msra.mxu0 0
  %96 = vmatprep.mubr.bf16.mxu0 0
  %97 = vmatmul.mubr.bf16.gmra.mxu0 %v53
  %v98 = vpop.f32.mrf.mxu0
  %v99 = vadd.f32 %v43, %v98
  %v100 = vpop.f32.mrf.mxu0
  %v101 = vpop.f32.mrf.mxu0
  %v102 = vadd.f32 %v43, %v101
  %v103 = vpop.f32.mrf.mxu0
  %104 = vmatprep.mubr.bf16.mxu0 0
  %105 = vmatmul.mubr.bf16.gmra.mxu0 %v56
  %v106 = vpop.f32.mrf.mxu0
  %v107 = vadd.f32 %v43, %v106
  %v108 = vpop.f32.mrf.mxu0
  %v109 = vpop.f32.mrf.mxu0
  %v110 = vadd.f32 %v43, %v109
  %v111 = vpop.f32.mrf.mxu0
  %112 = vmatprep.mubr.bf16.mxu0 0
  %113 = vmatmul.mubr.bf16.gmra.mxu0 %v59
  %v114 = vpop.f32.mrf.mxu0
  %v115 = vadd.f32 %v43, %v114
  %v116 = vpop.f32.mrf.mxu0
  %v117 = vpop.f32.mrf.mxu0
  %v118 = vadd.f32 %v43, %v117
  %v119 = vpop.f32.mrf.mxu0
  %120 = vmatprep.mubr.bf16.mxu0 0
  %121 = vmatmul.mubr.bf16.gmra.mxu0 %v62
  %v122 = vpop.f32.mrf.mxu0
  %v123 = vadd.f32 %v43, %v122
  %v124 = vpop.f32.mrf.mxu0
  %v125 = vpop.f32.mrf.mxu0
  %v126 = vadd.f32 %v43, %v125
  %v127 = vpop.f32.mrf.mxu0
  %128 = vdwg.mxu0
  %v129 = vmax.f32 %v99, 0.0
  %v130 = vmax.f32 %v102, 0.0
  %v131 = vmax.f32 %v107, 0.0
  %v132 = vmax.f32 %v110, 0.0
  %v133 = vmax.f32 %v115, 0.0
  %v134 = vmax.f32 %v118, 0.0
  %v135 = vmax.f32 %v123, 0.0
  %v136 = vmax.f32 %v126, 0.0
  %v137 = vcombine.low %v129, %v131
  %v138 = vcombine.high %v129, %v131
  %v140 = vunpack.c.l.s4 1983009808
  %v141 = vunpack.c.0.s8 %v140
  %v142 = vlaneseq
  %v143 = vshrl.u32 %v142, 7
  %v144 = vsub.s32 %v141, %v143
  %v145 = vrot.slane %v137, %v144
  %v147 = vunpack.c.l.s4 1983009808
  %v148 = vunpack.c.0.s8 %v147
  %v149 = vlaneseq
  %v150 = vshrl.u32 %v149, 7
  %v151 = vsub.s32 %v148, %v150
  %v152 = vrot.slane %v138, %v151
  %v153 = vcombine.low %v130, %v132
  %v154 = vcombine.high %v130, %v132
  %v156 = vunpack.c.l.s4 1983009808
  %v157 = vunpack.c.0.s8 %v156
  %v158 = vlaneseq
  %v159 = vshrl.u32 %v158, 7
  %v160 = vsub.s32 %v157, %v159
  %v161 = vrot.slane %v153, %v160
  %v163 = vunpack.c.l.s4 1983009808
  %v164 = vunpack.c.0.s8 %v163
  %v165 = vlaneseq
  %v166 = vshrl.u32 %v165, 7
  %v167 = vsub.s32 %v164, %v166
  %v168 = vrot.slane %v154, %v167
  %v169 = vcombine.low %v133, %v135
  %v170 = vcombine.high %v133, %v135
  %v172 = vunpack.c.l.s4 1983009808
  %v173 = vunpack.c.0.s8 %v172
  %v174 = vlaneseq
  %v175 = vshrl.u32 %v174, 7
  %v176 = vsub.s32 %v173, %v175
  %v177 = vrot.slane %v169, %v176
  %v179 = vunpack.c.l.s4 1983009808
  %v180 = vunpack.c.0.s8 %v179
  %v181 = vlaneseq
  %v182 = vshrl.u32 %v181, 7
  %v183 = vsub.s32 %v180, %v182
  %v184 = vrot.slane %v170, %v183
  %v185 = vcombine.low %v134, %v136
  %v186 = vcombine.high %v134, %v136
  %v188 = vunpack.c.l.s4 1983009808
  %v189 = vunpack.c.0.s8 %v188
  %v190 = vlaneseq
  %v191 = vshrl.u32 %v190, 7
  %v192 = vsub.s32 %v189, %v191
  %v193 = vrot.slane %v185, %v192
  %v195 = vunpack.c.l.s4 1983009808
  %v196 = vunpack.c.0.s8 %v195
  %v197 = vlaneseq
  %v198 = vshrl.u32 %v197, 7
  %v199 = vsub.s32 %v196, %v198
  %v200 = vrot.slane %v186, %v199
  %v201 = vcombine.low %v145, %v161
  %v202 = vcombine.high %v145, %v161
  %v204 = vunpack.c.l.s4 1934713408
  %v205 = vunpack.c.0.s8 %v204
  %v206 = vlaneseq
  %v207 = vshrl.u32 %v206, 7
  %v208 = vsub.s32 %v205, %v207
  %v209 = vrot.slane %v201, %v208
  %v211 = vunpack.c.l.s4 1934713408
  %v212 = vunpack.c.0.s8 %v211
  %v213 = vlaneseq
  %v214 = vshrl.u32 %v213, 7
  %v215 = vsub.s32 %v212, %v214
  %v216 = vrot.slane %v202, %v215
  %v217 = vcombine.low %v152, %v168
  %v218 = vcombine.high %v152, %v168
  %v220 = vunpack.c.l.s4 1934713408
  %v221 = vunpack.c.0.s8 %v220
  %v222 = vlaneseq
  %v223 = vshrl.u32 %v222, 7
  %v224 = vsub.s32 %v221, %v223
  %v225 = vrot.slane %v217, %v224
  %v227 = vunpack.c.l.s4 1934713408
  %v228 = vunpack.c.0.s8 %v227
  %v229 = vlaneseq
  %v230 = vshrl.u32 %v229, 7
  %v231 = vsub.s32 %v228, %v230
  %v232 = vrot.slane %v218, %v231
  %v233 = vcombine.low %v177, %v193
  %v234 = vcombine.high %v177, %v193
  %v236 = vunpack.c.l.s4 1934713408
  %v237 = vunpack.c.0.s8 %v236
  %v238 = vlaneseq
  %v239 = vshrl.u32 %v238, 7
  %v240 = vsub.s32 %v237, %v239
  %v241 = vrot.slane %v233, %v240
  %v243 = vunpack.c.l.s4 1934713408
  %v244 = vunpack.c.0.s8 %v243
  %v245 = vlaneseq
  %v246 = vshrl.u32 %v245, 7
  %v247 = vsub.s32 %v244, %v246
  %v248 = vrot.slane %v234, %v247
  %v249 = vcombine.low %v184, %v200
  %v250 = vcombine.high %v184, %v200
  %v252 = vunpack.c.l.s4 1934713408
  %v253 = vunpack.c.0.s8 %v252
  %v254 = vlaneseq
  %v255 = vshrl.u32 %v254, 7
  %v256 = vsub.s32 %v253, %v255
  %v257 = vrot.slane %v249, %v256
  %v259 = vunpack.c.l.s4 1934713408
  %v260 = vunpack.c.0.s8 %v259
  %v261 = vlaneseq
  %v262 = vshrl.u32 %v261, 7
  %v263 = vsub.s32 %v260, %v262
  %v264 = vrot.slane %v250, %v263
  %v265 = vcombine.low %v209, %v241
  %v266 = vcombine.high %v209, %v241
  %v267 = vcombine.low %v216, %v248
  %v268 = vcombine.high %v216, %v248
  %v269 = vcombine.low %v225, %v257
  %v270 = vcombine.high %v225, %v257
  %v271 = vcombine.low %v232, %v264
  %v272 = vcombine.high %v232, %v264
  %v273 = vpack.c.bf16 %v266, %v265
  %v274 = vpack.c.bf16 %v268, %v267
  %v275 = vpack.c.bf16 %v270, %v269
  %v276 = vpack.c.bf16 %v272, %v271
  %v277 = vld [vmem:[%s3] sm:$0xff]
  %v278 = vld [vmem:[%s3 + $0x8] sm:$0xff]
  %v279 = vld [vmem:[%s3 + $0x10] sm:$0xff]
  %v280 = vld [vmem:[%s3 + $0x18] sm:$0xff]
  %v281 = vld [vmem:[%s3 + $0x20] sm:$0xff]
  %v282 = vld [vmem:[%s3 + $0x28] sm:$0xff]
  %v283 = vld [vmem:[%s3 + $0x30] sm:$0xff]
  %v284 = vld [vmem:[%s3 + $0x38] sm:$0xff]
  %v285 = vld [vmem:[%s3 + $0x40] sm:$0xff]
  %v286 = vld [vmem:[%s3 + $0x48] sm:$0xff]
  %v287 = vld [vmem:[%s3 + $0x50] sm:$0xff]
  %v288 = vld [vmem:[%s3 + $0x58] sm:$0xff]
  %v289 = vld [vmem:[%s3 + $0x60] sm:$0xff]
  %v290 = vld [vmem:[%s3 + $0x68] sm:$0xff]
  %v291 = vld [vmem:[%s3 + $0x70] sm:$0xff]
  %v292 = vld [vmem:[%s3 + $0x78] sm:$0xff]
  %v293 = vld [vmem:[%s3 + $0x80] sm:$0xff]
  %v294 = vld [vmem:[%s3 + $0x88] sm:$0xff]
  %v295 = vld [vmem:[%s3 + $0x90] sm:$0xff]
  %v296 = vld [vmem:[%s3 + $0x98] sm:$0xff]
  %v297 = vld [vmem:[%s3 + $0xa0] sm:$0xff]
  %v298 = vld [vmem:[%s3 + $0xa8] sm:$0xff]
  %v299 = vld [vmem:[%s3 + $0xb0] sm:$0xff]
  %v300 = vld [vmem:[%s3 + $0xb8] sm:$0xff]
  %v301 = vld [vmem:[%s3 + $0xc0] sm:$0xff]
  %v302 = vld [vmem:[%s3 + $0xc8] sm:$0xff]
  %v303 = vld [vmem:[%s3 + $0xd0] sm:$0xff]
  %v304 = vld [vmem:[%s3 + $0xd8] sm:$0xff]
  %v305 = vld [vmem:[%s3 + $0xe0] sm:$0xff]
  %v306 = vld [vmem:[%s3 + $0xe8] sm:$0xff]
  %v307 = vld [vmem:[%s3 + $0xf0] sm:$0xff]
  %v308 = vld [vmem:[%s3 + $0xf8] sm:$0xff]
  %v309 = vld [vmem:[%s5] sm:$0xf]
  %v311 = vlaneseq
  %v312 = vshrl.u32 %v311, 7
  %v313 = vsub.s32 0, %v312
  %v314 = vrot.slane %v309, %v313
  %v315 = vlaneseq
  %v316 = vshrl.u32 %v315, 7
  %v317 = vsub.s32 1, %v316
  %v318 = vrot.slane %v309, %v317
  %v319 = vlaneseq
  %v320 = vshrl.u32 %v319, 7
  %v321 = vsub.s32 2, %v320
  %v322 = vrot.slane %v309, %v321
  %v323 = vlaneseq
  %v324 = vshrl.u32 %v323, 7
  %v325 = vsub.s32 3, %v324
  %v326 = vrot.slane %v309, %v325
  %v363 = vunpack.c.l.b16 %v277
  %v364 = vunpack.c.h.b16 %v277
  %v365 = vunpack.c.l.b16 %v278
  %v366 = vunpack.c.h.b16 %v278
  %v367 = vunpack.c.l.b16 %v279
  %v368 = vunpack.c.h.b16 %v279
  %v369 = vunpack.c.l.b16 %v280
  %v370 = vunpack.c.h.b16 %v280
  %v371 = vunpack.c.l.b16 %v281
  %v372 = vunpack.c.h.b16 %v281
  %v373 = vunpack.c.l.b16 %v282
  %v374 = vunpack.c.h.b16 %v282
  %v375 = vunpack.c.l.b16 %v283
  %v376 = vunpack.c.h.b16 %v283
  %v377 = vunpack.c.l.b16 %v284
  %v378 = vunpack.c.h.b16 %v284
  %v379 = vunpack.c.l.b16 %v285
  %v380 = vunpack.c.h.b16 %v285
  %v381 = vunpack.c.l.b16 %v286
  %v382 = vunpack.c.h.b16 %v286
  %v383 = vunpack.c.l.b16 %v287
  %v384 = vunpack.c.h.b16 %v287
  %v385 = vunpack.c.l.b16 %v288
  %v386 = vunpack.c.h.b16 %v288
  %v387 = vunpack.c.l.b16 %v289
  %v388 = vunpack.c.h.b16 %v289
  %v389 = vunpack.c.l.b16 %v290
  %v390 = vunpack.c.h.b16 %v290
  %v391 = vunpack.c.l.b16 %v291
  %v392 = vunpack.c.h.b16 %v291
  %v393 = vunpack.c.l.b16 %v292
  %v394 = vunpack.c.h.b16 %v292
  %v395 = vunpack.c.l.b16 %v293
  %v396 = vunpack.c.h.b16 %v293
  %v397 = vunpack.c.l.b16 %v294
  %v398 = vunpack.c.h.b16 %v294
  %v399 = vunpack.c.l.b16 %v295
  %v400 = vunpack.c.h.b16 %v295
  %v401 = vunpack.c.l.b16 %v296
  %v402 = vunpack.c.h.b16 %v296
  %v403 = vunpack.c.l.b16 %v297
  %v404 = vunpack.c.h.b16 %v297
  %v405 = vunpack.c.l.b16 %v298
  %v406 = vunpack.c.h.b16 %v298
  %v407 = vunpack.c.l.b16 %v299
  %v408 = vunpack.c.h.b16 %v299
  %v409 = vunpack.c.l.b16 %v300
  %v410 = vunpack.c.h.b16 %v300
  %v411 = vunpack.c.l.b16 %v301
  %v412 = vunpack.c.h.b16 %v301
  %v413 = vunpack.c.l.b16 %v302
  %v414 = vunpack.c.h.b16 %v302
  %v415 = vunpack.c.l.b16 %v303
  %v416 = vunpack.c.h.b16 %v303
  %v417 = vunpack.c.l.b16 %v304
  %v418 = vunpack.c.h.b16 %v304
  %v419 = vunpack.c.l.b16 %v305
  %v420 = vunpack.c.h.b16 %v305
  %v421 = vunpack.c.l.b16 %v306
  %v422 = vunpack.c.h.b16 %v306
  %v423 = vunpack.c.l.b16 %v307
  %v424 = vunpack.c.h.b16 %v307
  %v425 = vunpack.c.l.b16 %v308
  %v426 = vunpack.c.h.b16 %v308
  %v427 = vpack.c.b16 %v367, %v363
  %v428 = vpack.c.b16 %v368, %v364
  %v429 = vpack.c.b16 %v369, %v365
  %v430 = vpack.c.b16 %v370, %v366
  %v431 = vpack.c.b16 %v375, %v371
  %v432 = vpack.c.b16 %v376, %v372
  %v433 = vpack.c.b16 %v377, %v373
  %v434 = vpack.c.b16 %v378, %v374
  %v435 = vpack.c.b16 %v383, %v379
  %v436 = vpack.c.b16 %v384, %v380
  %v437 = vpack.c.b16 %v385, %v381
  %v438 = vpack.c.b16 %v386, %v382
  %v439 = vpack.c.b16 %v391, %v387
  %v440 = vpack.c.b16 %v392, %v388
  %v441 = vpack.c.b16 %v393, %v389
  %v442 = vpack.c.b16 %v394, %v390
  %v443 = vpack.c.b16 %v399, %v395
  %v444 = vpack.c.b16 %v400, %v396
  %v445 = vpack.c.b16 %v401, %v397
  %v446 = vpack.c.b16 %v402, %v398
  %v447 = vpack.c.b16 %v407, %v403
  %v448 = vpack.c.b16 %v408, %v404
  %v449 = vpack.c.b16 %v409, %v405
  %v450 = vpack.c.b16 %v410, %v406
  %v451 = vpack.c.b16 %v415, %v411
  %v452 = vpack.c.b16 %v416, %v412
  %v453 = vpack.c.b16 %v417, %v413
  %v454 = vpack.c.b16 %v418, %v414
  %v455 = vpack.c.b16 %v423, %v419
  %v456 = vpack.c.b16 %v424, %v420
  %v457 = vpack.c.b16 %v425, %v421
  %v458 = vpack.c.b16 %v426, %v422
  %491 = vmatprep.subr.bf16.mxu0 %v456
  %492 = vmatpush1.bf16.msra.mxu0 %v455
  %493 = vmatprep.subr.bf16.mxu0 %v452
  %494 = vmatpush1.bf16.msra.mxu0 %v451
  %495 = vmatprep.subr.bf16.mxu0 %v448
  %496 = vmatpush1.bf16.msra.mxu0 %v447
  %497 = vmatprep.subr.bf16.mxu0 %v444
  %498 = vmatpush1.bf16.msra.mxu0 %v443
  %499 = vmatprep.subr.bf16.mxu0 %v440
  %500 = vmatpush1.bf16.msra.mxu0 %v439
  %501 = vmatprep.subr.bf16.mxu0 %v436
  %502 = vmatpush1.bf16.msra.mxu0 %v435
  %503 = vmatprep.subr.bf16.mxu0 %v432
  %504 = vmatpush1.bf16.msra.mxu0 %v431
  %505 = vmatprep.subr.bf16.mxu0 %v428
  %506 = vmatpush1.bf16.msra.mxu0 %v427
  %507 = vmatprep.subr.bf16.mxu0 0
  %508 = vmatpush2.bf16.msra.mxu0 0
  %509 = vmatprep.subr.bf16.mxu0 0
  %510 = vmatpush2.bf16.msra.mxu0 0
  %511 = vmatprep.subr.bf16.mxu0 0
  %512 = vmatpush2.bf16.msra.mxu0 0
  %513 = vmatprep.subr.bf16.mxu0 0
  %514 = vmatpush2.bf16.msra.mxu0 0
  %515 = vmatprep.subr.bf16.mxu0 0
  %516 = vmatpush2.bf16.msra.mxu0 0
  %517 = vmatprep.subr.bf16.mxu0 0
  %518 = vmatpush2.bf16.msra.mxu0 0
  %519 = vmatprep.subr.bf16.mxu0 0
  %520 = vmatpush2.bf16.msra.mxu0 0
  %521 = vmatprep.subr.bf16.mxu0 0
  %522 = vmatpush2.bf16.msra.mxu0 0
  %523 = vmatprep.mubr.bf16.mxu0 0
  %524 = vmatmul.mubr.bf16.gmra.mxu0 %v273
  %v525 = vpop.f32.mrf.mxu0
  %v526 = vadd.f32 %v314, %v525
  %v527 = vpop.f32.mrf.mxu0
  %v528 = vadd.f32 %v318, %v527
  %v529 = vpop.f32.mrf.mxu0
  %v530 = vadd.f32 %v314, %v529
  %v531 = vpop.f32.mrf.mxu0
  %v532 = vadd.f32 %v318, %v531
  %533 = vmatprep.mubr.bf16.mxu0 0
  %534 = vmatmul.mubr.bf16.gmra.mxu0 %v274
  %v535 = vpop.f32.mrf.mxu0
  %v536 = vadd.f32 %v314, %v535
  %v537 = vpop.f32.mrf.mxu0
  %v538 = vadd.f32 %v318, %v537
  %v539 = vpop.f32.mrf.mxu0
  %v540 = vadd.f32 %v314, %v539
  %v541 = vpop.f32.mrf.mxu0
  %v542 = vadd.f32 %v318, %v541
  %543 = vmatprep.mubr.bf16.mxu0 0
  %544 = vmatmul.mubr.bf16.gmra.mxu0 %v275
  %v545 = vpop.f32.mrf.mxu0
  %v546 = vadd.f32 %v314, %v545
  %v547 = vpop.f32.mrf.mxu0
  %v548 = vadd.f32 %v318, %v547
  %v549 = vpop.f32.mrf.mxu0
  %v550 = vadd.f32 %v314, %v549
  %v551 = vpop.f32.mrf.mxu0
  %v552 = vadd.f32 %v318, %v551
  %553 = vmatprep.mubr.bf16.mxu0 0
  %554 = vmatmul.mubr.bf16.gmra.mxu0 %v276
  %v555 = vpop.f32.mrf.mxu0
  %v556 = vadd.f32 %v314, %v555
  %v557 = vpop.f32.mrf.mxu0
  %v558 = vadd.f32 %v318, %v557
  %v559 = vpop.f32.mrf.mxu0
  %v560 = vadd.f32 %v314, %v559
  %v561 = vpop.f32.mrf.mxu0
  %v562 = vadd.f32 %v318, %v561
  %563 = vdwg.mxu0
  %564 = vmatprep.subr.bf16.mxu0 %v458
  %565 = vmatpush1.bf16.msra.mxu0 %v457
  %566 = vmatprep.subr.bf16.mxu0 %v454
  %567 = vmatpush1.bf16.msra.mxu0 %v453
  %568 = vmatprep.subr.bf16.mxu0 %v450
  %569 = vmatpush1.bf16.msra.mxu0 %v449
  %570 = vmatprep.subr.bf16.mxu0 %v446
  %571 = vmatpush1.bf16.msra.mxu0 %v445
  %572 = vmatprep.subr.bf16.mxu0 %v442
  %573 = vmatpush1.bf16.msra.mxu0 %v441
  %574 = vmatprep.subr.bf16.mxu0 %v438
  %575 = vmatpush1.bf16.msra.mxu0 %v437
  %576 = vmatprep.subr.bf16.mxu0 %v434
  %577 = vmatpush1.bf16.msra.mxu0 %v433
  %578 = vmatprep.subr.bf16.mxu0 %v430
  %579 = vmatpush1.bf16.msra.mxu0 %v429
  %580 = vmatprep.subr.bf16.mxu0 0
  %581 = vmatpush2.bf16.msra.mxu0 0
  %582 = vmatprep.subr.bf16.mxu0 0
  %583 = vmatpush2.bf16.msra.mxu0 0
  %584 = vmatprep.subr.bf16.mxu0 0
  %585 = vmatpush2.bf16.msra.mxu0 0
  %586 = vmatprep.subr.bf16.mxu0 0
  %587 = vmatpush2.bf16.msra.mxu0 0
  %588 = vmatprep.subr.bf16.mxu0 0
  %589 = vmatpush2.bf16.msra.mxu0 0
  %590 = vmatprep.subr.bf16.mxu0 0
  %591 = vmatpush2.bf16.msra.mxu0 0
  %592 = vmatprep.subr.bf16.mxu0 0
  %593 = vmatpush2.bf16.msra.mxu0 0
  %594 = vmatprep.subr.bf16.mxu0 0
  %595 = vmatpush2.bf16.msra.mxu0 0
  %596 = vmatprep.mubr.bf16.mxu0 0
  %597 = vmatmul.mubr.bf16.gmra.mxu0 %v273
  %v598 = vpop.f32.mrf.mxu0
  %v599 = vadd.f32 %v322, %v598
  %v600 = vpop.f32.mrf.mxu0
  %v601 = vadd.f32 %v326, %v600
  %v602 = vpop.f32.mrf.mxu0
  %v603 = vadd.f32 %v322, %v602
  %v604 = vpop.f32.mrf.mxu0
  %v605 = vadd.f32 %v326, %v604
  %606 = vmatprep.mubr.bf16.mxu0 0
  %607 = vmatmul.mubr.bf16.gmra.mxu0 %v274
  %v608 = vpop.f32.mrf.mxu0
  %v609 = vadd.f32 %v322, %v608
  %v610 = vpop.f32.mrf.mxu0
  %v611 = vadd.f32 %v326, %v610
  %v612 = vpop.f32.mrf.mxu0
  %v613 = vadd.f32 %v322, %v612
  %v614 = vpop.f32.mrf.mxu0
  %v615 = vadd.f32 %v326, %v614
  %616 = vmatprep.mubr.bf16.mxu0 0
  %617 = vmatmul.mubr.bf16.gmra.mxu0 %v275
  %v618 = vpop.f32.mrf.mxu0
  %v619 = vadd.f32 %v322, %v618
  %v620 = vpop.f32.mrf.mxu0
  %v621 = vadd.f32 %v326, %v620
  %v622 = vpop.f32.mrf.mxu0
  %v623 = vadd.f32 %v322, %v622
  %v624 = vpop.f32.mrf.mxu0
  %v625 = vadd.f32 %v326, %v624
  %626 = vmatprep.mubr.bf16.mxu0 0
  %627 = vmatmul.mubr.bf16.gmra.mxu0 %v276
  %v628 = vpop.f32.mrf.mxu0
  %v629 = vadd.f32 %v322, %v628
  %v630 = vpop.f32.mrf.mxu0
  %v631 = vadd.f32 %v326, %v630
  %v632 = vpop.f32.mrf.mxu0
  %v633 = vadd.f32 %v322, %v632
  %v634 = vpop.f32.mrf.mxu0
  %v635 = vadd.f32 %v326, %v634
  %636 = vdwg.mxu0
  %637 = vst [vmem:[#allocation2] sm:$0xff] %v526
  %638 = vst [vmem:[#allocation2 + $0x8] sm:$0xff] %v528
  %639 = vst [vmem:[#allocation2 + $0x10] sm:$0xff] %v599
  %640 = vst [vmem:[#allocation2 + $0x18] sm:$0xff] %v601
  %641 = vst [vmem:[#allocation2 + $0x20] sm:$0xff] %v530
  %642 = vst [vmem:[#allocation2 + $0x28] sm:$0xff] %v532
  %643 = vst [vmem:[#allocation2 + $0x30] sm:$0xff] %v603
  %644 = vst [vmem:[#allocation2 + $0x38] sm:$0xff] %v605
  %645 = vst [vmem:[#allocation2 + $0x40] sm:$0xff] %v536
  %646 = vst [vmem:[#allocation2 + $0x48] sm:$0xff] %v538
  %647 = vst [vmem:[#allocation2 + $0x50] sm:$0xff] %v609
  %648 = vst [vmem:[#allocation2 + $0x58] sm:$0xff] %v611
  %649 = vst [vmem:[#allocation2 + $0x60] sm:$0xff] %v540
  %650 = vst [vmem:[#allocation2 + $0x68] sm:$0xff] %v542
  %651 = vst [vmem:[#allocation2 + $0x70] sm:$0xff] %v613
  %652 = vst [vmem:[#allocation2 + $0x78] sm:$0xff] %v615
  %653 = vst [vmem:[#allocation2 + $0x80] sm:$0xff] %v546
  %654 = vst [vmem:[#allocation2 + $0x88] sm:$0xff] %v548
  %655 = vst [vmem:[#allocation2 + $0x90] sm:$0xff] %v619
  %656 = vst [vmem:[#allocation2 + $0x98] sm:$0xff] %v621
  %657 = vst [vmem:[#allocation2 + $0xa0] sm:$0xff] %v550
  %658 = vst [vmem:[#allocation2 + $0xa8] sm:$0xff] %v552
  %659 = vst [vmem:[#allocation2 + $0xb0] sm:$0xff] %v623
  %660 = vst [vmem:[#allocation2 + $0xb8] sm:$0xff] %v625
  %661 = vst [vmem:[#allocation2 + $0xc0] sm:$0xff] %v556
  %662 = vst [vmem:[#allocation2 + $0xc8] sm:$0xff] %v558
  %663 = vst [vmem:[#allocation2 + $0xd0] sm:$0xff] %v629
  %664 = vst [vmem:[#allocation2 + $0xd8] sm:$0xff] %v631
  %665 = vst [vmem:[#allocation2 + $0xe0] sm:$0xff] %v560
  %666 = vst [vmem:[#allocation2 + $0xe8] sm:$0xff] %v562
  %667 = vst [vmem:[#allocation2 + $0xf0] sm:$0xff] %v633
  %668 = vst [vmem:[#allocation2 + $0xf8] sm:$0xff] %v635
  %v669 = vld [vmem:[#allocation2] sm:$0xff]
  %v670 = vld [vmem:[#allocation2 + $0x8] sm:$0xff]
  %v671 = vld [vmem:[#allocation2 + $0x10] sm:$0xff]
  %v672 = vld [vmem:[#allocation2 + $0x18] sm:$0xff]
  %v673 = vld [vmem:[%s4] sm:$0xff]
  %v674 = vld [vmem:[%s4 + $0x8] sm:$0xff]
  %v675 = vld [vmem:[%s4 + $0x10] sm:$0xff]
  %v676 = vld [vmem:[%s4 + $0x18] sm:$0xff]
  %v677 = vld [vmem:[%s4 + $0x20] sm:$0xff]
  %v678 = vld [vmem:[%s4 + $0x28] sm:$0xff]
  %v679 = vld [vmem:[%s4 + $0x30] sm:$0xff]
  %v680 = vld [vmem:[%s4 + $0x38] sm:$0xff]
  %v681 = vld [vmem:[%s4 + $0x40] sm:$0xff]
  %v682 = vld [vmem:[%s4 + $0x48] sm:$0xff]
  %v683 = vld [vmem:[%s4 + $0x50] sm:$0xff]
  %v684 = vld [vmem:[%s4 + $0x58] sm:$0xff]
  %v685 = vld [vmem:[%s4 + $0x60] sm:$0xff]
  %v686 = vld [vmem:[%s4 + $0x68] sm:$0xff]
  %v687 = vld [vmem:[%s4 + $0x70] sm:$0xff]
  %v688 = vld [vmem:[%s4 + $0x78] sm:$0xff]
  %v689 = vld [vmem:[%s4 + $0x80] sm:$0xff]
  %v690 = vld [vmem:[%s4 + $0x88] sm:$0xff]
  %v691 = vld [vmem:[%s4 + $0x90] sm:$0xff]
  %v692 = vld [vmem:[%s4 + $0x98] sm:$0xff]
  %v693 = vld [vmem:[%s4 + $0xa0] sm:$0xff]
  %v694 = vld [vmem:[%s4 + $0xa8] sm:$0xff]
  %v695 = vld [vmem:[%s4 + $0xb0] sm:$0xff]
  %v696 = vld [vmem:[%s4 + $0xb8] sm:$0xff]
  %v697 = vld [vmem:[%s4 + $0xc0] sm:$0xff]
  %v698 = vld [vmem:[%s4 + $0xc8] sm:$0xff]
  %v699 = vld [vmem:[%s4 + $0xd0] sm:$0xff]
  %v700 = vld [vmem:[%s4 + $0xd8] sm:$0xff]
  %v701 = vld [vmem:[%s4 + $0xe0] sm:$0xff]
  %v702 = vld [vmem:[%s4 + $0xe8] sm:$0xff]
  %v703 = vld [vmem:[%s4 + $0xf0] sm:$0xff]
  %v704 = vld [vmem:[%s4 + $0xf8] sm:$0xff]
  %v737 = vunpack.c.l.b16 %v673
  %v738 = vunpack.c.h.b16 %v673
  %v739 = vunpack.c.l.b16 %v674
  %v740 = vunpack.c.h.b16 %v674
  %v741 = vunpack.c.l.b16 %v675
  %v742 = vunpack.c.h.b16 %v675
  %v743 = vunpack.c.l.b16 %v676
  %v744 = vunpack.c.h.b16 %v676
  %v745 = vunpack.c.l.b16 %v677
  %v746 = vunpack.c.h.b16 %v677
  %v747 = vunpack.c.l.b16 %v678
  %v748 = vunpack.c.h.b16 %v678
  %v749 = vunpack.c.l.b16 %v679
  %v750 = vunpack.c.h.b16 %v679
  %v751 = vunpack.c.l.b16 %v680
  %v752 = vunpack.c.h.b16 %v680
  %v753 = vunpack.c.l.b16 %v681
  %v754 = vunpack.c.h.b16 %v681
  %v755 = vunpack.c.l.b16 %v682
  %v756 = vunpack.c.h.b16 %v682
  %v757 = vunpack.c.l.b16 %v683
  %v758 = vunpack.c.h.b16 %v683
  %v759 = vunpack.c.l.b16 %v684
  %v760 = vunpack.c.h.b16 %v684
  %v761 = vunpack.c.l.b16 %v685
  %v762 = vunpack.c.h.b16 %v685
  %v763 = vunpack.c.l.b16 %v686
  %v764 = vunpack.c.h.b16 %v686
  %v765 = vunpack.c.l.b16 %v687
  %v766 = vunpack.c.h.b16 %v687
  %v767 = vunpack.c.l.b16 %v688
  %v768 = vunpack.c.h.b16 %v688
  %v769 = vunpack.c.l.b16 %v689
  %v770 = vunpack.c.h.b16 %v689
  %v771 = vunpack.c.l.b16 %v690
  %v772 = vunpack.c.h.b16 %v690
  %v773 = vunpack.c.l.b16 %v691
  %v774 = vunpack.c.h.b16 %v691
  %v775 = vunpack.c.l.b16 %v692
  %v776 = vunpack.c.h.b16 %v692
  %v777 = vunpack.c.l.b16 %v693
  %v778 = vunpack.c.h.b16 %v693
  %v779 = vunpack.c.l.b16 %v694
  %v780 = vunpack.c.h.b16 %v694
  %v781 = vunpack.c.l.b16 %v695
  %v782 = vunpack.c.h.b16 %v695
  %v783 = vunpack.c.l.b16 %v696
  %v784 = vunpack.c.h.b16 %v696
  %v785 = vunpack.c.l.b16 %v697
  %v786 = vunpack.c.h.b16 %v697
  %v787 = vunpack.c.l.b16 %v698
  %v788 = vunpack.c.h.b16 %v698
  %v789 = vunpack.c.l.b16 %v699
  %v790 = vunpack.c.h.b16 %v699
  %v791 = vunpack.c.l.b16 %v700
  %v792 = vunpack.c.h.b16 %v700
  %v793 = vunpack.c.l.b16 %v701
  %v794 = vunpack.c.h.b16 %v701
  %v795 = vunpack.c.l.b16 %v702
  %v796 = vunpack.c.h.b16 %v702
  %v797 = vunpack.c.l.b16 %v703
  %v798 = vunpack.c.h.b16 %v703
  %v799 = vunpack.c.l.b16 %v704
  %v800 = vunpack.c.h.b16 %v704
  %v801 = vpack.c.b16 %v741, %v737
  %v802 = vpack.c.b16 %v742, %v738
  %v803 = vpack.c.b16 %v743, %v739
  %v804 = vpack.c.b16 %v744, %v740
  %v805 = vpack.c.b16 %v749, %v745
  %v806 = vpack.c.b16 %v750, %v746
  %v807 = vpack.c.b16 %v751, %v747
  %v808 = vpack.c.b16 %v752, %v748
  %v809 = vpack.c.b16 %v757, %v753
  %v810 = vpack.c.b16 %v758, %v754
  %v811 = vpack.c.b16 %v759, %v755
  %v812 = vpack.c.b16 %v760, %v756
  %v813 = vpack.c.b16 %v765, %v761
  %v814 = vpack.c.b16 %v766, %v762
  %v815 = vpack.c.b16 %v767, %v763
  %v816 = vpack.c.b16 %v768, %v764
  %v817 = vpack.c.b16 %v773, %v769
  %v818 = vpack.c.b16 %v774, %v770
  %v819 = vpack.c.b16 %v775, %v771
  %v820 = vpack.c.b16 %v776, %v772
  %v821 = vpack.c.b16 %v781, %v777
  %v822 = vpack.c.b16 %v782, %v778
  %v823 = vpack.c.b16 %v783, %v779
  %v824 = vpack.c.b16 %v784, %v780
  %v825 = vpack.c.b16 %v789, %v785
  %v826 = vpack.c.b16 %v790, %v786
  %v827 = vpack.c.b16 %v791, %v787
  %v828 = vpack.c.b16 %v792, %v788
  %v829 = vpack.c.b16 %v797, %v793
  %v830 = vpack.c.b16 %v798, %v794
  %v831 = vpack.c.b16 %v799, %v795
  %v832 = vpack.c.b16 %v800, %v796
  %865 = vmatprep.subr.bf16.mxu0 %v830
  %866 = vmatpush1.bf16.msra.mxu0 %v829
  %867 = vmatprep.subr.bf16.mxu0 %v826
  %868 = vmatpush1.bf16.msra.mxu0 %v825
  %869 = vmatprep.subr.bf16.mxu0 %v822
  %870 = vmatpush1.bf16.msra.mxu0 %v821
  %871 = vmatprep.subr.bf16.mxu0 %v818
  %872 = vmatpush1.bf16.msra.mxu0 %v817
  %873 = vmatprep.subr.bf16.mxu0 %v814
  %874 = vmatpush1.bf16.msra.mxu0 %v813
  %875 = vmatprep.subr.bf16.mxu0 %v810
  %876 = vmatpush1.bf16.msra.mxu0 %v809
  %877 = vmatprep.subr.bf16.mxu0 %v806
  %878 = vmatpush1.bf16.msra.mxu0 %v805
  %879 = vmatprep.subr.bf16.mxu0 %v802
  %880 = vmatpush1.bf16.msra.mxu0 %v801
  %881 = vmatprep.subr.bf16.mxu0 0
  %882 = vmatpush2.bf16.msra.mxu0 0
  %883 = vmatprep.subr.bf16.mxu0 0
  %884 = vmatpush2.bf16.msra.mxu0 0
  %885 = vmatprep.subr.bf16.mxu0 0
  %886 = vmatpush2.bf16.msra.mxu0 0
  %887 = vmatprep.subr.bf16.mxu0 0
  %888 = vmatpush2.bf16.msra.mxu0 0
  %889 = vmatprep.subr.bf16.mxu0 0
  %890 = vmatpush2.bf16.msra.mxu0 0
  %891 = vmatprep.subr.bf16.mxu0 0
  %892 = vmatpush2.bf16.msra.mxu0 0
  %893 = vmatprep.subr.bf16.mxu0 0
  %894 = vmatpush2.bf16.msra.mxu0 0
  %895 = vmatprep.subr.bf16.mxu0 0
  %896 = vmatpush2.bf16.msra.mxu0 0
  %897 = vmatprep.mubr.bf16.mxu0 0
  %898 = vmatmul.mubr.bf16.gmra.mxu0 0
  %v899 = vpop.f32.mrf.mxu0
  %v900 = vadd.f32 0.0, %v899
  %v901 = vpop.f32.mrf.mxu0
  %v902 = vadd.f32 0.0, %v901
  %v903 = vpop.f32.mrf.mxu0
  %v904 = vpop.f32.mrf.mxu0
  %905 = vdwg.mxu0
  %906 = vmatprep.subr.bf16.mxu0 %v832
  %907 = vmatpush1.bf16.msra.mxu0 %v831
  %908 = vmatprep.subr.bf16.mxu0 %v828
  %909 = vmatpush1.bf16.msra.mxu0 %v827
  %910 = vmatprep.subr.bf16.mxu0 %v824
  %911 = vmatpush1.bf16.msra.mxu0 %v823
  %912 = vmatprep.subr.bf16.mxu0 %v820
  %913 = vmatpush1.bf16.msra.mxu0 %v819
  %914 = vmatprep.subr.bf16.mxu0 %v816
  %915 = vmatpush1.bf16.msra.mxu0 %v815
  %916 = vmatprep.subr.bf16.mxu0 %v812
  %917 = vmatpush1.bf16.msra.mxu0 %v811
  %918 = vmatprep.subr.bf16.mxu0 %v808
  %919 = vmatpush1.bf16.msra.mxu0 %v807
  %920 = vmatprep.subr.bf16.mxu0 %v804
  %921 = vmatpush1.bf16.msra.mxu0 %v803
  %922 = vmatprep.subr.bf16.mxu0 0
  %923 = vmatpush2.bf16.msra.mxu0 0
  %924 = vmatprep.subr.bf16.mxu0 0
  %925 = vmatpush2.bf16.msra.mxu0 0
  %926 = vmatprep.subr.bf16.mxu0 0
  %927 = vmatpush2.bf16.msra.mxu0 0
  %928 = vmatprep.subr.bf16.mxu0 0
  %929 = vmatpush2.bf16.msra.mxu0 0
  %930 = vmatprep.subr.bf16.mxu0 0
  %931 = vmatpush2.bf16.msra.mxu0 0
  %932 = vmatprep.subr.bf16.mxu0 0
  %933 = vmatpush2.bf16.msra.mxu0 0
  %934 = vmatprep.subr.bf16.mxu0 0
  %935 = vmatpush2.bf16.msra.mxu0 0
  %936 = vmatprep.subr.bf16.mxu0 0
  %937 = vmatpush2.bf16.msra.mxu0 0
  %938 = vmatprep.mubr.bf16.mxu0 0
  %939 = vmatmul.mubr.bf16.gmra.mxu0 0
  %v940 = vpop.f32.mrf.mxu0
  %v941 = vadd.f32 0.0, %v940
  %v942 = vpop.f32.mrf.mxu0
  %v943 = vadd.f32 0.0, %v942
  %v944 = vpop.f32.mrf.mxu0
  %v945 = vpop.f32.mrf.mxu0
  %946 = vdwg.mxu0
  %v947 = vadd.f32 %v669, %v900
  %v948 = vadd.f32 %v670, %v902
  %v949 = vadd.f32 %v671, %v941
  %v950 = vadd.f32 %v672, %v943
  %v951 = vxor.u32 %v947, 2147483648
  %v952 = vmul.f32 %v951, 1.442695
  %v953 = vpow.pop %v952
  %v954 = vadd.f32 %v953, 1.0
  %v955 = vrcp.pop %v954
  %v956 = vmul.f32 1.0, %v955
  %v957 = vxor.u32 %v948, 2147483648
  %v958 = vmul.f32 %v957, 1.442695
  %v959 = vpow.pop %v958
  %v960 = vadd.f32 %v959, 1.0
  %v961 = vrcp.pop %v960
  %v962 = vmul.f32 1.0, %v961
  %v963 = vtanh.pop %v949
  %v964 = vxor.u32 %v950, 2147483648
  %v965 = vmul.f32 %v964, 1.442695
  %v966 = vpow.pop %v965
  %v967 = vadd.f32 %v966, 1.0
  %v968 = vrcp.pop %v967
  %v969 = vmul.f32 1.0, %v968
  %v970 = vmul.f32 %v962, 0.0
  %v971 = vmul.f32 %v956, %v963
  %v972 = vadd.f32 %v970, %v971
  %v973 = vtanh.pop %v972
  %v974 = vmul.f32 %v969, %v973
  %975 = vst [vmem:[#allocation3] sm:$0xff] %v974
  %s976 = scalar_lea.vmem [#allocation2], 32
  %v977 = vld [vmem:[%s976] sm:$0xff]
  %v978 = vld [vmem:[%s976 + $0x8] sm:$0xff]
  %v979 = vld [vmem:[%s976 + $0x10] sm:$0xff]
  %v980 = vld [vmem:[%s976 + $0x18] sm:$0xff]
  %v981 = vpack.c.bf16 %v974, %v974
  %v982 = vld [vmem:[%s4] sm:$0xff]
  %v983 = vld [vmem:[%s4 + $0x8] sm:$0xff]
  %v984 = vld [vmem:[%s4 + $0x10] sm:$0xff]
  %v985 = vld [vmem:[%s4 + $0x18] sm:$0xff]
  %v986 = vld [vmem:[%s4 + $0x20] sm:$0xff]
  %v987 = vld [vmem:[%s4 + $0x28] sm:$0xff]
  %v988 = vld [vmem:[%s4 + $0x30] sm:$0xff]
  %v989 = vld [vmem:[%s4 + $0x38] sm:$0xff]
  %v990 = vld [vmem:[%s4 + $0x40] sm:$0xff]
  %v991 = vld [vmem:[%s4 + $0x48] sm:$0xff]
  %v992 = vld [vmem:[%s4 + $0x50] sm:$0xff]
  %v993 = vld [vmem:[%s4 + $0x58] sm:$0xff]
  %v994 = vld [vmem:[%s4 + $0x60] sm:$0xff]
  %v995 = vld [vmem:[%s4 + $0x68] sm:$0xff]
  %v996 = vld [vmem:[%s4 + $0x70] sm:$0xff]
  %v997 = vld [vmem:[%s4 + $0x78] sm:$0xff]
  %v998 = vld [vmem:[%s4 + $0x80] sm:$0xff]
  %v999 = vld [vmem:[%s4 + $0x88] sm:$0xff]
  %v1000 = vld [vmem:[%s4 + $0x90] sm:$0xff]
  %v1001 = vld [vmem:[%s4 + $0x98] sm:$0xff]
  %v1002 = vld [vmem:[%s4 + $0xa0] sm:$0xff]
  %v1003 = vld [vmem:[%s4 + $0xa8] sm:$0xff]
  %v1004 = vld [vmem:[%s4 + $0xb0] sm:$0xff]
  %v1005 = vld [vmem:[%s4 + $0xb8] sm:$0xff]
  %v1006 = vld [vmem:[%s4 + $0xc0] sm:$0xff]
  %v1007 = vld [vmem:[%s4 + $0xc8] sm:$0xff]
  %v1008 = vld [vmem:[%s4 + $0xd0] sm:$0xff]
  %v1009 = vld [vmem:[%s4 + $0xd8] sm:$0xff]
  %v1010 = vld [vmem:[%s4 + $0xe0] sm:$0xff]
  %v1011 = vld [vmem:[%s4 + $0xe8] sm:$0xff]
  %v1012 = vld [vmem:[%s4 + $0xf0] sm:$0xff]
  %v1013 = vld [vmem:[%s4 + $0xf8] sm:$0xff]
  %v1046 = vunpack.c.l.b16 %v982
  %v1047 = vunpack.c.h.b16 %v982
  %v1048 = vunpack.c.l.b16 %v983
  %v1049 = vunpack.c.h.b16 %v983
  %v1050 = vunpack.c.l.b16 %v984
  %v1051 = vunpack.c.h.b16 %v984
  %v1052 = vunpack.c.l.b16 %v985
  %v1053 = vunpack.c.h.b16 %v985
  %v1054 = vunpack.c.l.b16 %v986
  %v1055 = vunpack.c.h.b16 %v986
  %v1056 = vunpack.c.l.b16 %v987
  %v1057 = vunpack.c.h.b16 %v987
  %v1058 = vunpack.c.l.b16 %v988
  %v1059 = vunpack.c.h.b16 %v988
  %v1060 = vunpack.c.l.b16 %v989
  %v1061 = vunpack.c.h.b16 %v989
  %v1062 = vunpack.c.l.b16 %v990
  %v1063 = vunpack.c.h.b16 %v990
  %v1064 = vunpack.c.l.b16 %v991
  %v1065 = vunpack.c.h.b16 %v991
  %v1066 = vunpack.c.l.b16 %v992
  %v1067 = vunpack.c.h.b16 %v992
  %v1068 = vunpack.c.l.b16 %v993
  %v1069 = vunpack.c.h.b16 %v993
  %v1070 = vunpack.c.l.b16 %v994
  %v1071 = vunpack.c.h.b16 %v994
  %v1072 = vunpack.c.l.b16 %v995
  %v1073 = vunpack.c.h.b16 %v995
  %v1074 = vunpack.c.l.b16 %v996
  %v1075 = vunpack.c.h.b16 %v996
  %v1076 = vunpack.c.l.b16 %v997
  %v1077 = vunpack.c.h.b16 %v997
  %v1078 = vunpack.c.l.b16 %v998
  %v1079 = vunpack.c.h.b16 %v998
  %v1080 = vunpack.c.l.b16 %v999
  %v1081 = vunpack.c.h.b16 %v999
  %v1082 = vunpack.c.l.b16 %v1000
  %v1083 = vunpack.c.h.b16 %v1000
  %v1084 = vunpack.c.l.b16 %v1001
  %v1085 = vunpack.c.h.b16 %v1001
  %v1086 = vunpack.c.l.b16 %v1002
  %v1087 = vunpack.c.h.b16 %v1002
  %v1088 = vunpack.c.l.b16 %v1003
  %v1089 = vunpack.c.h.b16 %v1003
  %v1090 = vunpack.c.l.b16 %v1004
  %v1091 = vunpack.c.h.b16 %v1004
  %v1092 = vunpack.c.l.b16 %v1005
  %v1093 = vunpack.c.h.b16 %v1005
  %v1094 = vunpack.c.l.b16 %v1006
  %v1095 = vunpack.c.h.b16 %v1006
  %v1096 = vunpack.c.l.b16 %v1007
  %v1097 = vunpack.c.h.b16 %v1007
  %v1098 = vunpack.c.l.b16 %v1008
  %v1099 = vunpack.c.h.b16 %v1008
  %v1100 = vunpack.c.l.b16 %v1009
  %v1101 = vunpack.c.h.b16 %v1009
  %v1102 = vunpack.c.l.b16 %v1010
  %v1103 = vunpack.c.h.b16 %v1010
  %v1104 = vunpack.c.l.b16 %v1011
  %v1105 = vunpack.c.h.b16 %v1011
  %v1106 = vunpack.c.l.b16 %v1012
  %v1107 = vunpack.c.h.b16 %v1012
  %v1108 = vunpack.c.l.b16 %v1013
  %v1109 = vunpack.c.h.b16 %v1013
  %v1110 = vpack.c.b16 %v1050, %v1046
  %v1111 = vpack.c.b16 %v1051, %v1047
  %v1112 = vpack.c.b16 %v1052, %v1048
  %v1113 = vpack.c.b16 %v1053, %v1049
  %v1114 = vpack.c.b16 %v1058, %v1054
  %v1115 = vpack.c.b16 %v1059, %v1055
  %v1116 = vpack.c.b16 %v1060, %v1056
  %v1117 = vpack.c.b16 %v1061, %v1057
  %v1118 = vpack.c.b16 %v1066, %v1062
  %v1119 = vpack.c.b16 %v1067, %v1063
  %v1120 = vpack.c.b16 %v1068, %v1064
  %v1121 = vpack.c.b16 %v1069, %v1065
  %v1122 = vpack.c.b16 %v1074, %v1070
  %v1123 = vpack.c.b16 %v1075, %v1071
  %v1124 = vpack.c.b16 %v1076, %v1072
  %v1125 = vpack.c.b16 %v1077, %v1073
  %v1126 = vpack.c.b16 %v1082, %v1078
  %v1127 = vpack.c.b16 %v1083, %v1079
  %v1128 = vpack.c.b16 %v1084, %v1080
  %v1129 = vpack.c.b16 %v1085, %v1081
  %v1130 = vpack.c.b16 %v1090, %v1086
  %v1131 = vpack.c.b16 %v1091, %v1087
  %v1132 = vpack.c.b16 %v1092, %v1088
  %v1133 = vpack.c.b16 %v1093, %v1089
  %v1134 = vpack.c.b16 %v1098, %v1094
  %v1135 = vpack.c.b16 %v1099, %v1095
  %v1136 = vpack.c.b16 %v1100, %v1096
  %v1137 = vpack.c.b16 %v1101, %v1097
  %v1138 = vpack.c.b16 %v1106, %v1102
  %v1139 = vpack.c.b16 %v1107, %v1103
  %v1140 = vpack.c.b16 %v1108, %v1104
  %v1141 = vpack.c.b16 %v1109, %v1105
  %1174 = vmatprep.subr.bf16.mxu0 %v1139
  %1175 = vmatpush1.bf16.msra.mxu0 %v1138
  %1176 = vmatprep.subr.bf16.mxu0 %v1135
  %1177 = vmatpush1.bf16.msra.mxu0 %v1134
  %1178 = vmatprep.subr.bf16.mxu0 %v1131
  %1179 = vmatpush1.bf16.msra.mxu0 %v1130
  %1180 = vmatprep.subr.bf16.mxu0 %v1127
  %1181 = vmatpush1.bf16.msra.mxu0 %v1126
  %1182 = vmatprep.subr.bf16.mxu0 %v1123
  %1183 = vmatpush1.bf16.msra.mxu0 %v1122
  %1184 = vmatprep.subr.bf16.mxu0 %v1119
  %1185 = vmatpush1.bf16.msra.mxu0 %v1118
  %1186 = vmatprep.subr.bf16.mxu0 %v1115
  %1187 = vmatpush1.bf16.msra.mxu0 %v1114
  %1188 = vmatprep.subr.bf16.mxu0 %v1111
  %1189 = vmatpush1.bf16.msra.mxu0 %v1110
  %1190 = vmatprep.subr.bf16.mxu0 0
  %1191 = vmatpush2.bf16.msra.mxu0 0
  %1192 = vmatprep.subr.bf16.mxu0 0
  %1193 = vmatpush2.bf16.msra.mxu0 0
  %1194 = vmatprep.subr.bf16.mxu0 0
  %1195 = vmatpush2.bf16.msra.mxu0 0
  %1196 = vmatprep.subr.bf16.mxu0 0
  %1197 = vmatpush2.bf16.msra.mxu0 0
  %1198 = vmatprep.subr.bf16.mxu0 0
  %1199 = vmatpush2.bf16.msra.mxu0 0
  %1200 = vmatprep.subr.bf16.mxu0 0
  %1201 = vmatpush2.bf16.msra.mxu0 0
  %1202 = vmatprep.subr.bf16.mxu0 0
  %1203 = vmatpush2.bf16.msra.mxu0 0
  %1204 = vmatprep.subr.bf16.mxu0 0
  %1205 = vmatpush2.bf16.msra.mxu0 0
  %1206 = vmatprep.mubr.bf16.mxu0 0
  %1207 = vmatmul.mubr.bf16.gmra.mxu0 %v981
  %v1208 = vpop.f32.mrf.mxu0
  %v1209 = vadd.f32 0.0, %v1208
  %v1210 = vpop.f32.mrf.mxu0
  %v1211 = vadd.f32 0.0, %v1210
  %v1212 = vpop.f32.mrf.mxu0
  %v1213 = vpop.f32.mrf.mxu0
  %1214 = vdwg.mxu0
  %1215 = vmatprep.subr.bf16.mxu0 %v1141
  %1216 = vmatpush1.bf16.msra.mxu0 %v1140
  %1217 = vmatprep.subr.bf16.mxu0 %v1137
  %1218 = vmatpush1.bf16.msra.mxu0 %v1136
  %1219 = vmatprep.subr.bf16.mxu0 %v1133
  %1220 = vmatpush1.bf16.msra.mxu0 %v1132
  %1221 = vmatprep.subr.bf16.mxu0 %v1129
  %1222 = vmatpush1.bf16.msra.mxu0 %v1128
  %1223 = vmatprep.subr.bf16.mxu0 %v1125
  %1224 = vmatpush1.bf16.msra.mxu0 %v1124
  %1225 = vmatprep.subr.bf16.mxu0 %v1121
  %1226 = vmatpush1.bf16.msra.mxu0 %v1120
  %1227 = vmatprep.subr.bf16.mxu0 %v1117
  %1228 = vmatpush1.bf16.msra.mxu0 %v1116
  %1229 = vmatprep.subr.bf16.mxu0 %v1113
  %1230 = vmatpush1.bf16.msra.mxu0 %v1112
  %1231 = vmatprep.subr.bf16.mxu0 0
  %1232 = vmatpush2.bf16.msra.mxu0 0
  %1233 = vmatprep.subr.bf16.mxu0 0
  %1234 = vmatpush2.bf16.msra.mxu0 0
  %1235 = vmatprep.subr.bf16.mxu0 0
  %1236 = vmatpush2.bf16.msra.mxu0 0
  %1237 = vmatprep.subr.bf16.mxu0 0
  %1238 = vmatpush2.bf16.msra.mxu0 0
  %1239 = vmatprep.subr.bf16.mxu0 0
  %1240 = vmatpush2.bf16.msra.mxu0 0
  %1241 = vmatprep.subr.bf16.mxu0 0
  %1242 = vmatpush2.bf16.msra.mxu0 0
  %1243 = vmatprep.subr.bf16.mxu0 0
  %1244 = vmatpush2.bf16.msra.mxu0 0
  %1245 = vmatprep.subr.bf16.mxu0 0
  %1246 = vmatpush2.bf16.msra.mxu0 0
  %1247 = vmatprep.mubr.bf16.mxu0 0
  %1248 = vmatmul.mubr.bf16.gmra.mxu0 %v981
  %v1249 = vpop.f32.mrf.mxu0
  %v1250 = vadd.f32 0.0, %v1249
  %v1251 = vpop.f32.mrf.mxu0
  %v1252 = vadd.f32 0.0, %v1251
  %v1253 = vpop.f32.mrf.mxu0
  %v1254 = vpop.f32.mrf.mxu0
  %1255 = vdwg.mxu0
  %v1256 = vadd.f32 %v977, %v1209
  %v1257 = vadd.f32 %v978, %v1211
  %v1258 = vadd.f32 %v979, %v1250
  %v1259 = vadd.f32 %v980, %v1252
  %v1260 = vxor.u32 %v1256, 2147483648
  %v1261 = vmul.f32 %v1260, 1.442695
  %v1262 = vpow.pop %v1261
  %v1263 = vadd.f32 %v1262, 1.0
  %v1264 = vrcp.pop %v1263
  %v1265 = vmul.f32 1.0, %v1264
  %v1266 = vxor.u32 %v1257, 2147483648
  %v1267 = vmul.f32 %v1266, 1.442695
  %v1268 = vpow.pop %v1267
  %v1269 = vadd.f32 %v1268, 1.0
  %v1270 = vrcp.pop %v1269
  %v1271 = vmul.f32 1.0, %v1270
  %v1272 = vtanh.pop %v1258
  %v1273 = vxor.u32 %v1259, 2147483648
  %v1274 = vmul.f32 %v1273, 1.442695
  %v1275 = vpow.pop %v1274
  %v1276 = vadd.f32 %v1275, 1.0
  %v1277 = vrcp.pop %v1276
  %v1278 = vmul.f32 1.0, %v1277
  %v1279 = vmul.f32 %v1271, %v972
  %v1280 = vmul.f32 %v1265, %v1272
  %v1281 = vadd.f32 %v1279, %v1280
  %v1282 = vtanh.pop %v1281
  %v1283 = vmul.f32 %v1278, %v1282
  %s1284 = scalar_lea.vmem [#allocation3], 8
  %1285 = vst [vmem:[%s1284] sm:$0xff] %v1283
  %s1286 = scalar_lea.vmem [#allocation2], 64
  %v1287 = vld [vmem:[%s1286] sm:$0xff]
  %v1288 = vld [vmem:[%s1286 + $0x8] sm:$0xff]
  %v1289 = vld [vmem:[%s1286 + $0x10] sm:$0xff]
  %v1290 = vld [vmem:[%s1286 + $0x18] sm:$0xff]
  %v1291 = vpack.c.bf16 %v1283, %v1283
  %v1292 = vld [vmem:[%s4] sm:$0xff]
  %v1293 = vld [vmem:[%s4 + $0x8] sm:$0xff]
  %v1294 = vld [vmem:[%s4 + $0x10] sm:$0xff]
  %v1295 = vld [vmem:[%s4 + $0x18] sm:$0xff]
  %v1296 = vld [vmem:[%s4 + $0x20] sm:$0xff]
  %v1297 = vld [vmem:[%s4 + $0x28] sm:$0xff]
  %v1298 = vld [vmem:[%s4 + $0x30] sm:$0xff]
  %v1299 = vld [vmem:[%s4 + $0x38] sm:$0xff]
  %v1300 = vld [vmem:[%s4 + $0x40] sm:$0xff]
  %v1301 = vld [vmem:[%s4 + $0x48] sm:$0xff]
  %v1302 = vld [vmem:[%s4 + $0x50] sm:$0xff]
  %v1303 = vld [vmem:[%s4 + $0x58] sm:$0xff]
  %v1304 = vld [vmem:[%s4 + $0x60] sm:$0xff]
  %v1305 = vld [vmem:[%s4 + $0x68] sm:$0xff]
  %v1306 = vld [vmem:[%s4 + $0x70] sm:$0xff]
  %v1307 = vld [vmem:[%s4 + $0x78] sm:$0xff]
  %v1308 = vld [vmem:[%s4 + $0x80] sm:$0xff]
  %v1309 = vld [vmem:[%s4 + $0x88] sm:$0xff]
  %v1310 = vld [vmem:[%s4 + $0x90] sm:$0xff]
  %v1311 = vld [vmem:[%s4 + $0x98] sm:$0xff]
  %v1312 = vld [vmem:[%s4 + $0xa0] sm:$0xff]
  %v1313 = vld [vmem:[%s4 + $0xa8] sm:$0xff]
  %v1314 = vld [vmem:[%s4 + $0xb0] sm:$0xff]
  %v1315 = vld [vmem:[%s4 + $0xb8] sm:$0xff]
  %v1316 = vld [vmem:[%s4 + $0xc0] sm:$0xff]
  %v1317 = vld [vmem:[%s4 + $0xc8] sm:$0xff]
  %v1318 = vld [vmem:[%s4 + $0xd0] sm:$0xff]
  %v1319 = vld [vmem:[%s4 + $0xd8] sm:$0xff]
  %v1320 = vld [vmem:[%s4 + $0xe0] sm:$0xff]
  %v1321 = vld [vmem:[%s4 + $0xe8] sm:$0xff]
  %v1322 = vld [vmem:[%s4 + $0xf0] sm:$0xff]
  %v1323 = vld [vmem:[%s4 + $0xf8] sm:$0xff]
  %v1356 = vunpack.c.l.b16 %v1292
  %v1357 = vunpack.c.h.b16 %v1292
  %v1358 = vunpack.c.l.b16 %v1293
  %v1359 = vunpack.c.h.b16 %v1293
  %v1360 = vunpack.c.l.b16 %v1294
  %v1361 = vunpack.c.h.b16 %v1294
  %v1362 = vunpack.c.l.b16 %v1295
  %v1363 = vunpack.c.h.b16 %v1295
  %v1364 = vunpack.c.l.b16 %v1296
  %v1365 = vunpack.c.h.b16 %v1296
  %v1366 = vunpack.c.l.b16 %v1297
  %v1367 = vunpack.c.h.b16 %v1297
  %v1368 = vunpack.c.l.b16 %v1298
  %v1369 = vunpack.c.h.b16 %v1298
  %v1370 = vunpack.c.l.b16 %v1299
  %v1371 = vunpack.c.h.b16 %v1299
  %v1372 = vunpack.c.l.b16 %v1300
  %v1373 = vunpack.c.h.b16 %v1300
  %v1374 = vunpack.c.l.b16 %v1301
  %v1375 = vunpack.c.h.b16 %v1301
  %v1376 = vunpack.c.l.b16 %v1302
  %v1377 = vunpack.c.h.b16 %v1302
  %v1378 = vunpack.c.l.b16 %v1303
  %v1379 = vunpack.c.h.b16 %v1303
  %v1380 = vunpack.c.l.b16 %v1304
  %v1381 = vunpack.c.h.b16 %v1304
  %v1382 = vunpack.c.l.b16 %v1305
  %v1383 = vunpack.c.h.b16 %v1305
  %v1384 = vunpack.c.l.b16 %v1306
  %v1385 = vunpack.c.h.b16 %v1306
  %v1386 = vunpack.c.l.b16 %v1307
  %v1387 = vunpack.c.h.b16 %v1307
  %v1388 = vunpack.c.l.b16 %v1308
  %v1389 = vunpack.c.h.b16 %v1308
  %v1390 = vunpack.c.l.b16 %v1309
  %v1391 = vunpack.c.h.b16 %v1309
  %v1392 = vunpack.c.l.b16 %v1310
  %v1393 = vunpack.c.h.b16 %v1310
  %v1394 = vunpack.c.l.b16 %v1311
  %v1395 = vunpack.c.h.b16 %v1311
  %v1396 = vunpack.c.l.b16 %v1312
  %v1397 = vunpack.c.h.b16 %v1312
  %v1398 = vunpack.c.l.b16 %v1313
  %v1399 = vunpack.c.h.b16 %v1313
  %v1400 = vunpack.c.l.b16 %v1314
  %v1401 = vunpack.c.h.b16 %v1314
  %v1402 = vunpack.c.l.b16 %v1315
  %v1403 = vunpack.c.h.b16 %v1315
  %v1404 = vunpack.c.l.b16 %v1316
  %v1405 = vunpack.c.h.b16 %v1316
  %v1406 = vunpack.c.l.b16 %v1317
  %v1407 = vunpack.c.h.b16 %v1317
  %v1408 = vunpack.c.l.b16 %v1318
  %v1409 = vunpack.c.h.b16 %v1318
  %v1410 = vunpack.c.l.b16 %v1319
  %v1411 = vunpack.c.h.b16 %v1319
  %v1412 = vunpack.c.l.b16 %v1320
  %v1413 = vunpack.c.h.b16 %v1320
  %v1414 = vunpack.c.l.b16 %v1321
  %v1415 = vunpack.c.h.b16 %v1321
  %v1416 = vunpack.c.l.b16 %v1322
  %v1417 = vunpack.c.h.b16 %v1322
  %v1418 = vunpack.c.l.b16 %v1323
  %v1419 = vunpack.c.h.b16 %v1323
  %v1420 = vpack.c.b16 %v1360, %v1356
  %v1421 = vpack.c.b16 %v1361, %v1357
  %v1422 = vpack.c.b16 %v1362, %v1358
  %v1423 = vpack.c.b16 %v1363, %v1359
  %v1424 = vpack.c.b16 %v1368, %v1364
  %v1425 = vpack.c.b16 %v1369, %v1365
  %v1426 = vpack.c.b16 %v1370, %v1366
  %v1427 = vpack.c.b16 %v1371, %v1367
  %v1428 = vpack.c.b16 %v1376, %v1372
  %v1429 = vpack.c.b16 %v1377, %v1373
  %v1430 = vpack.c.b16 %v1378, %v1374
  %v1431 = vpack.c.b16 %v1379, %v1375
  %v1432 = vpack.c.b16 %v1384, %v1380
  %v1433 = vpack.c.b16 %v1385, %v1381
  %v1434 = vpack.c.b16 %v1386, %v1382
  %v1435 = vpack.c.b16 %v1387, %v1383
  %v1436 = vpack.c.b16 %v1392, %v1388
  %v1437 = vpack.c.b16 %v1393, %v1389
  %v1438 = vpack.c.b16 %v1394, %v1390
  %v1439 = vpack.c.b16 %v1395, %v1391
  %v1440 = vpack.c.b16 %v1400, %v1396
  %v1441 = vpack.c.b16 %v1401, %v1397
  %v1442 = vpack.c.b16 %v1402, %v1398
  %v1443 = vpack.c.b16 %v1403, %v1399
  %v1444 = vpack.c.b16 %v1408, %v1404
  %v1445 = vpack.c.b16 %v1409, %v1405
  %v1446 = vpack.c.b16 %v1410, %v1406
  %v1447 = vpack.c.b16 %v1411, %v1407
  %v1448 = vpack.c.b16 %v1416, %v1412
  %v1449 = vpack.c.b16 %v1417, %v1413
  %v1450 = vpack.c.b16 %v1418, %v1414
  %v1451 = vpack.c.b16 %v1419, %v1415
  %1484 = vmatprep.subr.bf16.mxu0 %v1449
  %1485 = vmatpush1.bf16.msra.mxu0 %v1448
  %1486 = vmatprep.subr.bf16.mxu0 %v1445
  %1487 = vmatpush1.bf16.msra.mxu0 %v1444
  %1488 = vmatprep.subr.bf16.mxu0 %v1441
  %1489 = vmatpush1.bf16.msra.mxu0 %v1440
  %1490 = vmatprep.subr.bf16.mxu0 %v1437
  %1491 = vmatpush1.bf16.msra.mxu0 %v1436
  %1492 = vmatprep.subr.bf16.mxu0 %v1433
  %1493 = vmatpush1.bf16.msra.mxu0 %v1432
  %1494 = vmatprep.subr.bf16.mxu0 %v1429
  %1495 = vmatpush1.bf16.msra.mxu0 %v1428
  %1496 = vmatprep.subr.bf16.mxu0 %v1425
  %1497 = vmatpush1.bf16.msra.mxu0 %v1424
  %1498 = vmatprep.subr.bf16.mxu0 %v1421
  %1499 = vmatpush1.bf16.msra.mxu0 %v1420
  %1500 = vmatprep.subr.bf16.mxu0 0
  %1501 = vmatpush2.bf16.msra.mxu0 0
  %1502 = vmatprep.subr.bf16.mxu0 0
  %1503 = vmatpush2.bf16.msra.mxu0 0
  %1504 = vmatprep.subr.bf16.mxu0 0
  %1505 = vmatpush2.bf16.msra.mxu0 0
  %1506 = vmatprep.subr.bf16.mxu0 0
  %1507 = vmatpush2.bf16.msra.mxu0 0
  %1508 = vmatprep.subr.bf16.mxu0 0
  %1509 = vmatpush2.bf16.msra.mxu0 0
  %1510 = vmatprep.subr.bf16.mxu0 0
  %1511 = vmatpush2.bf16.msra.mxu0 0
  %1512 = vmatprep.subr.bf16.mxu0 0
  %1513 = vmatpush2.bf16.msra.mxu0 0
  %1514 = vmatprep.subr.bf16.mxu0 0
  %1515 = vmatpush2.bf16.msra.mxu0 0
  %1516 = vmatprep.mubr.bf16.mxu0 0
  %1517 = vmatmul.mubr.bf16.gmra.mxu0 %v1291
  %v1518 = vpop.f32.mrf.mxu0
  %v1519 = vadd.f32 0.0, %v1518
  %v1520 = vpop.f32.mrf.mxu0
  %v1521 = vadd.f32 0.0, %v1520
  %v1522 = vpop.f32.mrf.mxu0
  %v1523 = vpop.f32.mrf.mxu0
  %1524 = vdwg.mxu0
  %1525 = vmatprep.subr.bf16.mxu0 %v1451
  %1526 = vmatpush1.bf16.msra.mxu0 %v1450
  %1527 = vmatprep.subr.bf16.mxu0 %v1447
  %1528 = vmatpush1.bf16.msra.mxu0 %v1446
  %1529 = vmatprep.subr.bf16.mxu0 %v1443
  %1530 = vmatpush1.bf16.msra.mxu0 %v1442
  %1531 = vmatprep.subr.bf16.mxu0 %v1439
  %1532 = vmatpush1.bf16.msra.mxu0 %v1438
  %1533 = vmatprep.subr.bf16.mxu0 %v1435
  %1534 = vmatpush1.bf16.msra.mxu0 %v1434
  %1535 = vmatprep.subr.bf16.mxu0 %v1431
  %1536 = vmatpush1.bf16.msra.mxu0 %v1430
  %1537 = vmatprep.subr.bf16.mxu0 %v1427
  %1538 = vmatpush1.bf16.msra.mxu0 %v1426
  %1539 = vmatprep.subr.bf16.mxu0 %v1423
  %1540 = vmatpush1.bf16.msra.mxu0 %v1422
  %1541 = vmatprep.subr.bf16.mxu0 0
  %1542 = vmatpush2.bf16.msra.mxu0 0
  %1543 = vmatprep.subr.bf16.mxu0 0
  %1544 = vmatpush2.bf16.msra.mxu0 0
  %1545 = vmatprep.subr.bf16.mxu0 0
  %1546 = vmatpush2.bf16.msra.mxu0 0
  %1547 = vmatprep.subr.bf16.mxu0 0
  %1548 = vmatpush2.bf16.msra.mxu0 0
  %1549 = vmatprep.subr.bf16.mxu0 0
  %1550 = vmatpush2.bf16.msra.mxu0 0
  %1551 = vmatprep.subr.bf16.mxu0 0
  %1552 = vmatpush2.bf16.msra.mxu0 0
  %1553 = vmatprep.subr.bf16.mxu0 0
  %1554 = vmatpush2.bf16.msra.mxu0 0
  %1555 = vmatprep.subr.bf16.mxu0 0
  %1556 = vmatpush2.bf16.msra.mxu0 0
  %1557 = vmatprep.mubr.bf16.mxu0 0
  %1558 = vmatmul.mubr.bf16.gmra.mxu0 %v1291
  %v1559 = vpop.f32.mrf.mxu0
  %v1560 = vadd.f32 0.0, %v1559
  %v1561 = vpop.f32.mrf.mxu0
  %v1562 = vadd.f32 0.0, %v1561
  %v1563 = vpop.f32.mrf.mxu0
  %v1564 = vpop.f32.mrf.mxu0
  %1565 = vdwg.mxu0
  %v1566 = vadd.f32 %v1287, %v1519
  %v1567 = vadd.f32 %v1288, %v1521
  %v1568 = vadd.f32 %v1289, %v1560
  %v1569 = vadd.f32 %v1290, %v1562
  %v1570 = vxor.u32 %v1566, 2147483648
  %v1571 = vmul.f32 %v1570, 1.442695
  %v1572 = vpow.pop %v1571
  %v1573 = vadd.f32 %v1572, 1.0
  %v1574 = vrcp.pop %v1573
  %v1575 = vmul.f32 1.0, %v1574
  %v1576 = vxor.u32 %v1567, 2147483648
  %v1577 = vmul.f32 %v1576, 1.442695
  %v1578 = vpow.pop %v1577
  %v1579 = vadd.f32 %v1578, 1.0
  %v1580 = vrcp.pop %v1579
  %v1581 = vmul.f32 1.0, %v1580
  %v1582 = vtanh.pop %v1568
  %v1583 = vxor.u32 %v1569, 2147483648
  %v1584 = vmul.f32 %v1583, 1.442695
  %v1585 = vpow.pop %v1584
  %v1586 = vadd.f32 %v1585, 1.0
  %v1587 = vrcp.pop %v1586
  %v1588 = vmul.f32 1.0, %v1587
  %v1589 = vmul.f32 %v1581, %v1281
  %v1590 = vmul.f32 %v1575, %v1582
  %v1591 = vadd.f32 %v1589, %v1590
  %v1592 = vtanh.pop %v1591
  %v1593 = vmul.f32 %v1588, %v1592
  %s1594 = scalar_lea.vmem [#allocation3], 16
  %1595 = vst [vmem:[%s1594] sm:$0xff] %v1593
  %s1596 = scalar_lea.vmem [#allocation2], 96
  %v1597 = vld [vmem:[%s1596] sm:$0xff]
  %v1598 = vld [vmem:[%s1596 + $0x8] sm:$0xff]
  %v1599 = vld [vmem:[%s1596 + $0x10] sm:$0xff]
  %v1600 = vld [vmem:[%s1596 + $0x18] sm:$0xff]
  %v1601 = vpack.c.bf16 %v1593, %v1593
  %v1602 = vld [vmem:[%s4] sm:$0xff]
  %v1603 = vld [vmem:[%s4 + $0x8] sm:$0xff]
  %v1604 = vld [vmem:[%s4 + $0x10] sm:$0xff]
  %v1605 = vld [vmem:[%s4 + $0x18] sm:$0xff]
  %v1606 = vld [vmem:[%s4 + $0x20] sm:$0xff]
  %v1607 = vld [vmem:[%s4 + $0x28] sm:$0xff]
  %v1608 = vld [vmem:[%s4 + $0x30] sm:$0xff]
  %v1609 = vld [vmem:[%s4 + $0x38] sm:$0xff]
  %v1610 = vld [vmem:[%s4 + $0x40] sm:$0xff]
  %v1611 = vld [vmem:[%s4 + $0x48] sm:$0xff]
  %v1612 = vld [vmem:[%s4 + $0x50] sm:$0xff]
  %v1613 = vld [vmem:[%s4 + $0x58] sm:$0xff]
  %v1614 = vld [vmem:[%s4 + $0x60] sm:$0xff]
  %v1615 = vld [vmem:[%s4 + $0x68] sm:$0xff]
  %v1616 = vld [vmem:[%s4 + $0x70] sm:$0xff]
  %v1617 = vld [vmem:[%s4 + $0x78] sm:$0xff]
  %v1618 = vld [vmem:[%s4 + $0x80] sm:$0xff]
  %v1619 = vld [vmem:[%s4 + $0x88] sm:$0xff]
  %v1620 = vld [vmem:[%s4 + $0x90] sm:$0xff]
  %v1621 = vld [vmem:[%s4 + $0x98] sm:$0xff]
  %v1622 = vld [vmem:[%s4 + $0xa0] sm:$0xff]
  %v1623 = vld [vmem:[%s4 + $0xa8] sm:$0xff]
  %v1624 = vld [vmem:[%s4 + $0xb0] sm:$0xff]
  %v1625 = vld [vmem:[%s4 + $0xb8] sm:$0xff]
  %v1626 = vld [vmem:[%s4 + $0xc0] sm:$0xff]
  %v1627 = vld [vmem:[%s4 + $0xc8] sm:$0xff]
  %v1628 = vld [vmem:[%s4 + $0xd0] sm:$0xff]
  %v1629 = vld [vmem:[%s4 + $0xd8] sm:$0xff]
  %v1630 = vld [vmem:[%s4 + $0xe0] sm:$0xff]
  %v1631 = vld [vmem:[%s4 + $0xe8] sm:$0xff]
  %v1632 = vld [vmem:[%s4 + $0xf0] sm:$0xff]
  %v1633 = vld [vmem:[%s4 + $0xf8] sm:$0xff]
  %v1666 = vunpack.c.l.b16 %v1602
  %v1667 = vunpack.c.h.b16 %v1602
  %v1668 = vunpack.c.l.b16 %v1603
  %v1669 = vunpack.c.h.b16 %v1603
  %v1670 = vunpack.c.l.b16 %v1604
  %v1671 = vunpack.c.h.b16 %v1604
  %v1672 = vunpack.c.l.b16 %v1605
  %v1673 = vunpack.c.h.b16 %v1605
  %v1674 = vunpack.c.l.b16 %v1606
  %v1675 = vunpack.c.h.b16 %v1606
  %v1676 = vunpack.c.l.b16 %v1607
  %v1677 = vunpack.c.h.b16 %v1607
  %v1678 = vunpack.c.l.b16 %v1608
  %v1679 = vunpack.c.h.b16 %v1608
  %v1680 = vunpack.c.l.b16 %v1609
  %v1681 = vunpack.c.h.b16 %v1609
  %v1682 = vunpack.c.l.b16 %v1610
  %v1683 = vunpack.c.h.b16 %v1610
  %v1684 = vunpack.c.l.b16 %v1611
  %v1685 = vunpack.c.h.b16 %v1611
  %v1686 = vunpack.c.l.b16 %v1612
  %v1687 = vunpack.c.h.b16 %v1612
  %v1688 = vunpack.c.l.b16 %v1613
  %v1689 = vunpack.c.h.b16 %v1613
  %v1690 = vunpack.c.l.b16 %v1614
  %v1691 = vunpack.c.h.b16 %v1614
  %v1692 = vunpack.c.l.b16 %v1615
  %v1693 = vunpack.c.h.b16 %v1615
  %v1694 = vunpack.c.l.b16 %v1616
  %v1695 = vunpack.c.h.b16 %v1616
  %v1696 = vunpack.c.l.b16 %v1617
  %v1697 = vunpack.c.h.b16 %v1617
  %v1698 = vunpack.c.l.b16 %v1618
  %v1699 = vunpack.c.h.b16 %v1618
  %v1700 = vunpack.c.l.b16 %v1619
  %v1701 = vunpack.c.h.b16 %v1619
  %v1702 = vunpack.c.l.b16 %v1620
  %v1703 = vunpack.c.h.b16 %v1620
  %v1704 = vunpack.c.l.b16 %v1621
  %v1705 = vunpack.c.h.b16 %v1621
  %v1706 = vunpack.c.l.b16 %v1622
  %v1707 = vunpack.c.h.b16 %v1622
  %v1708 = vunpack.c.l.b16 %v1623
  %v1709 = vunpack.c.h.b16 %v1623
  %v1710 = vunpack.c.l.b16 %v1624
  %v1711 = vunpack.c.h.b16 %v1624
  %v1712 = vunpack.c.l.b16 %v1625
  %v1713 = vunpack.c.h.b16 %v1625
  %v1714 = vunpack.c.l.b16 %v1626
  %v1715 = vunpack.c.h.b16 %v1626
  %v1716 = vunpack.c.l.b16 %v1627
  %v1717 = vunpack.c.h.b16 %v1627
  %v1718 = vunpack.c.l.b16 %v1628
  %v1719 = vunpack.c.h.b16 %v1628
  %v1720 = vunpack.c.l.b16 %v1629
  %v1721 = vunpack.c.h.b16 %v1629
  %v1722 = vunpack.c.l.b16 %v1630
  %v1723 = vunpack.c.h.b16 %v1630
  %v1724 = vunpack.c.l.b16 %v1631
  %v1725 = vunpack.c.h.b16 %v1631
  %v1726 = vunpack.c.l.b16 %v1632
  %v1727 = vunpack.c.h.b16 %v1632
  %v1728 = vunpack.c.l.b16 %v1633
  %v1729 = vunpack.c.h.b16 %v1633
  %v1730 = vpack.c.b16 %v1670, %v1666
  %v1731 = vpack.c.b16 %v1671, %v1667
  %v1732 = vpack.c.b16 %v1672, %v1668
  %v1733 = vpack.c.b16 %v1673, %v1669
  %v1734 = vpack.c.b16 %v1678, %v1674
  %v1735 = vpack.c.b16 %v1679, %v1675
  %v1736 = vpack.c.b16 %v1680, %v1676
  %v1737 = vpack.c.b16 %v1681, %v1677
  %v1738 = vpack.c.b16 %v1686, %v1682
  %v1739 = vpack.c.b16 %v1687, %v1683
  %v1740 = vpack.c.b16 %v1688, %v1684
  %v1741 = vpack.c.b16 %v1689, %v1685
  %v1742 = vpack.c.b16 %v1694, %v1690
  %v1743 = vpack.c.b16 %v1695, %v1691
  %v1744 = vpack.c.b16 %v1696, %v1692
  %v1745 = vpack.c.b16 %v1697, %v1693
  %v1746 = vpack.c.b16 %v1702, %v1698
  %v1747 = vpack.c.b16 %v1703, %v1699
  %v1748 = vpack.c.b16 %v1704, %v1700
  %v1749 = vpack.c.b16 %v1705, %v1701
  %v1750 = vpack.c.b16 %v1710, %v1706
  %v1751 = vpack.c.b16 %v1711, %v1707
  %v1752 = vpack.c.b16 %v1712, %v1708
  %v1753 = vpack.c.b16 %v1713, %v1709
  %v1754 = vpack.c.b16 %v1718, %v1714
  %v1755 = vpack.c.b16 %v1719, %v1715
  %v1756 = vpack.c.b16 %v1720, %v1716
  %v1757 = vpack.c.b16 %v1721, %v1717
  %v1758 = vpack.c.b16 %v1726, %v1722
  %v1759 = vpack.c.b16 %v1727, %v1723
  %v1760 = vpack.c.b16 %v1728, %v1724
  %v1761 = vpack.c.b16 %v1729, %v1725
  %1794 = vmatprep.subr.bf16.mxu0 %v1759
  %1795 = vmatpush1.bf16.msra.mxu0 %v1758
  %1796 = vmatprep.subr.bf16.mxu0 %v1755
  %1797 = vmatpush1.bf16.msra.mxu0 %v1754
  %1798 = vmatprep.subr.bf16.mxu0 %v1751
  %1799 = vmatpush1.bf16.msra.mxu0 %v1750
  %1800 = vmatprep.subr.bf16.mxu0 %v1747
  %1801 = vmatpush1.bf16.msra.mxu0 %v1746
  %1802 = vmatprep.subr.bf16.mxu0 %v1743
  %1803 = vmatpush1.bf16.msra.mxu0 %v1742
  %1804 = vmatprep.subr.bf16.mxu0 %v1739
  %1805 = vmatpush1.bf16.msra.mxu0 %v1738
  %1806 = vmatprep.subr.bf16.mxu0 %v1735
  %1807 = vmatpush1.bf16.msra.mxu0 %v1734
  %1808 = vmatprep.subr.bf16.mxu0 %v1731
  %1809 = vmatpush1.bf16.msra.mxu0 %v1730
  %1810 = vmatprep.subr.bf16.mxu0 0
  %1811 = vmatpush2.bf16.msra.mxu0 0
  %1812 = vmatprep.subr.bf16.mxu0 0
  %1813 = vmatpush2.bf16.msra.mxu0 0
  %1814 = vmatprep.subr.bf16.mxu0 0
  %1815 = vmatpush2.bf16.msra.mxu0 0
  %1816 = vmatprep.subr.bf16.mxu0 0
  %1817 = vmatpush2.bf16.msra.mxu0 0
  %1818 = vmatprep.subr.bf16.mxu0 0
  %1819 = vmatpush2.bf16.msra.mxu0 0
  %1820 = vmatprep.subr.bf16.mxu0 0
  %1821 = vmatpush2.bf16.msra.mxu0 0
  %1822 = vmatprep.subr.bf16.mxu0 0
  %1823 = vmatpush2.bf16.msra.mxu0 0
  %1824 = vmatprep.subr.bf16.mxu0 0
  %1825 = vmatpush2.bf16.msra.mxu0 0
  %1826 = vmatprep.mubr.bf16.mxu0 0
  %1827 = vmatmul.mubr.bf16.gmra.mxu0 %v1601
  %v1828 = vpop.f32.mrf.mxu0
  %v1829 = vadd.f32 0.0, %v1828
  %v1830 = vpop.f32.mrf.mxu0
  %v1831 = vadd.f32 0.0, %v1830
  %v1832 = vpop.f32.mrf.mxu0
  %v1833 = vpop.f32.mrf.mxu0
  %1834 = vdwg.mxu0
  %1835 = vmatprep.subr.bf16.mxu0 %v1761
  %1836 = vmatpush1.bf16.msra.mxu0 %v1760
  %1837 = vmatprep.subr.bf16.mxu0 %v1757
  %1838 = vmatpush1.bf16.msra.mxu0 %v1756
  %1839 = vmatprep.subr.bf16.mxu0 %v1753
  %1840 = vmatpush1.bf16.msra.mxu0 %v1752
  %1841 = vmatprep.subr.bf16.mxu0 %v1749
  %1842 = vmatpush1.bf16.msra.mxu0 %v1748
  %1843 = vmatprep.subr.bf16.mxu0 %v1745
  %1844 = vmatpush1.bf16.msra.mxu0 %v1744
  %1845 = vmatprep.subr.bf16.mxu0 %v1741
  %1846 = vmatpush1.bf16.msra.mxu0 %v1740
  %1847 = vmatprep.subr.bf16.mxu0 %v1737
  %1848 = vmatpush1.bf16.msra.mxu0 %v1736
  %1849 = vmatprep.subr.bf16.mxu0 %v1733
  %1850 = vmatpush1.bf16.msra.mxu0 %v1732
  %1851 = vmatprep.subr.bf16.mxu0 0
  %1852 = vmatpush2.bf16.msra.mxu0 0
  %1853 = vmatprep.subr.bf16.mxu0 0
  %1854 = vmatpush2.bf16.msra.mxu0 0
  %1855 = vmatprep.subr.bf16.mxu0 0
  %1856 = vmatpush2.bf16.msra.mxu0 0
  %1857 = vmatprep.subr.bf16.mxu0 0
  %1858 = vmatpush2.bf16.msra.mxu0 0
  %1859 = vmatprep.subr.bf16.mxu0 0
  %1860 = vmatpush2.bf16.msra.mxu0 0
  %1861 = vmatprep.subr.bf16.mxu0 0
  %1862 = vmatpush2.bf16.msra.mxu0 0
  %1863 = vmatprep.subr.bf16.mxu0 0
  %1864 = vmatpush2.bf16.msra.mxu0 0
  %1865 = vmatprep.subr.bf16.mxu0 0
  %1866 = vmatpush2.bf16.msra.mxu0 0
  %1867 = vmatprep.mubr.bf16.mxu0 0
  %1868 = vmatmul.mubr.bf16.gmra.mxu0 %v1601
  %v1869 = vpop.f32.mrf.mxu0
  %v1870 = vadd.f32 0.0, %v1869
  %v1871 = vpop.f32.mrf.mxu0
  %v1872 = vadd.f32 0.0, %v1871
  %v1873 = vpop.f32.mrf.mxu0
  %v1874 = vpop.f32.mrf.mxu0
  %1875 = vdwg.mxu0
  %v1876 = vadd.f32 %v1597, %v1829
  %v1877 = vadd.f32 %v1598, %v1831
  %v1878 = vadd.f32 %v1599, %v1870
  %v1879 = vadd.f32 %v1600, %v1872
  %v1880 = vxor.u32 %v1876, 2147483648
  %v1881 = vmul.f32 %v1880, 1.442695
  %v1882 = vpow.pop %v1881
  %v1883 = vadd.f32 %v1882, 1.0
  %v1884 = vrcp.pop %v1883
  %v1885 = vmul.f32 1.0, %v1884
  %v1886 = vxor.u32 %v1877, 2147483648
  %v1887 = vmul.f32 %v1886, 1.442695
  %v1888 = vpow.pop %v1887
  %v1889 = vadd.f32 %v1888, 1.0
  %v1890 = vrcp.pop %v1889
  %v1891 = vmul.f32 1.0, %v1890
  %v1892 = vtanh.pop %v1878
  %v1893 = vxor.u32 %v1879, 2147483648
  %v1894 = vmul.f32 %v1893, 1.442695
  %v1895 = vpow.pop %v1894
  %v1896 = vadd.f32 %v1895, 1.0
  %v1897 = vrcp.pop %v1896
  %v1898 = vmul.f32 1.0, %v1897
  %v1899 = vmul.f32 %v1891, %v1591
  %v1900 = vmul.f32 %v1885, %v1892
  %v1901 = vadd.f32 %v1899, %v1900
  %v1902 = vtanh.pop %v1901
  %v1903 = vmul.f32 %v1898, %v1902
  %s1904 = scalar_lea.vmem [#allocation3], 24
  %1905 = vst [vmem:[%s1904] sm:$0xff] %v1903
  %s1906 = scalar_lea.vmem [#allocation2], 128
  %v1907 = vld [vmem:[%s1906] sm:$0xff]
  %v1908 = vld [vmem:[%s1906 + $0x8] sm:$0xff]
  %v1909 = vld [vmem:[%s1906 + $0x10] sm:$0xff]
  %v1910 = vld [vmem:[%s1906 + $0x18] sm:$0xff]
  %v1911 = vpack.c.bf16 %v1903, %v1903
  %v1912 = vld [vmem:[%s4] sm:$0xff]
  %v1913 = vld [vmem:[%s4 + $0x8] sm:$0xff]
  %v1914 = vld [vmem:[%s4 + $0x10] sm:$0xff]
  %v1915 = vld [vmem:[%s4 + $0x18] sm:$0xff]
  %v1916 = vld [vmem:[%s4 + $0x20] sm:$0xff]
  %v1917 = vld [vmem:[%s4 + $0x28] sm:$0xff]
  %v1918 = vld [vmem:[%s4 + $0x30] sm:$0xff]
  %v1919 = vld [vmem:[%s4 + $0x38] sm:$0xff]
  %v1920 = vld [vmem:[%s4 + $0x40] sm:$0xff]
  %v1921 = vld [vmem:[%s4 + $0x48] sm:$0xff]
  %v1922 = vld [vmem:[%s4 + $0x50] sm:$0xff]
  %v1923 = vld [vmem:[%s4 + $0x58] sm:$0xff]
  %v1924 = vld [vmem:[%s4 + $0x60] sm:$0xff]
  %v1925 = vld [vmem:[%s4 + $0x68] sm:$0xff]
  %v1926 = vld [vmem:[%s4 + $0x70] sm:$0xff]
  %v1927 = vld [vmem:[%s4 + $0x78] sm:$0xff]
  %v1928 = vld [vmem:[%s4 + $0x80] sm:$0xff]
  %v1929 = vld [vmem:[%s4 + $0x88] sm:$0xff]
  %v1930 = vld [vmem:[%s4 + $0x90] sm:$0xff]
  %v1931 = vld [vmem:[%s4 + $0x98] sm:$0xff]
  %v1932 = vld [vmem:[%s4 + $0xa0] sm:$0xff]
  %v1933 = vld [vmem:[%s4 + $0xa8] sm:$0xff]
  %v1934 = vld [vmem:[%s4 + $0xb0] sm:$0xff]
  %v1935 = vld [vmem:[%s4 + $0xb8] sm:$0xff]
  %v1936 = vld [vmem:[%s4 + $0xc0] sm:$0xff]
  %v1937 = vld [vmem:[%s4 + $0xc8] sm:$0xff]
  %v1938 = vld [vmem:[%s4 + $0xd0] sm:$0xff]
  %v1939 = vld [vmem:[%s4 + $0xd8] sm:$0xff]
  %v1940 = vld [vmem:[%s4 + $0xe0] sm:$0xff]
  %v1941 = vld [vmem:[%s4 + $0xe8] sm:$0xff]
  %v1942 = vld [vmem:[%s4 + $0xf0] sm:$0xff]
  %v1943 = vld [vmem:[%s4 + $0xf8] sm:$0xff]
  %v1976 = vunpack.c.l.b16 %v1912
  %v1977 = vunpack.c.h.b16 %v1912
  %v1978 = vunpack.c.l.b16 %v1913
  %v1979 = vunpack.c.h.b16 %v1913
  %v1980 = vunpack.c.l.b16 %v1914
  %v1981 = vunpack.c.h.b16 %v1914
  %v1982 = vunpack.c.l.b16 %v1915
  %v1983 = vunpack.c.h.b16 %v1915
  %v1984 = vunpack.c.l.b16 %v1916
  %v1985 = vunpack.c.h.b16 %v1916
  %v1986 = vunpack.c.l.b16 %v1917
  %v1987 = vunpack.c.h.b16 %v1917
  %v1988 = vunpack.c.l.b16 %v1918
  %v1989 = vunpack.c.h.b16 %v1918
  %v1990 = vunpack.c.l.b16 %v1919
  %v1991 = vunpack.c.h.b16 %v1919
  %v1992 = vunpack.c.l.b16 %v1920
  %v1993 = vunpack.c.h.b16 %v1920
  %v1994 = vunpack.c.l.b16 %v1921
  %v1995 = vunpack.c.h.b16 %v1921
  %v1996 = vunpack.c.l.b16 %v1922
  %v1997 = vunpack.c.h.b16 %v1922
  %v1998 = vunpack.c.l.b16 %v1923
  %v1999 = vunpack.c.h.b16 %v1923
  %v2000 = vunpack.c.l.b16 %v1924
  %v2001 = vunpack.c.h.b16 %v1924
  %v2002 = vunpack.c.l.b16 %v1925
  %v2003 = vunpack.c.h.b16 %v1925
  %v2004 = vunpack.c.l.b16 %v1926
  %v2005 = vunpack.c.h.b16 %v1926
  %v2006 = vunpack.c.l.b16 %v1927
  %v2007 = vunpack.c.h.b16 %v1927
  %v2008 = vunpack.c.l.b16 %v1928
  %v2009 = vunpack.c.h.b16 %v1928
  %v2010 = vunpack.c.l.b16 %v1929
  %v2011 = vunpack.c.h.b16 %v1929
  %v2012 = vunpack.c.l.b16 %v1930
  %v2013 = vunpack.c.h.b16 %v1930
  %v2014 = vunpack.c.l.b16 %v1931
  %v2015 = vunpack.c.h.b16 %v1931
  %v2016 = vunpack.c.l.b16 %v1932
  %v2017 = vunpack.c.h.b16 %v1932
  %v2018 = vunpack.c.l.b16 %v1933
  %v2019 = vunpack.c.h.b16 %v1933
  %v2020 = vunpack.c.l.b16 %v1934
  %v2021 = vunpack.c.h.b16 %v1934
  %v2022 = vunpack.c.l.b16 %v1935
  %v2023 = vunpack.c.h.b16 %v1935
  %v2024 = vunpack.c.l.b16 %v1936
  %v2025 = vunpack.c.h.b16 %v1936
  %v2026 = vunpack.c.l.b16 %v1937
  %v2027 = vunpack.c.h.b16 %v1937
  %v2028 = vunpack.c.l.b16 %v1938
  %v2029 = vunpack.c.h.b16 %v1938
  %v2030 = vunpack.c.l.b16 %v1939
  %v2031 = vunpack.c.h.b16 %v1939
  %v2032 = vunpack.c.l.b16 %v1940
  %v2033 = vunpack.c.h.b16 %v1940
  %v2034 = vunpack.c.l.b16 %v1941
  %v2035 = vunpack.c.h.b16 %v1941
  %v2036 = vunpack.c.l.b16 %v1942
  %v2037 = vunpack.c.h.b16 %v1942
  %v2038 = vunpack.c.l.b16 %v1943
  %v2039 = vunpack.c.h.b16 %v1943
  %v2040 = vpack.c.b16 %v1980, %v1976
  %v2041 = vpack.c.b16 %v1981, %v1977
  %v2042 = vpack.c.b16 %v1982, %v1978
  %v2043 = vpack.c.b16 %v1983, %v1979
  %v2044 = vpack.c.b16 %v1988, %v1984
  %v2045 = vpack.c.b16 %v1989, %v1985
  %v2046 = vpack.c.b16 %v1990, %v1986
  %v2047 = vpack.c.b16 %v1991, %v1987
  %v2048 = vpack.c.b16 %v1996, %v1992
  %v2049 = vpack.c.b16 %v1997, %v1993
  %v2050 = vpack.c.b16 %v1998, %v1994
  %v2051 = vpack.c.b16 %v1999, %v1995
  %v2052 = vpack.c.b16 %v2004, %v2000
  %v2053 = vpack.c.b16 %v2005, %v2001
  %v2054 = vpack.c.b16 %v2006, %v2002
  %v2055 = vpack.c.b16 %v2007, %v2003
  %v2056 = vpack.c.b16 %v2012, %v2008
  %v2057 = vpack.c.b16 %v2013, %v2009
  %v2058 = vpack.c.b16 %v2014, %v2010
  %v2059 = vpack.c.b16 %v2015, %v2011
  %v2060 = vpack.c.b16 %v2020, %v2016
  %v2061 = vpack.c.b16 %v2021, %v2017
  %v2062 = vpack.c.b16 %v2022, %v2018
  %v2063 = vpack.c.b16 %v2023, %v2019
  %v2064 = vpack.c.b16 %v2028, %v2024
  %v2065 = vpack.c.b16 %v2029, %v2025
  %v2066 = vpack.c.b16 %v2030, %v2026
  %v2067 = vpack.c.b16 %v2031, %v2027
  %v2068 = vpack.c.b16 %v2036, %v2032
  %v2069 = vpack.c.b16 %v2037, %v2033
  %v2070 = vpack.c.b16 %v2038, %v2034
  %v2071 = vpack.c.b16 %v2039, %v2035
  %2104 = vmatprep.subr.bf16.mxu0 %v2069
  %2105 = vmatpush1.bf16.msra.mxu0 %v2068
  %2106 = vmatprep.subr.bf16.mxu0 %v2065
  %2107 = vmatpush1.bf16.msra.mxu0 %v2064
  %2108 = vmatprep.subr.bf16.mxu0 %v2061
  %2109 = vmatpush1.bf16.msra.mxu0 %v2060
  %2110 = vmatprep.subr.bf16.mxu0 %v2057
  %2111 = vmatpush1.bf16.msra.mxu0 %v2056
  %2112 = vmatprep.subr.bf16.mxu0 %v2053
  %2113 = vmatpush1.bf16.msra.mxu0 %v2052
  %2114 = vmatprep.subr.bf16.mxu0 %v2049
  %2115 = vmatpush1.bf16.msra.mxu0 %v2048
  %2116 = vmatprep.subr.bf16.mxu0 %v2045
  %2117 = vmatpush1.bf16.msra.mxu0 %v2044
  %2118 = vmatprep.subr.bf16.mxu0 %v2041
  %2119 = vmatpush1.bf16.msra.mxu0 %v2040
  %2120 = vmatprep.subr.bf16.mxu0 0
  %2121 = vmatpush2.bf16.msra.mxu0 0
  %2122 = vmatprep.subr.bf16.mxu0 0
  %2123 = vmatpush2.bf16.msra.mxu0 0
  %2124 = vmatprep.subr.bf16.mxu0 0
  %2125 = vmatpush2.bf16.msra.mxu0 0
  %2126 = vmatprep.subr.bf16.mxu0 0
  %2127 = vmatpush2.bf16.msra.mxu0 0
  %2128 = vmatprep.subr.bf16.mxu0 0
  %2129 = vmatpush2.bf16.msra.mxu0 0
  %2130 = vmatprep.subr.bf16.mxu0 0
  %2131 = vmatpush2.bf16.msra.mxu0 0
  %2132 = vmatprep.subr.bf16.mxu0 0
  %2133 = vmatpush2.bf16.msra.mxu0 0
  %2134 = vmatprep.subr.bf16.mxu0 0
  %2135 = vmatpush2.bf16.msra.mxu0 0
  %2136 = vmatprep.mubr.bf16.mxu0 0
  %2137 = vmatmul.mubr.bf16.gmra.mxu0 %v1911
  %v2138 = vpop.f32.mrf.mxu0
  %v2139 = vadd.f32 0.0, %v2138
  %v2140 = vpop.f32.mrf.mxu0
  %v2141 = vadd.f32 0.0, %v2140
  %v2142 = vpop.f32.mrf.mxu0
  %v2143 = vpop.f32.mrf.mxu0
  %2144 = vdwg.mxu0
  %2145 = vmatprep.subr.bf16.mxu0 %v2071
  %2146 = vmatpush1.bf16.msra.mxu0 %v2070
  %2147 = vmatprep.subr.bf16.mxu0 %v2067
  %2148 = vmatpush1.bf16.msra.mxu0 %v2066
  %2149 = vmatprep.subr.bf16.mxu0 %v2063
  %2150 = vmatpush1.bf16.msra.mxu0 %v2062
  %2151 = vmatprep.subr.bf16.mxu0 %v2059
  %2152 = vmatpush1.bf16.msra.mxu0 %v2058
  %2153 = vmatprep.subr.bf16.mxu0 %v2055
  %2154 = vmatpush1.bf16.msra.mxu0 %v2054
  %2155 = vmatprep.subr.bf16.mxu0 %v2051
  %2156 = vmatpush1.bf16.msra.mxu0 %v2050
  %2157 = vmatprep.subr.bf16.mxu0 %v2047
  %2158 = vmatpush1.bf16.msra.mxu0 %v2046
  %2159 = vmatprep.subr.bf16.mxu0 %v2043
  %2160 = vmatpush1.bf16.msra.mxu0 %v2042
  %2161 = vmatprep.subr.bf16.mxu0 0
  %2162 = vmatpush2.bf16.msra.mxu0 0
  %2163 = vmatprep.subr.bf16.mxu0 0
  %2164 = vmatpush2.bf16.msra.mxu0 0
  %2165 = vmatprep.subr.bf16.mxu0 0
  %2166 = vmatpush2.bf16.msra.mxu0 0
  %2167 = vmatprep.subr.bf16.mxu0 0
  %2168 = vmatpush2.bf16.msra.mxu0 0
  %2169 = vmatprep.subr.bf16.mxu0 0
  %2170 = vmatpush2.bf16.msra.mxu0 0
  %2171 = vmatprep.subr.bf16.mxu0 0
  %2172 = vmatpush2.bf16.msra.mxu0 0
  %2173 = vmatprep.subr.bf16.mxu0 0
  %2174 = vmatpush2.bf16.msra.mxu0 0
  %2175 = vmatprep.subr.bf16.mxu0 0
  %2176 = vmatpush2.bf16.msra.mxu0 0
  %2177 = vmatprep.mubr.bf16.mxu0 0
  %2178 = vmatmul.mubr.bf16.gmra.mxu0 %v1911
  %v2179 = vpop.f32.mrf.mxu0
  %v2180 = vadd.f32 0.0, %v2179
  %v2181 = vpop.f32.mrf.mxu0
  %v2182 = vadd.f32 0.0, %v2181
  %v2183 = vpop.f32.mrf.mxu0
  %v2184 = vpop.f32.mrf.mxu0
  %2185 = vdwg.mxu0
  %v2186 = vadd.f32 %v1907, %v2139
  %v2187 = vadd.f32 %v1908, %v2141
  %v2188 = vadd.f32 %v1909, %v2180
  %v2189 = vadd.f32 %v1910, %v2182
  %v2190 = vxor.u32 %v2186, 2147483648
  %v2191 = vmul.f32 %v2190, 1.442695
  %v2192 = vpow.pop %v2191
  %v2193 = vadd.f32 %v2192, 1.0
  %v2194 = vrcp.pop %v2193
  %v2195 = vmul.f32 1.0, %v2194
  %v2196 = vxor.u32 %v2187, 2147483648
  %v2197 = vmul.f32 %v2196, 1.442695
  %v2198 = vpow.pop %v2197
  %v2199 = vadd.f32 %v2198, 1.0
  %v2200 = vrcp.pop %v2199
  %v2201 = vmul.f32 1.0, %v2200
  %v2202 = vtanh.pop %v2188
  %v2203 = vxor.u32 %v2189, 2147483648
  %v2204 = vmul.f32 %v2203, 1.442695
  %v2205 = vpow.pop %v2204
  %v2206 = vadd.f32 %v2205, 1.0
  %v2207 = vrcp.pop %v2206
  %v2208 = vmul.f32 1.0, %v2207
  %v2209 = vmul.f32 %v2201, %v1901
  %v2210 = vmul.f32 %v2195, %v2202
  %v2211 = vadd.f32 %v2209, %v2210
  %v2212 = vtanh.pop %v2211
  %v2213 = vmul.f32 %v2208, %v2212
  %s2214 = scalar_lea.vmem [#allocation3], 32
  %2215 = vst [vmem:[%s2214] sm:$0xff] %v2213
  %s2216 = scalar_lea.vmem [#allocation2], 160
  %v2217 = vld [vmem:[%s2216] sm:$0xff]
  %v2218 = vld [vmem:[%s2216 + $0x8] sm:$0xff]
  %v2219 = vld [vmem:[%s2216 + $0x10] sm:$0xff]
  %v2220 = vld [vmem:[%s2216 + $0x18] sm:$0xff]
  %v2221 = vpack.c.bf16 %v2213, %v2213
  %v2222 = vld [vmem:[%s4] sm:$0xff]
  %v2223 = vld [vmem:[%s4 + $0x8] sm:$0xff]
  %v2224 = vld [vmem:[%s4 + $0x10] sm:$0xff]
  %v2225 = vld [vmem:[%s4 + $0x18] sm:$0xff]
  %v2226 = vld [vmem:[%s4 + $0x20] sm:$0xff]
  %v2227 = vld [vmem:[%s4 + $0x28] sm:$0xff]
  %v2228 = vld [vmem:[%s4 + $0x30] sm:$0xff]
  %v2229 = vld [vmem:[%s4 + $0x38] sm:$0xff]
  %v2230 = vld [vmem:[%s4 + $0x40] sm:$0xff]
  %v2231 = vld [vmem:[%s4 + $0x48] sm:$0xff]
  %v2232 = vld [vmem:[%s4 + $0x50] sm:$0xff]
  %v2233 = vld [vmem:[%s4 + $0x58] sm:$0xff]
  %v2234 = vld [vmem:[%s4 + $0x60] sm:$0xff]
  %v2235 = vld [vmem:[%s4 + $0x68] sm:$0xff]
  %v2236 = vld [vmem:[%s4 + $0x70] sm:$0xff]
  %v2237 = vld [vmem:[%s4 + $0x78] sm:$0xff]
  %v2238 = vld [vmem:[%s4 + $0x80] sm:$0xff]
  %v2239 = vld [vmem:[%s4 + $0x88] sm:$0xff]
  %v2240 = vld [vmem:[%s4 + $0x90] sm:$0xff]
  %v2241 = vld [vmem:[%s4 + $0x98] sm:$0xff]
  %v2242 = vld [vmem:[%s4 + $0xa0] sm:$0xff]
  %v2243 = vld [vmem:[%s4 + $0xa8] sm:$0xff]
  %v2244 = vld [vmem:[%s4 + $0xb0] sm:$0xff]
  %v2245 = vld [vmem:[%s4 + $0xb8] sm:$0xff]
  %v2246 = vld [vmem:[%s4 + $0xc0] sm:$0xff]
  %v2247 = vld [vmem:[%s4 + $0xc8] sm:$0xff]
  %v2248 = vld [vmem:[%s4 + $0xd0] sm:$0xff]
  %v2249 = vld [vmem:[%s4 + $0xd8] sm:$0xff]
  %v2250 = vld [vmem:[%s4 + $0xe0] sm:$0xff]
  %v2251 = vld [vmem:[%s4 + $0xe8] sm:$0xff]
  %v2252 = vld [vmem:[%s4 + $0xf0] sm:$0xff]
  %v2253 = vld [vmem:[%s4 + $0xf8] sm:$0xff]
  %v2286 = vunpack.c.l.b16 %v2222
  %v2287 = vunpack.c.h.b16 %v2222
  %v2288 = vunpack.c.l.b16 %v2223
  %v2289 = vunpack.c.h.b16 %v2223
  %v2290 = vunpack.c.l.b16 %v2224
  %v2291 = vunpack.c.h.b16 %v2224
  %v2292 = vunpack.c.l.b16 %v2225
  %v2293 = vunpack.c.h.b16 %v2225
  %v2294 = vunpack.c.l.b16 %v2226
  %v2295 = vunpack.c.h.b16 %v2226
  %v2296 = vunpack.c.l.b16 %v2227
  %v2297 = vunpack.c.h.b16 %v2227
  %v2298 = vunpack.c.l.b16 %v2228
  %v2299 = vunpack.c.h.b16 %v2228
  %v2300 = vunpack.c.l.b16 %v2229
  %v2301 = vunpack.c.h.b16 %v2229
  %v2302 = vunpack.c.l.b16 %v2230
  %v2303 = vunpack.c.h.b16 %v2230
  %v2304 = vunpack.c.l.b16 %v2231
  %v2305 = vunpack.c.h.b16 %v2231
  %v2306 = vunpack.c.l.b16 %v2232
  %v2307 = vunpack.c.h.b16 %v2232
  %v2308 = vunpack.c.l.b16 %v2233
  %v2309 = vunpack.c.h.b16 %v2233
  %v2310 = vunpack.c.l.b16 %v2234
  %v2311 = vunpack.c.h.b16 %v2234
  %v2312 = vunpack.c.l.b16 %v2235
  %v2313 = vunpack.c.h.b16 %v2235
  %v2314 = vunpack.c.l.b16 %v2236
  %v2315 = vunpack.c.h.b16 %v2236
  %v2316 = vunpack.c.l.b16 %v2237
  %v2317 = vunpack.c.h.b16 %v2237
  %v2318 = vunpack.c.l.b16 %v2238
  %v2319 = vunpack.c.h.b16 %v2238
  %v2320 = vunpack.c.l.b16 %v2239
  %v2321 = vunpack.c.h.b16 %v2239
  %v2322 = vunpack.c.l.b16 %v2240
  %v2323 = vunpack.c.h.b16 %v2240
  %v2324 = vunpack.c.l.b16 %v2241
  %v2325 = vunpack.c.h.b16 %v2241
  %v2326 = vunpack.c.l.b16 %v2242
  %v2327 = vunpack.c.h.b16 %v2242
  %v2328 = vunpack.c.l.b16 %v2243
  %v2329 = vunpack.c.h.b16 %v2243
  %v2330 = vunpack.c.l.b16 %v2244
  %v2331 = vunpack.c.h.b16 %v2244
  %v2332 = vunpack.c.l.b16 %v2245
  %v2333 = vunpack.c.h.b16 %v2245
  %v2334 = vunpack.c.l.b16 %v2246
  %v2335 = vunpack.c.h.b16 %v2246
  %v2336 = vunpack.c.l.b16 %v2247
  %v2337 = vunpack.c.h.b16 %v2247
  %v2338 = vunpack.c.l.b16 %v2248
  %v2339 = vunpack.c.h.b16 %v2248
  %v2340 = vunpack.c.l.b16 %v2249
  %v2341 = vunpack.c.h.b16 %v2249
  %v2342 = vunpack.c.l.b16 %v2250
  %v2343 = vunpack.c.h.b16 %v2250
  %v2344 = vunpack.c.l.b16 %v2251
  %v2345 = vunpack.c.h.b16 %v2251
  %v2346 = vunpack.c.l.b16 %v2252
  %v2347 = vunpack.c.h.b16 %v2252
  %v2348 = vunpack.c.l.b16 %v2253
  %v2349 = vunpack.c.h.b16 %v2253
  %v2350 = vpack.c.b16 %v2290, %v2286
  %v2351 = vpack.c.b16 %v2291, %v2287
  %v2352 = vpack.c.b16 %v2292, %v2288
  %v2353 = vpack.c.b16 %v2293, %v2289
  %v2354 = vpack.c.b16 %v2298, %v2294
  %v2355 = vpack.c.b16 %v2299, %v2295
  %v2356 = vpack.c.b16 %v2300, %v2296
  %v2357 = vpack.c.b16 %v2301, %v2297
  %v2358 = vpack.c.b16 %v2306, %v2302
  %v2359 = vpack.c.b16 %v2307, %v2303
  %v2360 = vpack.c.b16 %v2308, %v2304
  %v2361 = vpack.c.b16 %v2309, %v2305
  %v2362 = vpack.c.b16 %v2314, %v2310
  %v2363 = vpack.c.b16 %v2315, %v2311
  %v2364 = vpack.c.b16 %v2316, %v2312
  %v2365 = vpack.c.b16 %v2317, %v2313
  %v2366 = vpack.c.b16 %v2322, %v2318
  %v2367 = vpack.c.b16 %v2323, %v2319
  %v2368 = vpack.c.b16 %v2324, %v2320
  %v2369 = vpack.c.b16 %v2325, %v2321
  %v2370 = vpack.c.b16 %v2330, %v2326
  %v2371 = vpack.c.b16 %v2331, %v2327
  %v2372 = vpack.c.b16 %v2332, %v2328
  %v2373 = vpack.c.b16 %v2333, %v2329
  %v2374 = vpack.c.b16 %v2338, %v2334
  %v2375 = vpack.c.b16 %v2339, %v2335
  %v2376 = vpack.c.b16 %v2340, %v2336
  %v2377 = vpack.c.b16 %v2341, %v2337
  %v2378 = vpack.c.b16 %v2346, %v2342
  %v2379 = vpack.c.b16 %v2347, %v2343
  %v2380 = vpack.c.b16 %v2348, %v2344
  %v2381 = vpack.c.b16 %v2349, %v2345
  %2414 = vmatprep.subr.bf16.mxu0 %v2379
  %2415 = vmatpush1.bf16.msra.mxu0 %v2378
  %2416 = vmatprep.subr.bf16.mxu0 %v2375
  %2417 = vmatpush1.bf16.msra.mxu0 %v2374
  %2418 = vmatprep.subr.bf16.mxu0 %v2371
  %2419 = vmatpush1.bf16.msra.mxu0 %v2370
  %2420 = vmatprep.subr.bf16.mxu0 %v2367
  %2421 = vmatpush1.bf16.msra.mxu0 %v2366
  %2422 = vmatprep.subr.bf16.mxu0 %v2363
  %2423 = vmatpush1.bf16.msra.mxu0 %v2362
  %2424 = vmatprep.subr.bf16.mxu0 %v2359
  %2425 = vmatpush1.bf16.msra.mxu0 %v2358
  %2426 = vmatprep.subr.bf16.mxu0 %v2355
  %2427 = vmatpush1.bf16.msra.mxu0 %v2354
  %2428 = vmatprep.subr.bf16.mxu0 %v2351
  %2429 = vmatpush1.bf16.msra.mxu0 %v2350
  %2430 = vmatprep.subr.bf16.mxu0 0
  %2431 = vmatpush2.bf16.msra.mxu0 0
  %2432 = vmatprep.subr.bf16.mxu0 0
  %2433 = vmatpush2.bf16.msra.mxu0 0
  %2434 = vmatprep.subr.bf16.mxu0 0
  %2435 = vmatpush2.bf16.msra.mxu0 0
  %2436 = vmatprep.subr.bf16.mxu0 0
  %2437 = vmatpush2.bf16.msra.mxu0 0
  %2438 = vmatprep.subr.bf16.mxu0 0
  %2439 = vmatpush2.bf16.msra.mxu0 0
  %2440 = vmatprep.subr.bf16.mxu0 0
  %2441 = vmatpush2.bf16.msra.mxu0 0
  %2442 = vmatprep.subr.bf16.mxu0 0
  %2443 = vmatpush2.bf16.msra.mxu0 0
  %2444 = vmatprep.subr.bf16.mxu0 0
  %2445 = vmatpush2.bf16.msra.mxu0 0
  %2446 = vmatprep.mubr.bf16.mxu0 0
  %2447 = vmatmul.mubr.bf16.gmra.mxu0 %v2221
  %v2448 = vpop.f32.mrf.mxu0
  %v2449 = vadd.f32 0.0, %v2448
  %v2450 = vpop.f32.mrf.mxu0
  %v2451 = vadd.f32 0.0, %v2450
  %v2452 = vpop.f32.mrf.mxu0
  %v2453 = vpop.f32.mrf.mxu0
  %2454 = vdwg.mxu0
  %2455 = vmatprep.subr.bf16.mxu0 %v2381
  %2456 = vmatpush1.bf16.msra.mxu0 %v2380
  %2457 = vmatprep.subr.bf16.mxu0 %v2377
  %2458 = vmatpush1.bf16.msra.mxu0 %v2376
  %2459 = vmatprep.subr.bf16.mxu0 %v2373
  %2460 = vmatpush1.bf16.msra.mxu0 %v2372
  %2461 = vmatprep.subr.bf16.mxu0 %v2369
  %2462 = vmatpush1.bf16.msra.mxu0 %v2368
  %2463 = vmatprep.subr.bf16.mxu0 %v2365
  %2464 = vmatpush1.bf16.msra.mxu0 %v2364
  %2465 = vmatprep.subr.bf16.mxu0 %v2361
  %2466 = vmatpush1.bf16.msra.mxu0 %v2360
  %2467 = vmatprep.subr.bf16.mxu0 %v2357
  %2468 = vmatpush1.bf16.msra.mxu0 %v2356
  %2469 = vmatprep.subr.bf16.mxu0 %v2353
  %2470 = vmatpush1.bf16.msra.mxu0 %v2352
  %2471 = vmatprep.subr.bf16.mxu0 0
  %2472 = vmatpush2.bf16.msra.mxu0 0
  %2473 = vmatprep.subr.bf16.mxu0 0
  %2474 = vmatpush2.bf16.msra.mxu0 0
  %2475 = vmatprep.subr.bf16.mxu0 0
  %2476 = vmatpush2.bf16.msra.mxu0 0
  %2477 = vmatprep.subr.bf16.mxu0 0
  %2478 = vmatpush2.bf16.msra.mxu0 0
  %2479 = vmatprep.subr.bf16.mxu0 0
  %2480 = vmatpush2.bf16.msra.mxu0 0
  %2481 = vmatprep.subr.bf16.mxu0 0
  %2482 = vmatpush2.bf16.msra.mxu0 0
  %2483 = vmatprep.subr.bf16.mxu0 0
  %2484 = vmatpush2.bf16.msra.mxu0 0
  %2485 = vmatprep.subr.bf16.mxu0 0
  %2486 = vmatpush2.bf16.msra.mxu0 0
  %2487 = vmatprep.mubr.bf16.mxu0 0
  %2488 = vmatmul.mubr.bf16.gmra.mxu0 %v2221
  %v2489 = vpop.f32.mrf.mxu0
  %v2490 = vadd.f32 0.0, %v2489
  %v2491 = vpop.f32.mrf.mxu0
  %v2492 = vadd.f32 0.0, %v2491
  %v2493 = vpop.f32.mrf.mxu0
  %v2494 = vpop.f32.mrf.mxu0
  %2495 = vdwg.mxu0
  %v2496 = vadd.f32 %v2217, %v2449
  %v2497 = vadd.f32 %v2218, %v2451
  %v2498 = vadd.f32 %v2219, %v2490
  %v2499 = vadd.f32 %v2220, %v2492
  %v2500 = vxor.u32 %v2496, 2147483648
  %v2501 = vmul.f32 %v2500, 1.442695
  %v2502 = vpow.pop %v2501
  %v2503 = vadd.f32 %v2502, 1.0
  %v2504 = vrcp.pop %v2503
  %v2505 = vmul.f32 1.0, %v2504
  %v2506 = vxor.u32 %v2497, 2147483648
  %v2507 = vmul.f32 %v2506, 1.442695
  %v2508 = vpow.pop %v2507
  %v2509 = vadd.f32 %v2508, 1.0
  %v2510 = vrcp.pop %v2509
  %v2511 = vmul.f32 1.0, %v2510
  %v2512 = vtanh.pop %v2498
  %v2513 = vxor.u32 %v2499, 2147483648
  %v2514 = vmul.f32 %v2513, 1.442695
  %v2515 = vpow.pop %v2514
  %v2516 = vadd.f32 %v2515, 1.0
  %v2517 = vrcp.pop %v2516
  %v2518 = vmul.f32 1.0, %v2517
  %v2519 = vmul.f32 %v2511, %v2211
  %v2520 = vmul.f32 %v2505, %v2512
  %v2521 = vadd.f32 %v2519, %v2520
  %v2522 = vtanh.pop %v2521
  %v2523 = vmul.f32 %v2518, %v2522
  %s2524 = scalar_lea.vmem [#allocation3], 40
  %2525 = vst [vmem:[%s2524] sm:$0xff] %v2523
  %s2526 = scalar_lea.vmem [#allocation2], 192
  %v2527 = vld [vmem:[%s2526] sm:$0xff]
  %v2528 = vld [vmem:[%s2526 + $0x8] sm:$0xff]
  %v2529 = vld [vmem:[%s2526 + $0x10] sm:$0xff]
  %v2530 = vld [vmem:[%s2526 + $0x18] sm:$0xff]
  %v2531 = vpack.c.bf16 %v2523, %v2523
  %v2532 = vld [vmem:[%s4] sm:$0xff]
  %v2533 = vld [vmem:[%s4 + $0x8] sm:$0xff]
  %v2534 = vld [vmem:[%s4 + $0x10] sm:$0xff]
  %v2535 = vld [vmem:[%s4 + $0x18] sm:$0xff]
  %v2536 = vld [vmem:[%s4 + $0x20] sm:$0xff]
  %v2537 = vld [vmem:[%s4 + $0x28] sm:$0xff]
  %v2538 = vld [vmem:[%s4 + $0x30] sm:$0xff]
  %v2539 = vld [vmem:[%s4 + $0x38] sm:$0xff]
  %v2540 = vld [vmem:[%s4 + $0x40] sm:$0xff]
  %v2541 = vld [vmem:[%s4 + $0x48] sm:$0xff]
  %v2542 = vld [vmem:[%s4 + $0x50] sm:$0xff]
  %v2543 = vld [vmem:[%s4 + $0x58] sm:$0xff]
  %v2544 = vld [vmem:[%s4 + $0x60] sm:$0xff]
  %v2545 = vld [vmem:[%s4 + $0x68] sm:$0xff]
  %v2546 = vld [vmem:[%s4 + $0x70] sm:$0xff]
  %v2547 = vld [vmem:[%s4 + $0x78] sm:$0xff]
  %v2548 = vld [vmem:[%s4 + $0x80] sm:$0xff]
  %v2549 = vld [vmem:[%s4 + $0x88] sm:$0xff]
  %v2550 = vld [vmem:[%s4 + $0x90] sm:$0xff]
  %v2551 = vld [vmem:[%s4 + $0x98] sm:$0xff]
  %v2552 = vld [vmem:[%s4 + $0xa0] sm:$0xff]
  %v2553 = vld [vmem:[%s4 + $0xa8] sm:$0xff]
  %v2554 = vld [vmem:[%s4 + $0xb0] sm:$0xff]
  %v2555 = vld [vmem:[%s4 + $0xb8] sm:$0xff]
  %v2556 = vld [vmem:[%s4 + $0xc0] sm:$0xff]
  %v2557 = vld [vmem:[%s4 + $0xc8] sm:$0xff]
  %v2558 = vld [vmem:[%s4 + $0xd0] sm:$0xff]
  %v2559 = vld [vmem:[%s4 + $0xd8] sm:$0xff]
  %v2560 = vld [vmem:[%s4 + $0xe0] sm:$0xff]
  %v2561 = vld [vmem:[%s4 + $0xe8] sm:$0xff]
  %v2562 = vld [vmem:[%s4 + $0xf0] sm:$0xff]
  %v2563 = vld [vmem:[%s4 + $0xf8] sm:$0xff]
  %v2596 = vunpack.c.l.b16 %v2532
  %v2597 = vunpack.c.h.b16 %v2532
  %v2598 = vunpack.c.l.b16 %v2533
  %v2599 = vunpack.c.h.b16 %v2533
  %v2600 = vunpack.c.l.b16 %v2534
  %v2601 = vunpack.c.h.b16 %v2534
  %v2602 = vunpack.c.l.b16 %v2535
  %v2603 = vunpack.c.h.b16 %v2535
  %v2604 = vunpack.c.l.b16 %v2536
  %v2605 = vunpack.c.h.b16 %v2536
  %v2606 = vunpack.c.l.b16 %v2537
  %v2607 = vunpack.c.h.b16 %v2537
  %v2608 = vunpack.c.l.b16 %v2538
  %v2609 = vunpack.c.h.b16 %v2538
  %v2610 = vunpack.c.l.b16 %v2539
  %v2611 = vunpack.c.h.b16 %v2539
  %v2612 = vunpack.c.l.b16 %v2540
  %v2613 = vunpack.c.h.b16 %v2540
  %v2614 = vunpack.c.l.b16 %v2541
  %v2615 = vunpack.c.h.b16 %v2541
  %v2616 = vunpack.c.l.b16 %v2542
  %v2617 = vunpack.c.h.b16 %v2542
  %v2618 = vunpack.c.l.b16 %v2543
  %v2619 = vunpack.c.h.b16 %v2543
  %v2620 = vunpack.c.l.b16 %v2544
  %v2621 = vunpack.c.h.b16 %v2544
  %v2622 = vunpack.c.l.b16 %v2545
  %v2623 = vunpack.c.h.b16 %v2545
  %v2624 = vunpack.c.l.b16 %v2546
  %v2625 = vunpack.c.h.b16 %v2546
  %v2626 = vunpack.c.l.b16 %v2547
  %v2627 = vunpack.c.h.b16 %v2547
  %v2628 = vunpack.c.l.b16 %v2548
  %v2629 = vunpack.c.h.b16 %v2548
  %v2630 = vunpack.c.l.b16 %v2549
  %v2631 = vunpack.c.h.b16 %v2549
  %v2632 = vunpack.c.l.b16 %v2550
  %v2633 = vunpack.c.h.b16 %v2550
  %v2634 = vunpack.c.l.b16 %v2551
  %v2635 = vunpack.c.h.b16 %v2551
  %v2636 = vunpack.c.l.b16 %v2552
  %v2637 = vunpack.c.h.b16 %v2552
  %v2638 = vunpack.c.l.b16 %v2553
  %v2639 = vunpack.c.h.b16 %v2553
  %v2640 = vunpack.c.l.b16 %v2554
  %v2641 = vunpack.c.h.b16 %v2554
  %v2642 = vunpack.c.l.b16 %v2555
  %v2643 = vunpack.c.h.b16 %v2555
  %v2644 = vunpack.c.l.b16 %v2556
  %v2645 = vunpack.c.h.b16 %v2556
  %v2646 = vunpack.c.l.b16 %v2557
  %v2647 = vunpack.c.h.b16 %v2557
  %v2648 = vunpack.c.l.b16 %v2558
  %v2649 = vunpack.c.h.b16 %v2558
  %v2650 = vunpack.c.l.b16 %v2559
  %v2651 = vunpack.c.h.b16 %v2559
  %v2652 = vunpack.c.l.b16 %v2560
  %v2653 = vunpack.c.h.b16 %v2560
  %v2654 = vunpack.c.l.b16 %v2561
  %v2655 = vunpack.c.h.b16 %v2561
  %v2656 = vunpack.c.l.b16 %v2562
  %v2657 = vunpack.c.h.b16 %v2562
  %v2658 = vunpack.c.l.b16 %v2563
  %v2659 = vunpack.c.h.b16 %v2563
  %v2660 = vpack.c.b16 %v2600, %v2596
  %v2661 = vpack.c.b16 %v2601, %v2597
  %v2662 = vpack.c.b16 %v2602, %v2598
  %v2663 = vpack.c.b16 %v2603, %v2599
  %v2664 = vpack.c.b16 %v2608, %v2604
  %v2665 = vpack.c.b16 %v2609, %v2605
  %v2666 = vpack.c.b16 %v2610, %v2606
  %v2667 = vpack.c.b16 %v2611, %v2607
  %v2668 = vpack.c.b16 %v2616, %v2612
  %v2669 = vpack.c.b16 %v2617, %v2613
  %v2670 = vpack.c.b16 %v2618, %v2614
  %v2671 = vpack.c.b16 %v2619, %v2615
  %v2672 = vpack.c.b16 %v2624, %v2620
  %v2673 = vpack.c.b16 %v2625, %v2621
  %v2674 = vpack.c.b16 %v2626, %v2622
  %v2675 = vpack.c.b16 %v2627, %v2623
  %v2676 = vpack.c.b16 %v2632, %v2628
  %v2677 = vpack.c.b16 %v2633, %v2629
  %v2678 = vpack.c.b16 %v2634, %v2630
  %v2679 = vpack.c.b16 %v2635, %v2631
  %v2680 = vpack.c.b16 %v2640, %v2636
  %v2681 = vpack.c.b16 %v2641, %v2637
  %v2682 = vpack.c.b16 %v2642, %v2638
  %v2683 = vpack.c.b16 %v2643, %v2639
  %v2684 = vpack.c.b16 %v2648, %v2644
  %v2685 = vpack.c.b16 %v2649, %v2645
  %v2686 = vpack.c.b16 %v2650, %v2646
  %v2687 = vpack.c.b16 %v2651, %v2647
  %v2688 = vpack.c.b16 %v2656, %v2652
  %v2689 = vpack.c.b16 %v2657, %v2653
  %v2690 = vpack.c.b16 %v2658, %v2654
  %v2691 = vpack.c.b16 %v2659, %v2655
  %2724 = vmatprep.subr.bf16.mxu0 %v2689
  %2725 = vmatpush1.bf16.msra.mxu0 %v2688
  %2726 = vmatprep.subr.bf16.mxu0 %v2685
  %2727 = vmatpush1.bf16.msra.mxu0 %v2684
  %2728 = vmatprep.subr.bf16.mxu0 %v2681
  %2729 = vmatpush1.bf16.msra.mxu0 %v2680
  %2730 = vmatprep.subr.bf16.mxu0 %v2677
  %2731 = vmatpush1.bf16.msra.mxu0 %v2676
  %2732 = vmatprep.subr.bf16.mxu0 %v2673
  %2733 = vmatpush1.bf16.msra.mxu0 %v2672
  %2734 = vmatprep.subr.bf16.mxu0 %v2669
  %2735 = vmatpush1.bf16.msra.mxu0 %v2668
  %2736 = vmatprep.subr.bf16.mxu0 %v2665
  %2737 = vmatpush1.bf16.msra.mxu0 %v2664
  %2738 = vmatprep.subr.bf16.mxu0 %v2661
  %2739 = vmatpush1.bf16.msra.mxu0 %v2660
  %2740 = vmatprep.subr.bf16.mxu0 0
  %2741 = vmatpush2.bf16.msra.mxu0 0
  %2742 = vmatprep.subr.bf16.mxu0 0
  %2743 = vmatpush2.bf16.msra.mxu0 0
  %2744 = vmatprep.subr.bf16.mxu0 0
  %2745 = vmatpush2.bf16.msra.mxu0 0
  %2746 = vmatprep.subr.bf16.mxu0 0
  %2747 = vmatpush2.bf16.msra.mxu0 0
  %2748 = vmatprep.subr.bf16.mxu0 0
  %2749 = vmatpush2.bf16.msra.mxu0 0
  %2750 = vmatprep.subr.bf16.mxu0 0
  %2751 = vmatpush2.bf16.msra.mxu0 0
  %2752 = vmatprep.subr.bf16.mxu0 0
  %2753 = vmatpush2.bf16.msra.mxu0 0
  %2754 = vmatprep.subr.bf16.mxu0 0
  %2755 = vmatpush2.bf16.msra.mxu0 0
  %2756 = vmatprep.mubr.bf16.mxu0 0
  %2757 = vmatmul.mubr.bf16.gmra.mxu0 %v2531
  %v2758 = vpop.f32.mrf.mxu0
  %v2759 = vadd.f32 0.0, %v2758
  %v2760 = vpop.f32.mrf.mxu0
  %v2761 = vadd.f32 0.0, %v2760
  %v2762 = vpop.f32.mrf.mxu0
  %v2763 = vpop.f32.mrf.mxu0
  %2764 = vdwg.mxu0
  %2765 = vmatprep.subr.bf16.mxu0 %v2691
  %2766 = vmatpush1.bf16.msra.mxu0 %v2690
  %2767 = vmatprep.subr.bf16.mxu0 %v2687
  %2768 = vmatpush1.bf16.msra.mxu0 %v2686
  %2769 = vmatprep.subr.bf16.mxu0 %v2683
  %2770 = vmatpush1.bf16.msra.mxu0 %v2682
  %2771 = vmatprep.subr.bf16.mxu0 %v2679
  %2772 = vmatpush1.bf16.msra.mxu0 %v2678
  %2773 = vmatprep.subr.bf16.mxu0 %v2675
  %2774 = vmatpush1.bf16.msra.mxu0 %v2674
  %2775 = vmatprep.subr.bf16.mxu0 %v2671
  %2776 = vmatpush1.bf16.msra.mxu0 %v2670
  %2777 = vmatprep.subr.bf16.mxu0 %v2667
  %2778 = vmatpush1.bf16.msra.mxu0 %v2666
  %2779 = vmatprep.subr.bf16.mxu0 %v2663
  %2780 = vmatpush1.bf16.msra.mxu0 %v2662
  %2781 = vmatprep.subr.bf16.mxu0 0
  %2782 = vmatpush2.bf16.msra.mxu0 0
  %2783 = vmatprep.subr.bf16.mxu0 0
  %2784 = vmatpush2.bf16.msra.mxu0 0
  %2785 = vmatprep.subr.bf16.mxu0 0
  %2786 = vmatpush2.bf16.msra.mxu0 0
  %2787 = vmatprep.subr.bf16.mxu0 0
  %2788 = vmatpush2.bf16.msra.mxu0 0
  %2789 = vmatprep.subr.bf16.mxu0 0
  %2790 = vmatpush2.bf16.msra.mxu0 0
  %2791 = vmatprep.subr.bf16.mxu0 0
  %2792 = vmatpush2.bf16.msra.mxu0 0
  %2793 = vmatprep.subr.bf16.mxu0 0
  %2794 = vmatpush2.bf16.msra.mxu0 0
  %2795 = vmatprep.subr.bf16.mxu0 0
  %2796 = vmatpush2.bf16.msra.mxu0 0
  %2797 = vmatprep.mubr.bf16.mxu0 0
  %2798 = vmatmul.mubr.bf16.gmra.mxu0 %v2531
  %v2799 = vpop.f32.mrf.mxu0
  %v2800 = vadd.f32 0.0, %v2799
  %v2801 = vpop.f32.mrf.mxu0
  %v2802 = vadd.f32 0.0, %v2801
  %v2803 = vpop.f32.mrf.mxu0
  %v2804 = vpop.f32.mrf.mxu0
  %2805 = vdwg.mxu0
  %v2806 = vadd.f32 %v2527, %v2759
  %v2807 = vadd.f32 %v2528, %v2761
  %v2808 = vadd.f32 %v2529, %v2800
  %v2809 = vadd.f32 %v2530, %v2802
  %v2810 = vxor.u32 %v2806, 2147483648
  %v2811 = vmul.f32 %v2810, 1.442695
  %v2812 = vpow.pop %v2811
  %v2813 = vadd.f32 %v2812, 1.0
  %v2814 = vrcp.pop %v2813
  %v2815 = vmul.f32 1.0, %v2814
  %v2816 = vxor.u32 %v2807, 2147483648
  %v2817 = vmul.f32 %v2816, 1.442695
  %v2818 = vpow.pop %v2817
  %v2819 = vadd.f32 %v2818, 1.0
  %v2820 = vrcp.pop %v2819
  %v2821 = vmul.f32 1.0, %v2820
  %v2822 = vtanh.pop %v2808
  %v2823 = vxor.u32 %v2809, 2147483648
  %v2824 = vmul.f32 %v2823, 1.442695
  %v2825 = vpow.pop %v2824
  %v2826 = vadd.f32 %v2825, 1.0
  %v2827 = vrcp.pop %v2826
  %v2828 = vmul.f32 1.0, %v2827
  %v2829 = vmul.f32 %v2821, %v2521
  %v2830 = vmul.f32 %v2815, %v2822
  %v2831 = vadd.f32 %v2829, %v2830
  %v2832 = vtanh.pop %v2831
  %v2833 = vmul.f32 %v2828, %v2832
  %s2834 = scalar_lea.vmem [#allocation3], 48
  %2835 = vst [vmem:[%s2834] sm:$0xff] %v2833
  %s2836 = scalar_lea.vmem [#allocation2], 224
  %v2837 = vld [vmem:[%s2836] sm:$0xff]
  %v2838 = vld [vmem:[%s2836 + $0x8] sm:$0xff]
  %v2839 = vld [vmem:[%s2836 + $0x10] sm:$0xff]
  %v2840 = vld [vmem:[%s2836 + $0x18] sm:$0xff]
  %v2841 = vpack.c.bf16 %v2833, %v2833
  %v2842 = vld [vmem:[%s4] sm:$0xff]
  %v2843 = vld [vmem:[%s4 + $0x8] sm:$0xff]
  %v2844 = vld [vmem:[%s4 + $0x10] sm:$0xff]
  %v2845 = vld [vmem:[%s4 + $0x18] sm:$0xff]
  %v2846 = vld [vmem:[%s4 + $0x20] sm:$0xff]
  %v2847 = vld [vmem:[%s4 + $0x28] sm:$0xff]
  %v2848 = vld [vmem:[%s4 + $0x30] sm:$0xff]
  %v2849 = vld [vmem:[%s4 + $0x38] sm:$0xff]
  %v2850 = vld [vmem:[%s4 + $0x40] sm:$0xff]
  %v2851 = vld [vmem:[%s4 + $0x48] sm:$0xff]
  %v2852 = vld [vmem:[%s4 + $0x50] sm:$0xff]
  %v2853 = vld [vmem:[%s4 + $0x58] sm:$0xff]
  %v2854 = vld [vmem:[%s4 + $0x60] sm:$0xff]
  %v2855 = vld [vmem:[%s4 + $0x68] sm:$0xff]
  %v2856 = vld [vmem:[%s4 + $0x70] sm:$0xff]
  %v2857 = vld [vmem:[%s4 + $0x78] sm:$0xff]
  %v2858 = vld [vmem:[%s4 + $0x80] sm:$0xff]
  %v2859 = vld [vmem:[%s4 + $0x88] sm:$0xff]
  %v2860 = vld [vmem:[%s4 + $0x90] sm:$0xff]
  %v2861 = vld [vmem:[%s4 + $0x98] sm:$0xff]
  %v2862 = vld [vmem:[%s4 + $0xa0] sm:$0xff]
  %v2863 = vld [vmem:[%s4 + $0xa8] sm:$0xff]
  %v2864 = vld [vmem:[%s4 + $0xb0] sm:$0xff]
  %v2865 = vld [vmem:[%s4 + $0xb8] sm:$0xff]
  %v2866 = vld [vmem:[%s4 + $0xc0] sm:$0xff]
  %v2867 = vld [vmem:[%s4 + $0xc8] sm:$0xff]
  %v2868 = vld [vmem:[%s4 + $0xd0] sm:$0xff]
  %v2869 = vld [vmem:[%s4 + $0xd8] sm:$0xff]
  %v2870 = vld [vmem:[%s4 + $0xe0] sm:$0xff]
  %v2871 = vld [vmem:[%s4 + $0xe8] sm:$0xff]
  %v2872 = vld [vmem:[%s4 + $0xf0] sm:$0xff]
  %v2873 = vld [vmem:[%s4 + $0xf8] sm:$0xff]
  %v2906 = vunpack.c.l.b16 %v2842
  %v2907 = vunpack.c.h.b16 %v2842
  %v2908 = vunpack.c.l.b16 %v2843
  %v2909 = vunpack.c.h.b16 %v2843
  %v2910 = vunpack.c.l.b16 %v2844
  %v2911 = vunpack.c.h.b16 %v2844
  %v2912 = vunpack.c.l.b16 %v2845
  %v2913 = vunpack.c.h.b16 %v2845
  %v2914 = vunpack.c.l.b16 %v2846
  %v2915 = vunpack.c.h.b16 %v2846
  %v2916 = vunpack.c.l.b16 %v2847
  %v2917 = vunpack.c.h.b16 %v2847
  %v2918 = vunpack.c.l.b16 %v2848
  %v2919 = vunpack.c.h.b16 %v2848
  %v2920 = vunpack.c.l.b16 %v2849
  %v2921 = vunpack.c.h.b16 %v2849
  %v2922 = vunpack.c.l.b16 %v2850
  %v2923 = vunpack.c.h.b16 %v2850
  %v2924 = vunpack.c.l.b16 %v2851
  %v2925 = vunpack.c.h.b16 %v2851
  %v2926 = vunpack.c.l.b16 %v2852
  %v2927 = vunpack.c.h.b16 %v2852
  %v2928 = vunpack.c.l.b16 %v2853
  %v2929 = vunpack.c.h.b16 %v2853
  %v2930 = vunpack.c.l.b16 %v2854
  %v2931 = vunpack.c.h.b16 %v2854
  %v2932 = vunpack.c.l.b16 %v2855
  %v2933 = vunpack.c.h.b16 %v2855
  %v2934 = vunpack.c.l.b16 %v2856
  %v2935 = vunpack.c.h.b16 %v2856
  %v2936 = vunpack.c.l.b16 %v2857
  %v2937 = vunpack.c.h.b16 %v2857
  %v2938 = vunpack.c.l.b16 %v2858
  %v2939 = vunpack.c.h.b16 %v2858
  %v2940 = vunpack.c.l.b16 %v2859
  %v2941 = vunpack.c.h.b16 %v2859
  %v2942 = vunpack.c.l.b16 %v2860
  %v2943 = vunpack.c.h.b16 %v2860
  %v2944 = vunpack.c.l.b16 %v2861
  %v2945 = vunpack.c.h.b16 %v2861
  %v2946 = vunpack.c.l.b16 %v2862
  %v2947 = vunpack.c.h.b16 %v2862
  %v2948 = vunpack.c.l.b16 %v2863
  %v2949 = vunpack.c.h.b16 %v2863
  %v2950 = vunpack.c.l.b16 %v2864
  %v2951 = vunpack.c.h.b16 %v2864
  %v2952 = vunpack.c.l.b16 %v2865
  %v2953 = vunpack.c.h.b16 %v2865
  %v2954 = vunpack.c.l.b16 %v2866
  %v2955 = vunpack.c.h.b16 %v2866
  %v2956 = vunpack.c.l.b16 %v2867
  %v2957 = vunpack.c.h.b16 %v2867
  %v2958 = vunpack.c.l.b16 %v2868
  %v2959 = vunpack.c.h.b16 %v2868
  %v2960 = vunpack.c.l.b16 %v2869
  %v2961 = vunpack.c.h.b16 %v2869
  %v2962 = vunpack.c.l.b16 %v2870
  %v2963 = vunpack.c.h.b16 %v2870
  %v2964 = vunpack.c.l.b16 %v2871
  %v2965 = vunpack.c.h.b16 %v2871
  %v2966 = vunpack.c.l.b16 %v2872
  %v2967 = vunpack.c.h.b16 %v2872
  %v2968 = vunpack.c.l.b16 %v2873
  %v2969 = vunpack.c.h.b16 %v2873
  %v2970 = vpack.c.b16 %v2910, %v2906
  %v2971 = vpack.c.b16 %v2911, %v2907
  %v2972 = vpack.c.b16 %v2912, %v2908
  %v2973 = vpack.c.b16 %v2913, %v2909
  %v2974 = vpack.c.b16 %v2918, %v2914
  %v2975 = vpack.c.b16 %v2919, %v2915
  %v2976 = vpack.c.b16 %v2920, %v2916
  %v2977 = vpack.c.b16 %v2921, %v2917
  %v2978 = vpack.c.b16 %v2926, %v2922
  %v2979 = vpack.c.b16 %v2927, %v2923
  %v2980 = vpack.c.b16 %v2928, %v2924
  %v2981 = vpack.c.b16 %v2929, %v2925
  %v2982 = vpack.c.b16 %v2934, %v2930
  %v2983 = vpack.c.b16 %v2935, %v2931
  %v2984 = vpack.c.b16 %v2936, %v2932
  %v2985 = vpack.c.b16 %v2937, %v2933
  %v2986 = vpack.c.b16 %v2942, %v2938
  %v2987 = vpack.c.b16 %v2943, %v2939
  %v2988 = vpack.c.b16 %v2944, %v2940
  %v2989 = vpack.c.b16 %v2945, %v2941
  %v2990 = vpack.c.b16 %v2950, %v2946
  %v2991 = vpack.c.b16 %v2951, %v2947
  %v2992 = vpack.c.b16 %v2952, %v2948
  %v2993 = vpack.c.b16 %v2953, %v2949
  %v2994 = vpack.c.b16 %v2958, %v2954
  %v2995 = vpack.c.b16 %v2959, %v2955
  %v2996 = vpack.c.b16 %v2960, %v2956
  %v2997 = vpack.c.b16 %v2961, %v2957
  %v2998 = vpack.c.b16 %v2966, %v2962
  %v2999 = vpack.c.b16 %v2967, %v2963
  %v3000 = vpack.c.b16 %v2968, %v2964
  %v3001 = vpack.c.b16 %v2969, %v2965
  %3034 = vmatprep.subr.bf16.mxu0 %v2999
  %3035 = vmatpush1.bf16.msra.mxu0 %v2998
  %3036 = vmatprep.subr.bf16.mxu0 %v2995
  %3037 = vmatpush1.bf16.msra.mxu0 %v2994
  %3038 = vmatprep.subr.bf16.mxu0 %v2991
  %3039 = vmatpush1.bf16.msra.mxu0 %v2990
  %3040 = vmatprep.subr.bf16.mxu0 %v2987
  %3041 = vmatpush1.bf16.msra.mxu0 %v2986
  %3042 = vmatprep.subr.bf16.mxu0 %v2983
  %3043 = vmatpush1.bf16.msra.mxu0 %v2982
  %3044 = vmatprep.subr.bf16.mxu0 %v2979
  %3045 = vmatpush1.bf16.msra.mxu0 %v2978
  %3046 = vmatprep.subr.bf16.mxu0 %v2975
  %3047 = vmatpush1.bf16.msra.mxu0 %v2974
  %3048 = vmatprep.subr.bf16.mxu0 %v2971
  %3049 = vmatpush1.bf16.msra.mxu0 %v2970
  %3050 = vmatprep.subr.bf16.mxu0 0
  %3051 = vmatpush2.bf16.msra.mxu0 0
  %3052 = vmatprep.subr.bf16.mxu0 0
  %3053 = vmatpush2.bf16.msra.mxu0 0
  %3054 = vmatprep.subr.bf16.mxu0 0
  %3055 = vmatpush2.bf16.msra.mxu0 0
  %3056 = vmatprep.subr.bf16.mxu0 0
  %3057 = vmatpush2.bf16.msra.mxu0 0
  %3058 = vmatprep.subr.bf16.mxu0 0
  %3059 = vmatpush2.bf16.msra.mxu0 0
  %3060 = vmatprep.subr.bf16.mxu0 0
  %3061 = vmatpush2.bf16.msra.mxu0 0
  %3062 = vmatprep.subr.bf16.mxu0 0
  %3063 = vmatpush2.bf16.msra.mxu0 0
  %3064 = vmatprep.subr.bf16.mxu0 0
  %3065 = vmatpush2.bf16.msra.mxu0 0
  %3066 = vmatprep.mubr.bf16.mxu0 0
  %3067 = vmatmul.mubr.bf16.gmra.mxu0 %v2841
  %v3068 = vpop.f32.mrf.mxu0
  %v3069 = vadd.f32 0.0, %v3068
  %v3070 = vpop.f32.mrf.mxu0
  %v3071 = vadd.f32 0.0, %v3070
  %v3072 = vpop.f32.mrf.mxu0
  %v3073 = vpop.f32.mrf.mxu0
  %3074 = vdwg.mxu0
  %3075 = vmatprep.subr.bf16.mxu0 %v3001
  %3076 = vmatpush1.bf16.msra.mxu0 %v3000
  %3077 = vmatprep.subr.bf16.mxu0 %v2997
  %3078 = vmatpush1.bf16.msra.mxu0 %v2996
  %3079 = vmatprep.subr.bf16.mxu0 %v2993
  %3080 = vmatpush1.bf16.msra.mxu0 %v2992
  %3081 = vmatprep.subr.bf16.mxu0 %v2989
  %3082 = vmatpush1.bf16.msra.mxu0 %v2988
  %3083 = vmatprep.subr.bf16.mxu0 %v2985
  %3084 = vmatpush1.bf16.msra.mxu0 %v2984
  %3085 = vmatprep.subr.bf16.mxu0 %v2981
  %3086 = vmatpush1.bf16.msra.mxu0 %v2980
  %3087 = vmatprep.subr.bf16.mxu0 %v2977
  %3088 = vmatpush1.bf16.msra.mxu0 %v2976
  %3089 = vmatprep.subr.bf16.mxu0 %v2973
  %3090 = vmatpush1.bf16.msra.mxu0 %v2972
  %3091 = vmatprep.subr.bf16.mxu0 0
  %3092 = vmatpush2.bf16.msra.mxu0 0
  %3093 = vmatprep.subr.bf16.mxu0 0
  %3094 = vmatpush2.bf16.msra.mxu0 0
  %3095 = vmatprep.subr.bf16.mxu0 0
  %3096 = vmatpush2.bf16.msra.mxu0 0
  %3097 = vmatprep.subr.bf16.mxu0 0
  %3098 = vmatpush2.bf16.msra.mxu0 0
  %3099 = vmatprep.subr.bf16.mxu0 0
  %3100 = vmatpush2.bf16.msra.mxu0 0
  %3101 = vmatprep.subr.bf16.mxu0 0
  %3102 = vmatpush2.bf16.msra.mxu0 0
  %3103 = vmatprep.subr.bf16.mxu0 0
  %3104 = vmatpush2.bf16.msra.mxu0 0
  %3105 = vmatprep.subr.bf16.mxu0 0
  %3106 = vmatpush2.bf16.msra.mxu0 0
  %3107 = vmatprep.mubr.bf16.mxu0 0
  %3108 = vmatmul.mubr.bf16.gmra.mxu0 %v2841
  %v3109 = vpop.f32.mrf.mxu0
  %v3110 = vadd.f32 0.0, %v3109
  %v3111 = vpop.f32.mrf.mxu0
  %v3112 = vadd.f32 0.0, %v3111
  %v3113 = vpop.f32.mrf.mxu0
  %v3114 = vpop.f32.mrf.mxu0
  %3115 = vdwg.mxu0
  %v3116 = vadd.f32 %v2837, %v3069
  %v3117 = vadd.f32 %v2838, %v3071
  %v3118 = vadd.f32 %v2839, %v3110
  %v3119 = vadd.f32 %v2840, %v3112
  %v3120 = vxor.u32 %v3116, 2147483648
  %v3121 = vmul.f32 %v3120, 1.442695
  %v3122 = vpow.pop %v3121
  %v3123 = vadd.f32 %v3122, 1.0
  %v3124 = vrcp.pop %v3123
  %v3125 = vmul.f32 1.0, %v3124
  %v3126 = vxor.u32 %v3117, 2147483648
  %v3127 = vmul.f32 %v3126, 1.442695
  %v3128 = vpow.pop %v3127
  %v3129 = vadd.f32 %v3128, 1.0
  %v3130 = vrcp.pop %v3129
  %v3131 = vmul.f32 1.0, %v3130
  %v3132 = vtanh.pop %v3118
  %v3133 = vxor.u32 %v3119, 2147483648
  %v3134 = vmul.f32 %v3133, 1.442695
  %v3135 = vpow.pop %v3134
  %v3136 = vadd.f32 %v3135, 1.0
  %v3137 = vrcp.pop %v3136
  %v3138 = vmul.f32 1.0, %v3137
  %v3139 = vmul.f32 %v3131, %v2831
  %v3140 = vmul.f32 %v3125, %v3132
  %v3141 = vadd.f32 %v3139, %v3140
  %v3142 = vtanh.pop %v3141
  %v3143 = vmul.f32 %v3138, %v3142
  %s3144 = scalar_lea.vmem [#allocation3], 56
  %3145 = vst [vmem:[%s3144] sm:$0xff] %v3143
  %v3146 = vld [vmem:[#allocation3] sm:$0xff]
  %v3147 = vld [vmem:[#allocation3 + $0x8] sm:$0xff]
  %v3148 = vld [vmem:[#allocation3 + $0x10] sm:$0xff]
  %v3149 = vld [vmem:[#allocation3 + $0x18] sm:$0xff]
  %v3150 = vld [vmem:[#allocation3 + $0x20] sm:$0xff]
  %v3151 = vld [vmem:[#allocation3 + $0x28] sm:$0xff]
  %v3152 = vld [vmem:[#allocation3 + $0x30] sm:$0xff]
  %v3153 = vld [vmem:[#allocation3 + $0x38] sm:$0xff]
  %v3154 = vcombine.low %v3146, %v3148
  %v3155 = vcombine.high %v3146, %v3148
  %v3157 = vunpack.c.l.s4 1983009808
  %v3158 = vunpack.c.0.s8 %v3157
  %v3159 = vlaneseq
  %v3160 = vshrl.u32 %v3159, 7
  %v3161 = vsub.s32 %v3158, %v3160
  %v3162 = vrot.slane %v3154, %v3161
  %v3164 = vunpack.c.l.s4 1983009808
  %v3165 = vunpack.c.0.s8 %v3164
  %v3166 = vlaneseq
  %v3167 = vshrl.u32 %v3166, 7
  %v3168 = vsub.s32 %v3165, %v3167
  %v3169 = vrot.slane %v3155, %v3168
  %v3170 = vcombine.low %v3147, %v3149
  %v3171 = vcombine.high %v3147, %v3149
  %v3173 = vunpack.c.l.s4 1983009808
  %v3174 = vunpack.c.0.s8 %v3173
  %v3175 = vlaneseq
  %v3176 = vshrl.u32 %v3175, 7
  %v3177 = vsub.s32 %v3174, %v3176
  %v3178 = vrot.slane %v3170, %v3177
  %v3180 = vunpack.c.l.s4 1983009808
  %v3181 = vunpack.c.0.s8 %v3180
  %v3182 = vlaneseq
  %v3183 = vshrl.u32 %v3182, 7
  %v3184 = vsub.s32 %v3181, %v3183
  %v3185 = vrot.slane %v3171, %v3184
  %v3186 = vcombine.low %v3150, %v3152
  %v3187 = vcombine.high %v3150, %v3152
  %v3189 = vunpack.c.l.s4 1983009808
  %v3190 = vunpack.c.0.s8 %v3189
  %v3191 = vlaneseq
  %v3192 = vshrl.u32 %v3191, 7
  %v3193 = vsub.s32 %v3190, %v3192
  %v3194 = vrot.slane %v3186, %v3193
  %v3196 = vunpack.c.l.s4 1983009808
  %v3197 = vunpack.c.0.s8 %v3196
  %v3198 = vlaneseq
  %v3199 = vshrl.u32 %v3198, 7
  %v3200 = vsub.s32 %v3197, %v3199
  %v3201 = vrot.slane %v3187, %v3200
  %v3202 = vcombine.low %v3151, %v3153
  %v3203 = vcombine.high %v3151, %v3153
  %v3205 = vunpack.c.l.s4 1983009808
  %v3206 = vunpack.c.0.s8 %v3205
  %v3207 = vlaneseq
  %v3208 = vshrl.u32 %v3207, 7
  %v3209 = vsub.s32 %v3206, %v3208
  %v3210 = vrot.slane %v3202, %v3209
  %v3212 = vunpack.c.l.s4 1983009808
  %v3213 = vunpack.c.0.s8 %v3212
  %v3214 = vlaneseq
  %v3215 = vshrl.u32 %v3214, 7
  %v3216 = vsub.s32 %v3213, %v3215
  %v3217 = vrot.slane %v3203, %v3216
  %v3218 = vcombine.low %v3162, %v3178
  %v3219 = vcombine.high %v3162, %v3178
  %v3221 = vunpack.c.l.s4 1934713408
  %v3222 = vunpack.c.0.s8 %v3221
  %v3223 = vlaneseq
  %v3224 = vshrl.u32 %v3223, 7
  %v3225 = vsub.s32 %v3222, %v3224
  %v3226 = vrot.slane %v3218, %v3225
  %v3228 = vunpack.c.l.s4 1934713408
  %v3229 = vunpack.c.0.s8 %v3228
  %v3230 = vlaneseq
  %v3231 = vshrl.u32 %v3230, 7
  %v3232 = vsub.s32 %v3229, %v3231
  %v3233 = vrot.slane %v3219, %v3232
  %v3234 = vcombine.low %v3169, %v3185
  %v3235 = vcombine.high %v3169, %v3185
  %v3237 = vunpack.c.l.s4 1934713408
  %v3238 = vunpack.c.0.s8 %v3237
  %v3239 = vlaneseq
  %v3240 = vshrl.u32 %v3239, 7
  %v3241 = vsub.s32 %v3238, %v3240
  %v3242 = vrot.slane %v3234, %v3241
  %v3244 = vunpack.c.l.s4 1934713408
  %v3245 = vunpack.c.0.s8 %v3244
  %v3246 = vlaneseq
  %v3247 = vshrl.u32 %v3246, 7
  %v3248 = vsub.s32 %v3245, %v3247
  %v3249 = vrot.slane %v3235, %v3248
  %v3250 = vcombine.low %v3194, %v3210
  %v3251 = vcombine.high %v3194, %v3210
  %v3253 = vunpack.c.l.s4 1934713408
  %v3254 = vunpack.c.0.s8 %v3253
  %v3255 = vlaneseq
  %v3256 = vshrl.u32 %v3255, 7
  %v3257 = vsub.s32 %v3254, %v3256
  %v3258 = vrot.slane %v3250, %v3257
  %v3260 = vunpack.c.l.s4 1934713408
  %v3261 = vunpack.c.0.s8 %v3260
  %v3262 = vlaneseq
  %v3263 = vshrl.u32 %v3262, 7
  %v3264 = vsub.s32 %v3261, %v3263
  %v3265 = vrot.slane %v3251, %v3264
  %v3266 = vcombine.low %v3201, %v3217
  %v3267 = vcombine.high %v3201, %v3217
  %v3269 = vunpack.c.l.s4 1934713408
  %v3270 = vunpack.c.0.s8 %v3269
  %v3271 = vlaneseq
  %v3272 = vshrl.u32 %v3271, 7
  %v3273 = vsub.s32 %v3270, %v3272
  %v3274 = vrot.slane %v3266, %v3273
  %v3276 = vunpack.c.l.s4 1934713408
  %v3277 = vunpack.c.0.s8 %v3276
  %v3278 = vlaneseq
  %v3279 = vshrl.u32 %v3278, 7
  %v3280 = vsub.s32 %v3277, %v3279
  %v3281 = vrot.slane %v3267, %v3280
  %v3282 = vcombine.low %v3226, %v3258
  %v3283 = vcombine.high %v3226, %v3258
  %v3284 = vcombine.low %v3233, %v3265
  %v3285 = vcombine.high %v3233, %v3265
  %v3286 = vcombine.low %v3242, %v3274
  %v3287 = vcombine.high %v3242, %v3274
  %v3288 = vcombine.low %v3249, %v3281
  %v3289 = vcombine.high %v3249, %v3281
  %3290 = vst [vmem:[%s6] sm:$0xff] %v3282
  %3291 = vst [vmem:[%s6 + $0x8] sm:$0xff] %v3283
  %3292 = vst [vmem:[%s6 + $0x10] sm:$0xff] %v3284
  %3293 = vst [vmem:[%s6 + $0x18] sm:$0xff] %v3285
  %3294 = vst [vmem:[%s6 + $0x20] sm:$0xff] %v3286
  %3295 = vst [vmem:[%s6 + $0x28] sm:$0xff] %v3287
  %3296 = vst [vmem:[%s6 + $0x30] sm:$0xff] %v3288
  %3297 = vst [vmem:[%s6 + $0x38] sm:$0xff] %v3289
  // Predicated region
  $region26: #{tsrnn_forward.1} parent=0 // pred_check
    _
  $region27: #{tsrnn_forward.1} parent=0 // pred_check_branch
    %3299 = sbr.rel (0) target = $region29
  $region28: #{tsrnn_forward.1} parent=0 // pred_region
    _
  $region29: #{tsrnn_forward.1} parent=0 // pred_fallthru
    _
  // Predicated region
  $region30: #{tsrnn_forward.1} parent=0 // pred_check
    _
  $region31: #{tsrnn_forward.1} parent=0 // pred_check_branch
    %3301 = sbr.rel (0) target = $region33
  $region32: #{tsrnn_forward.1} parent=0 // pred_region
    _
  $region33: #{tsrnn_forward.1} parent=0 // pred_fallthru
    _

</llo_original>
